<compile_context>
chip_gen: v7x
topology: tpu7x:2x2x1
jax: 0.10.0
libtpu: 0.0.40
codegen_flags: <defaults>
</compile_context>

<pallas_src>
import functools

import jax
import jax.numpy as jnp
import numpy as np
from jax import lax
from jax.experimental import pallas as pl
from jax.experimental.pallas import tpu as pltpu

LANE = 128
VMEM_LIMIT = 40 * 1024 * 1024


def _rup(x, m):
    return (x + m - 1) // m * m


def _silu(y):
    return y * jax.nn.sigmoid(y)


def _pick_tq(Ho, Wo, dcp, k, s):
    """Output-rows per grid step for kernel 1: biggest tile that keeps the per-step
    VMEM working set ~<= 20 MiB while leaving >= ~4 row tiles for pipelining."""
    ext = (k - 1) // s
    Wq8 = _rup(Wo + ext, 8)
    nb = ext + 1
    per_row = (s * s * Wq8 * dcp * 2 * 2          # input block, bf16, double-buffered
               + (nb + 1) * Wq8 * dcp * 4          # f32 per-offset accumulators + product
               + 3 * Wo * dcp * 4                  # pc_ext / dwacc / misc f32 temps
               + Wo * dcp * 2                      # pcpad scratch (bf16)
               + Wo * 2 * dcp * 2 * 2)             # output block, bf16, double-buffered
    budget = 20 * 1024 * 1024
    tq = min(Ho, max(1, budget // per_row), max(8, Ho // 4))
    while Ho % tq:
        tq -= 1
    return tq


# --------------------------------------------------------------------------
# Kernel 1: partial_conv3 (+BN+SiLU) + depthwise conv (+BN+SiLU) + mid BN/SiLU
# --------------------------------------------------------------------------
def _pconv_dw_kernel(x_ref, w1_ref, wdw_ref, sb_ref, o_ref, pcpad_ref, *,
                     k, s, tq, nq, Wo, Wq8, Rin, dcp):
    p = k // 2
    Rext = tq + 2 * p                 # pc rows incl. depthwise halo (recomputed)
    bmax = (k - 1) // s
    t = pl.program_id(1)

    # ---- partial_conv3: k^2 full-width band matmuls on the MXU -------------
    # Bands are contiguous leading-dim slices of the phase-split input (no relayout);
    # the kw sub-offset b is handled with per-b accumulators so every accumulate add
    # stays lane/sublane aligned, then combined once after the tap loop.
    accs = [jnp.zeros((Rext * Wq8, dcp), jnp.float32) for _ in range(bmax + 1)]
    for kh in range(k):
        r, a = kh % s, kh // s
        for kw in range(k):
            c, b = kw % s, kw // s
            base = (r * s + c) * Rin + a
            band = x_ref[base:base + Rext, :, :].reshape(Rext * Wq8, dcp)
            accs[b] = accs[b] + jnp.dot(band, w1_ref[kh * k + kw],
                                        preferred_element_type=jnp.float32)
    acc = accs[0].reshape(Rext, Wq8, dcp)[:, :Wo, :]
    for b in range(1, bmax + 1):
        acc = acc + accs[b].reshape(Rext, Wq8, dcp)[:, b:b + Wo, :]

    s1, b1, sdw, bdw = sb_ref[0], sb_ref[1], sb_ref[2], sb_ref[3]
    smp, bmp, smd, bmd = sb_ref[4], sb_ref[5], sb_ref[6], sb_ref[7]

    pc_ext = _silu(acc * s1 + b1)                      # (Rext, Wo, dcp) f32

    # ---- depthwise k x k conv (stride 1, zero pad p) on the activated pc ----
    # bf16 scratch; interior fully rewritten each step, so only zero the p-wide
    # W frame and the out-of-image row halo on the first / last row tile.
    pcpad_ref[:, p:p + Wo, :] = pc_ext.astype(pcpad_ref.dtype)
    if p > 0:
        pcpad_ref[:, :p, :] = jnp.zeros((Rext, p, dcp), pcpad_ref.dtype)
        pcpad_ref[:, p + Wo:, :] = jnp.zeros((Rext, p, dcp), pcpad_ref.dtype)

        @pl.when(t == 0)
        def _():
            pcpad_ref[:p, :, :] = jnp.zeros((p, Wo + 2 * p, dcp), pcpad_ref.dtype)

        @pl.when(t == nq - 1)
        def _():
            pcpad_ref[p + tq:, :, :] = jnp.zeros((p, Wo + 2 * p, dcp), pcpad_ref.dtype)

    wdw = wdw_ref[...]                                 # (k*k, dcp) f32
    dwacc = jnp.zeros((tq, Wo, dcp), jnp.float32)
    for kh in range(k):
        for kw in range(k):
            tap = pcpad_ref[kh:kh + tq, kw:kw + Wo, :].astype(jnp.float32)
            dwacc = dwacc + tap * wdw[kh * k + kw]

    dw_mid = _silu(_silu(dwacc * sdw + bdw) * smd + bmd)
    pc_mid = _silu(pc_ext[p:p + tq] * smp + bmp)

    o_ref[:, :, :dcp] = pc_mid.astype(o_ref.dtype)
    o_ref[:, :, dcp:] = dw_mid.astype(o_ref.dtype)


def pconv_dw(xt, w1, wdw, sb, *, k, s, tq, nq, N, Ho, Wo, Wq8, Rin, dcp):
    p = k // 2
    Rext = tq + 2 * p
    kern = functools.partial(_pconv_dw_kernel, k=k, s=s, tq=tq, nq=nq, Wo=Wo,
                             Wq8=Wq8, Rin=Rin, dcp=dcp)
    flops = (2 * N * nq * Rext * Wq8 * dcp * dcp * k * k
             + 2 * N * Ho * Wo * dcp * k * k)
    bytes_accessed = (xt.size * 2 + N * Ho * Wo * 2 * dcp * 2
                      + w1.size * 2 + (wdw.size + sb.size) * 4)
    return pl.pallas_call(
        kern,
        out_shape=jax.ShapeDtypeStruct((N, Ho, Wo, 2 * dcp), jnp.bfloat16),
        grid=(N, nq),
        in_specs=[
            pl.BlockSpec((None, s * s * Rin, Wq8, dcp),
                         lambda n, t: (n * nq + t, 0, 0, 0)),
            pl.BlockSpec((k * k, dcp, dcp), lambda n, t: (0, 0, 0)),
            pl.BlockSpec((k * k, dcp), lambda n, t: (0, 0)),
            pl.BlockSpec((8, dcp), lambda n, t: (0, 0)),
        ],
        out_specs=pl.BlockSpec((None, tq, Wo, 2 * dcp), lambda n, t: (n, t, 0, 0)),
        scratch_shapes=[pltpu.VMEM((Rext, Wo + 2 * p, dcp), jnp.bfloat16)],
        compiler_params=pltpu.CompilerParams(
            dimension_semantics=("parallel", "parallel"),
            vmem_limit_bytes=VMEM_LIMIT),
        cost_estimate=pl.CostEstimate(
            flops=int(flops),
            transcendentals=int(4 * N * Ho * Wo * dcp),
            bytes_accessed=int(bytes_accessed)),
    )(xt, w1, wdw, sb)


# --------------------------------------------------------------------------
# Kernel 2: mid BN/SiLU on pooled x2 + two 1x1 matmuls (split cv2 weight) + BN/SiLU
# --------------------------------------------------------------------------
def _tail_kernel(avg_ref, pcdw_ref, ab_ref, w2_ref, sb2_ref, o_ref, *, dup):
    ya = _silu(avg_ref[...].astype(jnp.float32) * ab_ref[0] + ab_ref[1])
    acc = jnp.dot(ya.astype(jnp.bfloat16), w2_ref[:dup, :],
                  preferred_element_type=jnp.float32)
    acc = acc + jnp.dot(pcdw_ref[...], w2_ref[dup:, :],
                        preferred_element_type=jnp.float32)
    o_ref[...] = _silu(acc * sb2_ref[0] + sb2_ref[1]).astype(o_ref.dtype)


def tail_fused(avg, pcdw, ab, w2, sb2, *, tm):
    Mp, dup = avg.shape
    dc2 = pcdw.shape[1]
    Kall, c2p = w2.shape
    kern = functools.partial(_tail_kernel, dup=dup)
    return pl.pallas_call(
        kern,
        out_shape=jax.ShapeDtypeStruct((Mp, c2p), jnp.bfloat16),
        grid=(Mp // tm,),
        in_specs=[
            pl.BlockSpec((tm, dup), lambda i: (i, 0)),
            pl.BlockSpec((tm, dc2), lambda i: (i, 0)),
            pl.BlockSpec((2, dup), lambda i: (0, 0)),
            pl.BlockSpec((Kall, c2p), lambda i: (0, 0)),
            pl.BlockSpec((2, c2p), lambda i: (0, 0)),
        ],
        out_specs=pl.BlockSpec((tm, c2p), lambda i: (i, 0)),
        compiler_params=pltpu.CompilerParams(
            dimension_semantics=("parallel",),
            vmem_limit_bytes=VMEM_LIMIT),
        cost_estimate=pl.CostEstimate(
            flops=int(2 * Mp * Kall * c2p),
            transcendentals=int(Mp * (dup + c2p)),
            bytes_accessed=int(Mp * dup * 2 + Mp * dc2 * 2
                               + Kall * c2p * 2 + Mp * c2p * 2)),
    )(avg, pcdw, ab, w2, sb2)


# --------------------------------------------------------------------------
# Parameters (deterministic synthetic init; BN folded to scale/bias)
# --------------------------------------------------------------------------
def init_params(key, c1, c2, k, n_div=4):
    dc = c1 // n_div
    du = c1 - dc
    cm = du + 2 * dc
    keys = iter(jax.random.split(key, 32))

    def conv_w(shape, fan_in):
        return (jax.random.normal(next(keys), shape, jnp.float32)
                / np.sqrt(fan_in)).astype(jnp.float32)

    def bn_fold(c):
        gamma = jax.random.uniform(next(keys), (c,), jnp.float32, 0.5, 1.5)
        beta = 0.1 * jax.random.normal(next(keys), (c,), jnp.float32)
        mean = 0.1 * jax.random.normal(next(keys), (c,), jnp.float32)
        var = jax.random.uniform(next(keys), (c,), jnp.float32, 0.5, 1.5)
        scale = gamma / jnp.sqrt(var + 1e-5)
        bias = beta - mean * scale
        return scale.reshape(1, c), bias.reshape(1, c)

    p = {}
    p["w1"] = conv_w((k, k, dc, dc), k * k * dc)      # partial_conv3 conv (HWIO)
    p["s1"], p["b1"] = bn_fold(dc)
    p["w_dw"] = conv_w((k, k, dc), k * k)             # depthwise conv (HW,C)
    p["s_dw"], p["b_dw"] = bn_fold(dc)
    # mid BN over cm channels, stored split by source block [avg | pc | dw]
    p["s_mid_a"], p["b_mid_a"] = bn_fold(du)
    p["s_mid_p"], p["b_mid_p"] = bn_fold(dc)
    p["s_mid_d"], p["b_mid_d"] = bn_fold(dc)
    # cv2 1x1 conv weight (cm, c2), stored split by input-channel group
    p["w2a"] = conv_w((du, c2), cm)
    p["w2p"] = conv_w((dc, c2), cm)
    p["w2d"] = conv_w((dc, c2), cm)
    p["s2"], p["b2"] = bn_fold(c2)
    return p


# --------------------------------------------------------------------------
# PGConv forward (Pallas pipeline)
# --------------------------------------------------------------------------
def pgconv_forward(x_nchw, params, *, k, s, n_div=4):
    N, c1, H, W = x_nchw.shape
    assert k % 2 == 1 and H % s == 0 and W % s == 0
    dc = c1 // n_div
    du = c1 - dc
    c2 = params["w2a"].shape[1]
    p = k // 2
    Ho, Wo = H // s, W // s
    M = N * Ho * Wo
    dcp, dup, c2p = _rup(dc, LANE), _rup(du, LANE), _rup(c2, LANE)
    ext = (k - 1) // s                    # max stride-phase row/col sub-offset
    Wq8 = _rup(Wo + ext, 8)               # band width, padded so reshape is layout-free

    x = jnp.transpose(x_nchw, (0, 2, 3, 1))            # NCHW -> NHWC
    x1 = x[..., :dc].astype(jnp.bfloat16)               # torch.split along channels
    x2 = x[..., dc:]

    # ---- x1 path: phase-split + row-tile layout (halo rows duplicated) -----
    tq = _pick_tq(Ho, Wo, dcp, k, s)      # output rows per grid step
    nq = Ho // tq
    Rin = tq + 2 * p + ext                # phase rows per tile (incl. dw halo + conv reach)
    top = p * (s + 1)                     # covers conv pad + dw-halo recompute rows
    Hq = Ho + 2 * p + ext
    bot = Hq * s - top - H
    right = max(0, Wq8 * s - W - p)
    x1p = jnp.pad(x1, ((0, 0), (top, bot), (p, right), (0, dcp - dc)))
    slab = x1p[:, :Hq * s, :Wq8 * s, :]
    # slab[n, r, c, q, v] = x1p[n, q*s + r, v*s + c]
    slab = slab.reshape(N, Hq, s, Wq8, s, dcp).transpose(0, 2, 4, 1, 3, 5)
    xt = jnp.stack([slab[:, :, :, t * tq: t * tq + Rin] for t in range(nq)], axis=1)
    xt = xt.reshape(N * nq, s * s * Rin, Wq8, dcp)
    # TODO(synk): the phase-split/tile gather still materializes one extra HBM copy of
    # the x1 stream; an in-kernel strided DMA (memory_space=pl.ANY) could remove it.

    padc = lambda v, n: jnp.pad(v, ((0, 0), (0, n - v.shape[1])))
    w1 = jnp.pad(params["w1"].reshape(k * k, dc, dc),
                 ((0, 0), (0, dcp - dc), (0, dcp - dc))).astype(jnp.bfloat16)
    wdw = jnp.pad(params["w_dw"].reshape(k * k, dc), ((0, 0), (0, dcp - dc)))
    sb = jnp.concatenate([
        padc(params["s1"], dcp), padc(params["b1"], dcp),
        padc(params["s_dw"], dcp), padc(params["b_dw"], dcp),
        padc(params["s_mid_p"], dcp), padc(params["b_mid_p"], dcp),
        padc(params["s_mid_d"], dcp), padc(params["b_mid_d"], dcp)], axis=0)  # (8, dcp)

    pcdw = pconv_dw(xt, w1, wdw, sb, k=k, s=s, tq=tq, nq=nq, N=N, Ho=Ho, Wo=Wo,
                    Wq8=Wq8, Rin=Rin, dcp=dcp)          # (N, Ho, Wo, 2*dcp) bf16

    # ---- x2 path: s x s average pool as a plain XLA reduce ------------------
    avg = x2.reshape(N, Ho, s, Wo, s, du).mean(axis=(2, 4)).reshape(M, du)

    # ---- tail: big lane-dense M tiles, bf16 streams --------------------------
    tm = min(1024, _rup(M, 8))
    Mp = _rup(M, tm)
    avg_flat = jnp.pad(avg.astype(jnp.bfloat16), ((0, Mp - M), (0, dup - du)))
    pcdw_flat = jnp.pad(pcdw.reshape(M, 2 * dcp), ((0, Mp - M), (0, 0)))

    ab = jnp.concatenate([padc(params["s_mid_a"], dup),
                          padc(params["b_mid_a"], dup)], axis=0)       # (2, dup)
    sb2 = jnp.concatenate([padc(params["s2"], c2p),
                           padc(params["b2"], c2p)], axis=0)            # (2, c2p)
    # cv2 1x1 weight pre-concatenated (rows ordered [avg | pc | dw]) and lane-padded.
    w2 = jnp.concatenate([
        jnp.pad(params["w2a"], ((0, dup - du), (0, c2p - c2))),
        jnp.pad(params["w2p"], ((0, dcp - dc), (0, c2p - c2))),
        jnp.pad(params["w2d"], ((0, dcp - dc), (0, c2p - c2)))], axis=0
    ).astype(jnp.bfloat16)

    out_flat = tail_fused(avg_flat, pcdw_flat, ab, w2, sb2, tm=tm)      # bf16

    out = out_flat[:M, :c2].astype(jnp.float32).reshape(N, Ho, Wo, c2)
    return jnp.transpose(out, (0, 3, 1, 2))            # NHWC -> NCHW


# --------------------------------------------------------------------------
# Pure-JAX reference (f32, for validation only)
# --------------------------------------------------------------------------
def pgconv_ref(x_nchw, params, *, k, s, n_div=4):
    N, c1, H, W = x_nchw.shape
    dc = c1 // n_div
    du = c1 - dc
    p = k // 2
    Ho, Wo = H // s, W // s
    x = jnp.transpose(x_nchw, (0, 2, 3, 1))
    x1, x2 = x[..., :dc], x[..., dc:]
    bn = lambda v, sc, bi: v * sc.reshape(-1) + bi.reshape(-1)

    pc = lax.conv_general_dilated(x1, params["w1"], (s, s), [(p, p), (p, p)],
                                  dimension_numbers=("NHWC", "HWIO", "NHWC"))
    pc = _silu(bn(pc, params["s1"], params["b1"]))
    wdw = params["w_dw"][:, :, None, :]
    dw = lax.conv_general_dilated(pc, wdw, (1, 1), [(p, p), (p, p)],
                                  dimension_numbers=("NHWC", "HWIO", "NHWC"),
                                  feature_group_count=dc)
    dw = _silu(bn(dw, params["s_dw"], params["b_dw"]))
    avg = x2.reshape(N, Ho, s, Wo, s, du).mean(axis=(2, 4))
    z = jnp.concatenate([avg, pc, dw], axis=-1)
    s_mid = jnp.concatenate([params["s_mid_a"], params["s_mid_p"], params["s_mid_d"]], axis=-1)
    b_mid = jnp.concatenate([params["b_mid_a"], params["b_mid_p"], params["b_mid_d"]], axis=-1)
    y = _silu(bn(z, s_mid, b_mid))
    w2 = jnp.concatenate([params["w2a"], params["w2p"], params["w2d"]], axis=0)
    out = _silu(bn(jnp.einsum("nhwc,co->nhwo", y, w2), params["s2"], params["b2"]))
    return jnp.transpose(out, (0, 3, 1, 2))


if __name__ == "__main__":
    key = jax.random.PRNGKey(0)
    kp, kx = jax.random.split(key)
    N, c1, c2, H, W, k, s = 2, 16, 32, 16, 16, 3, 2
    params = init_params(kp, c1, c2, k)
    x = jax.random.normal(kx, (N, c1, H, W), jnp.float32)

    fwd = jax.jit(functools.partial(pgconv_forward, k=k, s=s))
    out = jax.block_until_ready(fwd(x, params))
    ref = jax.block_until_ready(pgconv_ref(x, params, k=k, s=s))
    assert out.shape == (N, c2, H // s, W // s), out.shape
    # bf16 matmul inputs / bf16 intermediate streams with f32 accumulation vs a
    # pure-f32 reference.
    np.testing.assert_allclose(np.asarray(out), np.asarray(ref), rtol=8e-2, atol=8e-2)
    print("KERNEL_OK")
</pallas_src>

<mosaic_0001>
module attributes {stable_mosaic.version = 11 : i64} {
  func.func @_tail_kernel(%arg0: i32, %arg1: memref<128x128xbf16, #tpu.memory_space<vmem>>, %arg2: memref<128x256xbf16, #tpu.memory_space<vmem>>, %arg3: memref<2x128xf32, #tpu.memory_space<vmem>>, %arg4: memref<384x128xbf16, #tpu.memory_space<vmem>>, %arg5: memref<2x128xf32, #tpu.memory_space<vmem>>, %arg6: memref<128x128xbf16, #tpu.memory_space<vmem>>) attributes {dimension_semantics = [#tpu.dimension_semantics<parallel>], iteration_bounds = array<i64: 1>, scalar_prefetch = 0 : i64, scratch_operands = 0 : i64, tpu.core_type = #tpu.core_type<tc>, window_params = [{transform_indices = @transform_0, window_bounds = array<i64: 128, 128>}, {transform_indices = @transform_1, window_bounds = array<i64: 128, 256>}, {pipeline_mode = #tpu.pipeline_mode<synchronous>, transform_indices = @transform_2, window_bounds = array<i64: 2, 128>}, {pipeline_mode = #tpu.pipeline_mode<synchronous>, transform_indices = @transform_3, window_bounds = array<i64: 384, 128>}, {pipeline_mode = #tpu.pipeline_mode<synchronous>, transform_indices = @transform_4, window_bounds = array<i64: 2, 128>}, {transform_indices = @transform_5, window_bounds = array<i64: 128, 128>}]} {
    %c0 = arith.constant 0 : index
    %c0_0 = arith.constant 0 : index
    %0 = vector.load %arg1[%c0, %c0_0] : memref<128x128xbf16, #tpu.memory_space<vmem>>, vector<128x128xbf16>
    %1 = arith.extf %0 : vector<128x128xbf16> to vector<128x128xf32>
    %c0_1 = arith.constant 0 : index
    %c0_2 = arith.constant 0 : index
    %2 = vector.load %arg3[%c0_1, %c0_2] : memref<2x128xf32, #tpu.memory_space<vmem>>, vector<1x128xf32>
    %3 = vector.shape_cast %2 : vector<1x128xf32> to vector<128xf32>
    %4 = vector.shape_cast %3 : vector<128xf32> to vector<1x128xf32>
    %5 = vector.broadcast %4 : vector<1x128xf32> to vector<128x128xf32>
    %6 = arith.mulf %1, %5 : vector<128x128xf32>
    %c1 = arith.constant 1 : index
    %c0_3 = arith.constant 0 : index
    %7 = vector.load %arg3[%c1, %c0_3] : memref<2x128xf32, #tpu.memory_space<vmem>>, vector<1x128xf32>
    %8 = vector.shape_cast %7 : vector<1x128xf32> to vector<128xf32>
    %9 = vector.shape_cast %8 : vector<128xf32> to vector<1x128xf32>
    %10 = vector.broadcast %9 : vector<1x128xf32> to vector<128x128xf32>
    %11 = arith.addf %6, %10 : vector<128x128xf32>
    %12 = arith.negf %11 : vector<128x128xf32>
    %13 = math.exp %12 : vector<128x128xf32>
    %cst = arith.constant 1.000000e+00 : f32
    %14 = vector.broadcast %cst : f32 to vector<128x128xf32>
    %15 = arith.addf %14, %13 : vector<128x128xf32>
    %16 = arith.divf %14, %15 : vector<128x128xf32>
    %17 = arith.mulf %11, %16 : vector<128x128xf32>
    %18 = arith.truncf %17 : vector<128x128xf32> to vector<128x128xbf16>
    %c0_4 = arith.constant 0 : index
    %c0_5 = arith.constant 0 : index
    %19 = vector.load %arg4[%c0_4, %c0_5] : memref<384x128xbf16, #tpu.memory_space<vmem>>, vector<128x128xbf16>
    %cst_6 = arith.constant dense<0.000000e+00> : vector<128x128xf32>
    %20 = tpu.matmul %18, %19, %cst_6 {dimension_numbers = #tpu.dot_dimension_numbers<[1], [0], [0], [1], [0, 0, 1, 1], [], []>} : vector<128x128xbf16>, vector<128x128xbf16>, vector<128x128xf32> -> vector<128x128xf32>
    %c0_7 = arith.constant 0 : index
    %c0_8 = arith.constant 0 : index
    %21 = vector.load %arg2[%c0_7, %c0_8] : memref<128x256xbf16, #tpu.memory_space<vmem>>, vector<128x256xbf16>
    %c128 = arith.constant 128 : index
    %c0_9 = arith.constant 0 : index
    %22 = vector.load %arg4[%c128, %c0_9] : memref<384x128xbf16, #tpu.memory_space<vmem>>, vector<256x128xbf16>
    %cst_10 = arith.constant dense<0.000000e+00> : vector<128x128xf32>
    %23 = tpu.matmul %21, %22, %cst_10 {dimension_numbers = #tpu.dot_dimension_numbers<[1], [0], [0], [1], [0, 0, 1, 1], [], []>} : vector<128x256xbf16>, vector<256x128xbf16>, vector<128x128xf32> -> vector<128x128xf32>
    %24 = arith.addf %20, %23 : vector<128x128xf32>
    %c0_11 = arith.constant 0 : index
    %c0_12 = arith.constant 0 : index
    %25 = vector.load %arg5[%c0_11, %c0_12] : memref<2x128xf32, #tpu.memory_space<vmem>>, vector<1x128xf32>
    %26 = vector.shape_cast %25 : vector<1x128xf32> to vector<128xf32>
    %27 = vector.shape_cast %26 : vector<128xf32> to vector<1x128xf32>
    %28 = vector.broadcast %27 : vector<1x128xf32> to vector<128x128xf32>
    %29 = arith.mulf %24, %28 : vector<128x128xf32>
    %c1_13 = arith.constant 1 : index
    %c0_14 = arith.constant 0 : index
    %30 = vector.load %arg5[%c1_13, %c0_14] : memref<2x128xf32, #tpu.memory_space<vmem>>, vector<1x128xf32>
    %31 = vector.shape_cast %30 : vector<1x128xf32> to vector<128xf32>
    %32 = vector.shape_cast %31 : vector<128xf32> to vector<1x128xf32>
    %33 = vector.broadcast %32 : vector<1x128xf32> to vector<128x128xf32>
    %34 = arith.addf %29, %33 : vector<128x128xf32>
    %35 = arith.negf %34 : vector<128x128xf32>
    %36 = math.exp %35 : vector<128x128xf32>
    %cst_15 = arith.constant 1.000000e+00 : f32
    %37 = vector.broadcast %cst_15 : f32 to vector<128x128xf32>
    %38 = arith.addf %37, %36 : vector<128x128xf32>
    %39 = arith.divf %37, %38 : vector<128x128xf32>
    %40 = arith.mulf %34, %39 : vector<128x128xf32>
    %41 = arith.truncf %40 : vector<128x128xf32> to vector<128x128xbf16>
    %c0_16 = arith.constant 0 : index
    %c0_17 = arith.constant 0 : index
    %42 = vector.load %arg6[%c0_16, %c0_17] : memref<128x128xbf16, #tpu.memory_space<vmem>>, vector<128x128xbf16>
    tpu.vector_store %arg6[%c0_16, %c0_17], %41 {strides = array<i32>} : memref<128x128xbf16, #tpu.memory_space<vmem>>, vector<128x128xbf16>,
    return
  }
  func.func @transform_0(%arg0: i32) -> (i32, i32) {
    %c0_i32 = arith.constant 0 : i32
    %c0_i32_0 = arith.constant 0 : i32
    return %arg0, %c0_i32 : i32, i32
  }
  func.func @transform_1(%arg0: i32) -> (i32, i32) {
    %c0_i32 = arith.constant 0 : i32
    %c0_i32_0 = arith.constant 0 : i32
    return %arg0, %c0_i32 : i32, i32
  }
  func.func @transform_2(%arg0: i32) -> (i32, i32) {
    %c0_i32 = arith.constant 0 : i32
    %c0_i32_0 = arith.constant 0 : i32
    %c0_i32_1 = arith.constant 0 : i32
    return %c0_i32, %c0_i32_0 : i32, i32
  }
  func.func @transform_3(%arg0: i32) -> (i32, i32) {
    %c0_i32 = arith.constant 0 : i32
    %c0_i32_0 = arith.constant 0 : i32
    %c0_i32_1 = arith.constant 0 : i32
    return %c0_i32, %c0_i32_0 : i32, i32
  }
  func.func @transform_4(%arg0: i32) -> (i32, i32) {
    %c0_i32 = arith.constant 0 : i32
    %c0_i32_0 = arith.constant 0 : i32
    %c0_i32_1 = arith.constant 0 : i32
    return %c0_i32, %c0_i32_0 : i32, i32
  }
  func.func @transform_5(%arg0: i32) -> (i32, i32) {
    %c0_i32 = arith.constant 0 : i32
    %c0_i32_0 = arith.constant 0 : i32
    return %arg0, %c0_i32 : i32, i32
  }
}

module attributes {stable_mosaic.version = 11 : i64} {
  func.func @_pconv_dw_kernel(%arg0: i32, %arg1: i32, %arg2: memref<1x44x16x128xbf16, #tpu.memory_space<vmem>>, %arg3: memref<9x128x128xbf16, #tpu.memory_space<vmem>>, %arg4: memref<9x128xf32, #tpu.memory_space<vmem>>, %arg5: memref<8x128xf32, #tpu.memory_space<vmem>>, %arg6: memref<1x8x8x256xbf16, #tpu.memory_space<vmem>>, %arg7: memref<10x10x128xbf16, #tpu.memory_space<vmem>>) attributes {dimension_semantics = [#tpu.dimension_semantics<parallel>, #tpu.dimension_semantics<parallel>], iteration_bounds = array<i64: 2, 1>, scalar_prefetch = 0 : i64, scratch_operands = 1 : i64, tpu.core_type = #tpu.core_type<tc>, window_params = [{transform_indices = @transform_0, window_bounds = array<i64: 1, 44, 16, 128>}, {pipeline_mode = #tpu.pipeline_mode<synchronous>, transform_indices = @transform_1, window_bounds = array<i64: 9, 128, 128>}, {pipeline_mode = #tpu.pipeline_mode<synchronous>, transform_indices = @transform_2, window_bounds = array<i64: 9, 128>}, {pipeline_mode = #tpu.pipeline_mode<synchronous>, transform_indices = @transform_3, window_bounds = array<i64: 8, 128>}, {transform_indices = @transform_4, window_bounds = array<i64: 1, 8, 8, 256>}]} {
    %cst = arith.constant 0.000000e+00 : f32
    %0 = vector.broadcast %cst : f32 to vector<160x128xf32>
    %cst_0 = arith.constant 0.000000e+00 : f32
    %1 = vector.broadcast %cst_0 : f32 to vector<160x128xf32>
    %c0 = arith.constant 0 : index
    %c0_1 = arith.constant 0 : index
    %c0_2 = arith.constant 0 : index
    %c0_3 = arith.constant 0 : index
    %2 = vector.load %arg2[%c0, %c0_1, %c0_2, %c0_3] : memref<1x44x16x128xbf16, #tpu.memory_space<vmem>>, vector<1x10x16x128xbf16>
    %3 = vector.shape_cast %2 : vector<1x10x16x128xbf16> to vector<10x16x128xbf16>
    %4 = vector.shape_cast %3 : vector<10x16x128xbf16> to vector<160x128xbf16>
    %c0_4 = arith.constant 0 : index
    %c0_5 = arith.constant 0 : index
    %c0_6 = arith.constant 0 : index
    %5 = vector.load %arg3[%c0_4, %c0_5, %c0_6] : memref<9x128x128xbf16, #tpu.memory_space<vmem>>, vector<1x128x128xbf16>
    %6 = vector.shape_cast %5 : vector<1x128x128xbf16> to vector<128x128xbf16>
    %cst_7 = arith.constant dense<0.000000e+00> : vector<160x128xf32>
    %7 = tpu.matmul %4, %6, %cst_7 {dimension_numbers = #tpu.dot_dimension_numbers<[1], [0], [0], [1], [0, 0, 1, 1], [], []>} : vector<160x128xbf16>, vector<128x128xbf16>, vector<160x128xf32> -> vector<160x128xf32>
    %8 = arith.addf %0, %7 : vector<160x128xf32>
    %c0_8 = arith.constant 0 : index
    %c11 = arith.constant 11 : index
    %c0_9 = arith.constant 0 : index
    %c0_10 = arith.constant 0 : index
    %9 = vector.load %arg2[%c0_8, %c11, %c0_9, %c0_10] : memref<1x44x16x128xbf16, #tpu.memory_space<vmem>>, vector<1x10x16x128xbf16>
    %10 = vector.shape_cast %9 : vector<1x10x16x128xbf16> to vector<10x16x128xbf16>
    %11 = vector.shape_cast %10 : vector<10x16x128xbf16> to vector<160x128xbf16>
    %c1 = arith.constant 1 : index
    %c0_11 = arith.constant 0 : index
    %c0_12 = arith.constant 0 : index
    %12 = vector.load %arg3[%c1, %c0_11, %c0_12] : memref<9x128x128xbf16, #tpu.memory_space<vmem>>, vector<1x128x128xbf16>
    %13 = vector.shape_cast %12 : vector<1x128x128xbf16> to vector<128x128xbf16>
    %cst_13 = arith.constant dense<0.000000e+00> : vector<160x128xf32>
    %14 = tpu.matmul %11, %13, %cst_13 {dimension_numbers = #tpu.dot_dimension_numbers<[1], [0], [0], [1], [0, 0, 1, 1], [], []>} : vector<160x128xbf16>, vector<128x128xbf16>, vector<160x128xf32> -> vector<160x128xf32>
    %15 = arith.addf %8, %14 : vector<160x128xf32>
    %c0_14 = arith.constant 0 : index
    %c0_15 = arith.constant 0 : index
    %c0_16 = arith.constant 0 : index
    %c0_17 = arith.constant 0 : index
    %16 = vector.load %arg2[%c0_14, %c0_15, %c0_16, %c0_17] : memref<1x44x16x128xbf16, #tpu.memory_space<vmem>>, vector<1x10x16x128xbf16>
    %17 = vector.shape_cast %16 : vector<1x10x16x128xbf16> to vector<10x16x128xbf16>
    %18 = vector.shape_cast %17 : vector<10x16x128xbf16> to vector<160x128xbf16>
    %c2 = arith.constant 2 : index
    %c0_18 = arith.constant 0 : index
    %c0_19 = arith.constant 0 : index
    %19 = vector.load %arg3[%c2, %c0_18, %c0_19] : memref<9x128x128xbf16, #tpu.memory_space<vmem>>, vector<1x128x128xbf16>
    %20 = vector.shape_cast %19 : vector<1x128x128xbf16> to vector<128x128xbf16>
    %cst_20 = arith.constant dense<0.000000e+00> : vector<160x128xf32>
    %21 = tpu.matmul %18, %20, %cst_20 {dimension_numbers = #tpu.dot_dimension_numbers<[1], [0], [0], [1], [0, 0, 1, 1], [], []>} : vector<160x128xbf16>, vector<128x128xbf16>, vector<160x128xf32> -> vector<160x128xf32>
    %22 = arith.addf %1, %21 : vector<160x128xf32>
    %c0_21 = arith.constant 0 : index
    %c22 = arith.constant 22 : index
    %c0_22 = arith.constant 0 : index
    %c0_23 = arith.constant 0 : index
    %23 = vector.load %arg2[%c0_21, %c22, %c0_22, %c0_23] : memref<1x44x16x128xbf16, #tpu.memory_space<vmem>>, vector<1x10x16x128xbf16>
    %24 = vector.shape_cast %23 : vector<1x10x16x128xbf16> to vector<10x16x128xbf16>
    %25 = vector.shape_cast %24 : vector<10x16x128xbf16> to vector<160x128xbf16>
    %c3 = arith.constant 3 : index
    %c0_24 = arith.constant 0 : index
    %c0_25 = arith.constant 0 : index
    %26 = vector.load %arg3[%c3, %c0_24, %c0_25] : memref<9x128x128xbf16, #tpu.memory_space<vmem>>, vector<1x128x128xbf16>
    %27 = vector.shape_cast %26 : vector<1x128x128xbf16> to vector<128x128xbf16>
    %cst_26 = arith.constant dense<0.000000e+00> : vector<160x128xf32>
    %28 = tpu.matmul %25, %27, %cst_26 {dimension_numbers = #tpu.dot_dimension_numbers<[1], [0], [0], [1], [0, 0, 1, 1], [], []>} : vector<160x128xbf16>, vector<128x128xbf16>, vector<160x128xf32> -> vector<160x128xf32>
    %29 = arith.addf %15, %28 : vector<160x128xf32>
    %c0_27 = arith.constant 0 : index
    %c33 = arith.constant 33 : index
    %c0_28 = arith.constant 0 : index
    %c0_29 = arith.constant 0 : index
    %30 = vector.load %arg2[%c0_27, %c33, %c0_28, %c0_29] : memref<1x44x16x128xbf16, #tpu.memory_space<vmem>>, vector<1x10x16x128xbf16>
    %31 = vector.shape_cast %30 : vector<1x10x16x128xbf16> to vector<10x16x128xbf16>
    %32 = vector.shape_cast %31 : vector<10x16x128xbf16> to vector<160x128xbf16>
    %c4 = arith.constant 4 : index
    %c0_30 = arith.constant 0 : index
    %c0_31 = arith.constant 0 : index
    %33 = vector.load %arg3[%c4, %c0_30, %c0_31] : memref<9x128x128xbf16, #tpu.memory_space<vmem>>, vector<1x128x128xbf16>
    %34 = vector.shape_cast %33 : vector<1x128x128xbf16> to vector<128x128xbf16>
    %cst_32 = arith.constant dense<0.000000e+00> : vector<160x128xf32>
    %35 = tpu.matmul %32, %34, %cst_32 {dimension_numbers = #tpu.dot_dimension_numbers<[1], [0], [0], [1], [0, 0, 1, 1], [], []>} : vector<160x128xbf16>, vector<128x128xbf16>, vector<160x128xf32> -> vector<160x128xf32>
    %36 = arith.addf %29, %35 : vector<160x128xf32>
    %c0_33 = arith.constant 0 : index
    %c22_34 = arith.constant 22 : index
    %c0_35 = arith.constant 0 : index
    %c0_36 = arith.constant 0 : index
    %37 = vector.load %arg2[%c0_33, %c22_34, %c0_35, %c0_36] : memref<1x44x16x128xbf16, #tpu.memory_space<vmem>>, vector<1x10x16x128xbf16>
    %38 = vector.shape_cast %37 : vector<1x10x16x128xbf16> to vector<10x16x128xbf16>
    %39 = vector.shape_cast %38 : vector<10x16x128xbf16> to vector<160x128xbf16>
    %c5 = arith.constant 5 : index
    %c0_37 = arith.constant 0 : index
    %c0_38 = arith.constant 0 : index
    %40 = vector.load %arg3[%c5, %c0_37, %c0_38] : memref<9x128x128xbf16, #tpu.memory_space<vmem>>, vector<1x128x128xbf16>
    %41 = vector.shape_cast %40 : vector<1x128x128xbf16> to vector<128x128xbf16>
    %cst_39 = arith.constant dense<0.000000e+00> : vector<160x128xf32>
    %42 = tpu.matmul %39, %41, %cst_39 {dimension_numbers = #tpu.dot_dimension_numbers<[1], [0], [0], [1], [0, 0, 1, 1], [], []>} : vector<160x128xbf16>, vector<128x128xbf16>, vector<160x128xf32> -> vector<160x128xf32>
    %43 = arith.addf %22, %42 : vector<160x128xf32>
    %c0_40 = arith.constant 0 : index
    %c1_41 = arith.constant 1 : index
    %c0_42 = arith.constant 0 : index
    %c0_43 = arith.constant 0 : index
    %44 = vector.load %arg2[%c0_40, %c1_41, %c0_42, %c0_43] : memref<1x44x16x128xbf16, #tpu.memory_space<vmem>>, vector<1x10x16x128xbf16>
    %45 = vector.shape_cast %44 : vector<1x10x16x128xbf16> to vector<10x16x128xbf16>
    %46 = vector.shape_cast %45 : vector<10x16x128xbf16> to vector<160x128xbf16>
    %c6 = arith.constant 6 : index
    %c0_44 = arith.constant 0 : index
    %c0_45 = arith.constant 0 : index
    %47 = vector.load %arg3[%c6, %c0_44, %c0_45] : memref<9x128x128xbf16, #tpu.memory_space<vmem>>, vector<1x128x128xbf16>
    %48 = vector.shape_cast %47 : vector<1x128x128xbf16> to vector<128x128xbf16>
    %cst_46 = arith.constant dense<0.000000e+00> : vector<160x128xf32>
    %49 = tpu.matmul %46, %48, %cst_46 {dimension_numbers = #tpu.dot_dimension_numbers<[1], [0], [0], [1], [0, 0, 1, 1], [], []>} : vector<160x128xbf16>, vector<128x128xbf16>, vector<160x128xf32> -> vector<160x128xf32>
    %50 = arith.addf %36, %49 : vector<160x128xf32>
    %c0_47 = arith.constant 0 : index
    %c12 = arith.constant 12 : index
    %c0_48 = arith.constant 0 : index
    %c0_49 = arith.constant 0 : index
    %51 = vector.load %arg2[%c0_47, %c12, %c0_48, %c0_49] : memref<1x44x16x128xbf16, #tpu.memory_space<vmem>>, vector<1x10x16x128xbf16>
    %52 = vector.shape_cast %51 : vector<1x10x16x128xbf16> to vector<10x16x128xbf16>
    %53 = vector.shape_cast %52 : vector<10x16x128xbf16> to vector<160x128xbf16>
    %c7 = arith.constant 7 : index
    %c0_50 = arith.constant 0 : index
    %c0_51 = arith.constant 0 : index
    %54 = vector.load %arg3[%c7, %c0_50, %c0_51] : memref<9x128x128xbf16, #tpu.memory_space<vmem>>, vector<1x128x128xbf16>
    %55 = vector.shape_cast %54 : vector<1x128x128xbf16> to vector<128x128xbf16>
    %cst_52 = arith.constant dense<0.000000e+00> : vector<160x128xf32>
    %56 = tpu.matmul %53, %55, %cst_52 {dimension_numbers = #tpu.dot_dimension_numbers<[1], [0], [0], [1], [0, 0, 1, 1], [], []>} : vector<160x128xbf16>, vector<128x128xbf16>, vector<160x128xf32> -> vector<160x128xf32>
    %57 = arith.addf %50, %56 : vector<160x128xf32>
    %c0_53 = arith.constant 0 : index
    %c1_54 = arith.constant 1 : index
    %c0_55 = arith.constant 0 : index
    %c0_56 = arith.constant 0 : index
    %58 = vector.load %arg2[%c0_53, %c1_54, %c0_55, %c0_56] : memref<1x44x16x128xbf16, #tpu.memory_space<vmem>>, vector<1x10x16x128xbf16>
    %59 = vector.shape_cast %58 : vector<1x10x16x128xbf16> to vector<10x16x128xbf16>
    %60 = vector.shape_cast %59 : vector<10x16x128xbf16> to vector<160x128xbf16>
    %c8 = arith.constant 8 : index
    %c0_57 = arith.constant 0 : index
    %c0_58 = arith.constant 0 : index
    %61 = vector.load %arg3[%c8, %c0_57, %c0_58] : memref<9x128x128xbf16, #tpu.memory_space<vmem>>, vector<1x128x128xbf16>
    %62 = vector.shape_cast %61 : vector<1x128x128xbf16> to vector<128x128xbf16>
    %cst_59 = arith.constant dense<0.000000e+00> : vector<160x128xf32>
    %63 = tpu.matmul %60, %62, %cst_59 {dimension_numbers = #tpu.dot_dimension_numbers<[1], [0], [0], [1], [0, 0, 1, 1], [], []>} : vector<160x128xbf16>, vector<128x128xbf16>, vector<160x128xf32> -> vector<160x128xf32>
    %64 = arith.addf %43, %63 : vector<160x128xf32>
    %65 = vector.shape_cast %57 : vector<160x128xf32> to vector<10x16x128xf32>
    %66 = vector.extract_strided_slice %65 {offsets = [0, 0, 0], sizes = [10, 8, 128], strides = [1, 1, 1]} : vector<10x16x128xf32> to vector<10x8x128xf32>
    %67 = vector.shape_cast %64 : vector<160x128xf32> to vector<10x16x128xf32>
    %68 = vector.extract_strided_slice %67 {offsets = [0, 1, 0], sizes = [10, 8, 128], strides = [1, 1, 1]} : vector<10x16x128xf32> to vector<10x8x128xf32>
    %69 = arith.addf %66, %68 : vector<10x8x128xf32>
    %c0_60 = arith.constant 0 : index
    %c0_61 = arith.constant 0 : index
    %70 = vector.load %arg5[%c0_60, %c0_61] : memref<8x128xf32, #tpu.memory_space<vmem>>, vector<1x128xf32>
    %71 = vector.shape_cast %70 : vector<1x128xf32> to vector<128xf32>
    %c1_62 = arith.constant 1 : index
    %c0_63 = arith.constant 0 : index
    %72 = vector.load %arg5[%c1_62, %c0_63] : memref<8x128xf32, #tpu.memory_space<vmem>>, vector<1x128xf32>
    %73 = vector.shape_cast %72 : vector<1x128xf32> to vector<128xf32>
    %c2_64 = arith.constant 2 : index
    %c0_65 = arith.constant 0 : index
    %74 = vector.load %arg5[%c2_64, %c0_65] : memref<8x128xf32, #tpu.memory_space<vmem>>, vector<1x128xf32>
    %75 = vector.shape_cast %74 : vector<1x128xf32> to vector<128xf32>
    %c3_66 = arith.constant 3 : index
    %c0_67 = arith.constant 0 : index
    %76 = vector.load %arg5[%c3_66, %c0_67] : memref<8x128xf32, #tpu.memory_space<vmem>>, vector<1x128xf32>
    %77 = vector.shape_cast %76 : vector<1x128xf32> to vector<128xf32>
    %c4_68 = arith.constant 4 : index
    %c0_69 = arith.constant 0 : index
    %78 = vector.load %arg5[%c4_68, %c0_69] : memref<8x128xf32, #tpu.memory_space<vmem>>, vector<1x128xf32>
    %79 = vector.shape_cast %78 : vector<1x128xf32> to vector<128xf32>
    %c5_70 = arith.constant 5 : index
    %c0_71 = arith.constant 0 : index
    %80 = vector.load %arg5[%c5_70, %c0_71] : memref<8x128xf32, #tpu.memory_space<vmem>>, vector<1x128xf32>
    %81 = vector.shape_cast %80 : vector<1x128xf32> to vector<128xf32>
    %c6_72 = arith.constant 6 : index
    %c0_73 = arith.constant 0 : index
    %82 = vector.load %arg5[%c6_72, %c0_73] : memref<8x128xf32, #tpu.memory_space<vmem>>, vector<1x128xf32>
    %83 = vector.shape_cast %82 : vector<1x128xf32> to vector<128xf32>
    %c7_74 = arith.constant 7 : index
    %c0_75 = arith.constant 0 : index
    %84 = vector.load %arg5[%c7_74, %c0_75] : memref<8x128xf32, #tpu.memory_space<vmem>>, vector<1x128xf32>
    %85 = vector.shape_cast %84 : vector<1x128xf32> to vector<128xf32>
    %86 = vector.shape_cast %71 : vector<128xf32> to vector<1x1x128xf32>
    %87 = vector.broadcast %86 : vector<1x1x128xf32> to vector<10x8x128xf32>
    %88 = arith.mulf %69, %87 : vector<10x8x128xf32>
    %89 = vector.shape_cast %73 : vector<128xf32> to vector<1x1x128xf32>
    %90 = vector.broadcast %89 : vector<1x1x128xf32> to vector<10x8x128xf32>
    %91 = arith.addf %88, %90 : vector<10x8x128xf32>
    %92 = arith.negf %91 : vector<10x8x128xf32>
    %93 = math.exp %92 : vector<10x8x128xf32>
    %cst_76 = arith.constant 1.000000e+00 : f32
    %94 = vector.broadcast %cst_76 : f32 to vector<10x8x128xf32>
    %95 = arith.addf %94, %93 : vector<10x8x128xf32>
    %96 = arith.divf %94, %95 : vector<10x8x128xf32>
    %97 = arith.mulf %91, %96 : vector<10x8x128xf32>
    %98 = arith.truncf %97 : vector<10x8x128xf32> to vector<10x8x128xbf16>
    %c0_77 = arith.constant 0 : index
    %c1_78 = arith.constant 1 : index
    %c0_79 = arith.constant 0 : index
    %99 = vector.load %arg7[%c0_77, %c1_78, %c0_79] : memref<10x10x128xbf16, #tpu.memory_space<vmem>>, vector<10x8x128xbf16>
    tpu.vector_store %arg7[%c0_77, %c1_78, %c0_79], %98 {strides = array<i32>} : memref<10x10x128xbf16, #tpu.memory_space<vmem>>, vector<10x8x128xbf16>,
    %cst_80 = arith.constant 0.000000e+00 : bf16
    %100 = vector.broadcast %cst_80 : bf16 to vector<10x1x128xbf16>
    %c0_81 = arith.constant 0 : index
    %c0_82 = arith.constant 0 : index
    %c0_83 = arith.constant 0 : index
    %101 = vector.load %arg7[%c0_81, %c0_82, %c0_83] : memref<10x10x128xbf16, #tpu.memory_space<vmem>>, vector<10x1x128xbf16>
    tpu.vector_store %arg7[%c0_81, %c0_82, %c0_83], %100 {strides = array<i32>} : memref<10x10x128xbf16, #tpu.memory_space<vmem>>, vector<10x1x128xbf16>,
    %cst_84 = arith.constant 0.000000e+00 : bf16
    %102 = vector.broadcast %cst_84 : bf16 to vector<10x1x128xbf16>
    %c0_85 = arith.constant 0 : index
    %c9 = arith.constant 9 : index
    %c0_86 = arith.constant 0 : index
    %103 = vector.load %arg7[%c0_85, %c9, %c0_86] : memref<10x10x128xbf16, #tpu.memory_space<vmem>>, vector<10x1x128xbf16>
    tpu.vector_store %arg7[%c0_85, %c9, %c0_86], %102 {strides = array<i32>} : memref<10x10x128xbf16, #tpu.memory_space<vmem>>, vector<10x1x128xbf16>,
    %c0_i32 = arith.constant 0 : i32
    %104 = arith.cmpi eq, %arg1, %c0_i32 : i32
    %105 = arith.extui %104 : i1 to i32
    %c0_i32_87 = arith.constant 0 : i32
    %106 = arith.cmpi ne, %105, %c0_i32_87 : i32
    scf.if %106 {
      %cst_130 = arith.constant 0.000000e+00 : bf16
      %229 = vector.broadcast %cst_130 : bf16 to vector<1x10x128xbf16>
      %c0_131 = arith.constant 0 : index
      %c0_132 = arith.constant 0 : index
      %c0_133 = arith.constant 0 : index
      %230 = vector.load %arg7[%c0_131, %c0_132, %c0_133] : memref<10x10x128xbf16, #tpu.memory_space<vmem>>, vector<1x10x128xbf16>
      tpu.vector_store %arg7[%c0_131, %c0_132, %c0_133], %229 {strides = array<i32>} : memref<10x10x128xbf16, #tpu.memory_space<vmem>>, vector<1x10x128xbf16>,
    } else {
    }
    %c0_i32_88 = arith.constant 0 : i32
    %107 = arith.cmpi eq, %arg1, %c0_i32_88 : i32
    %108 = arith.extui %107 : i1 to i32
    %c0_i32_89 = arith.constant 0 : i32
    %109 = arith.cmpi ne, %108, %c0_i32_89 : i32
    scf.if %109 {
      %cst_130 = arith.constant 0.000000e+00 : bf16
      %229 = vector.broadcast %cst_130 : bf16 to vector<1x10x128xbf16>
      %c9_131 = arith.constant 9 : index
      %c0_132 = arith.constant 0 : index
      %c0_133 = arith.constant 0 : index
      %230 = vector.load %arg7[%c9_131, %c0_132, %c0_133] : memref<10x10x128xbf16, #tpu.memory_space<vmem>>, vector<1x10x128xbf16>
      tpu.vector_store %arg7[%c9_131, %c0_132, %c0_133], %229 {strides = array<i32>} : memref<10x10x128xbf16, #tpu.memory_space<vmem>>, vector<1x10x128xbf16>,
    } else {
    }
    %c0_90 = arith.constant 0 : index
    %c0_91 = arith.constant 0 : index
    %110 = vector.load %arg4[%c0_90, %c0_91] : memref<9x128xf32, #tpu.memory_space<vmem>>, vector<9x128xf32>
    %cst_92 = arith.constant 0.000000e+00 : f32
    %111 = vector.broadcast %cst_92 : f32 to vector<8x8x128xf32>
    %c0_93 = arith.constant 0 : index
    %c0_94 = arith.constant 0 : index
    %c0_95 = arith.constant 0 : index
    %112 = vector.load %arg7[%c0_93, %c0_94, %c0_95] : memref<10x10x128xbf16, #tpu.memory_space<vmem>>, vector<8x8x128xbf16>
    %113 = arith.extf %112 : vector<8x8x128xbf16> to vector<8x8x128xf32>
    %114 = vector.extract_strided_slice %110 {offsets = [0, 0], sizes = [1, 128], strides = [1, 1]} : vector<9x128xf32> to vector<1x128xf32>
    %115 = vector.shape_cast %114 : vector<1x128xf32> to vector<128xf32>
    %116 = vector.shape_cast %115 : vector<128xf32> to vector<1x1x128xf32>
    %117 = vector.broadcast %116 : vector<1x1x128xf32> to vector<8x8x128xf32>
    %118 = arith.mulf %113, %117 : vector<8x8x128xf32>
    %119 = arith.addf %111, %118 : vector<8x8x128xf32>
    %c0_96 = arith.constant 0 : index
    %c1_97 = arith.constant 1 : index
    %c0_98 = arith.constant 0 : index
    %120 = vector.load %arg7[%c0_96, %c1_97, %c0_98] : memref<10x10x128xbf16, #tpu.memory_space<vmem>>, vector<8x8x128xbf16>
    %121 = arith.extf %120 : vector<8x8x128xbf16> to vector<8x8x128xf32>
    %122 = vector.extract_strided_slice %110 {offsets = [1, 0], sizes = [1, 128], strides = [1, 1]} : vector<9x128xf32> to vector<1x128xf32>
    %123 = vector.shape_cast %122 : vector<1x128xf32> to vector<128xf32>
    %124 = vector.shape_cast %123 : vector<128xf32> to vector<1x1x128xf32>
    %125 = vector.broadcast %124 : vector<1x1x128xf32> to vector<8x8x128xf32>
    %126 = arith.mulf %121, %125 : vector<8x8x128xf32>
    %127 = arith.addf %119, %126 : vector<8x8x128xf32>
    %c0_99 = arith.constant 0 : index
    %c2_100 = arith.constant 2 : index
    %c0_101 = arith.constant 0 : index
    %128 = vector.load %arg7[%c0_99, %c2_100, %c0_101] : memref<10x10x128xbf16, #tpu.memory_space<vmem>>, vector<8x8x128xbf16>
    %129 = arith.extf %128 : vector<8x8x128xbf16> to vector<8x8x128xf32>
    %130 = vector.extract_strided_slice %110 {offsets = [2, 0], sizes = [1, 128], strides = [1, 1]} : vector<9x128xf32> to vector<1x128xf32>
    %131 = vector.shape_cast %130 : vector<1x128xf32> to vector<128xf32>
    %132 = vector.shape_cast %131 : vector<128xf32> to vector<1x1x128xf32>
    %133 = vector.broadcast %132 : vector<1x1x128xf32> to vector<8x8x128xf32>
    %134 = arith.mulf %129, %133 : vector<8x8x128xf32>
    %135 = arith.addf %127, %134 : vector<8x8x128xf32>
    %c1_102 = arith.constant 1 : index
    %c0_103 = arith.constant 0 : index
    %c0_104 = arith.constant 0 : index
    %136 = vector.load %arg7[%c1_102, %c0_103, %c0_104] : memref<10x10x128xbf16, #tpu.memory_space<vmem>>, vector<8x8x128xbf16>
    %137 = arith.extf %136 : vector<8x8x128xbf16> to vector<8x8x128xf32>
    %138 = vector.extract_strided_slice %110 {offsets = [3, 0], sizes = [1, 128], strides = [1, 1]} : vector<9x128xf32> to vector<1x128xf32>
    %139 = vector.shape_cast %138 : vector<1x128xf32> to vector<128xf32>
    %140 = vector.shape_cast %139 : vector<128xf32> to vector<1x1x128xf32>
    %141 = vector.broadcast %140 : vector<1x1x128xf32> to vector<8x8x128xf32>
    %142 = arith.mulf %137, %141 : vector<8x8x128xf32>
    %143 = arith.addf %135, %142 : vector<8x8x128xf32>
    %c1_105 = arith.constant 1 : index
    %c1_106 = arith.constant 1 : index
    %c0_107 = arith.constant 0 : index
    %144 = vector.load %arg7[%c1_105, %c1_106, %c0_107] : memref<10x10x128xbf16, #tpu.memory_space<vmem>>, vector<8x8x128xbf16>
    %145 = arith.extf %144 : vector<8x8x128xbf16> to vector<8x8x128xf32>
    %146 = vector.extract_strided_slice %110 {offsets = [4, 0], sizes = [1, 128], strides = [1, 1]} : vector<9x128xf32> to vector<1x128xf32>
    %147 = vector.shape_cast %146 : vector<1x128xf32> to vector<128xf32>
    %148 = vector.shape_cast %147 : vector<128xf32> to vector<1x1x128xf32>
    %149 = vector.broadcast %148 : vector<1x1x128xf32> to vector<8x8x128xf32>
    %150 = arith.mulf %145, %149 : vector<8x8x128xf32>
    %151 = arith.addf %143, %150 : vector<8x8x128xf32>
    %c1_108 = arith.constant 1 : index
    %c2_109 = arith.constant 2 : index
    %c0_110 = arith.constant 0 : index
    %152 = vector.load %arg7[%c1_108, %c2_109, %c0_110] : memref<10x10x128xbf16, #tpu.memory_space<vmem>>, vector<8x8x128xbf16>
    %153 = arith.extf %152 : vector<8x8x128xbf16> to vector<8x8x128xf32>
    %154 = vector.extract_strided_slice %110 {offsets = [5, 0], sizes = [1, 128], strides = [1, 1]} : vector<9x128xf32> to vector<1x128xf32>
    %155 = vector.shape_cast %154 : vector<1x128xf32> to vector<128xf32>
    %156 = vector.shape_cast %155 : vector<128xf32> to vector<1x1x128xf32>
    %157 = vector.broadcast %156 : vector<1x1x128xf32> to vector<8x8x128xf32>
    %158 = arith.mulf %153, %157 : vector<8x8x128xf32>
    %159 = arith.addf %151, %158 : vector<8x8x128xf32>
    %c2_111 = arith.constant 2 : index
    %c0_112 = arith.constant 0 : index
    %c0_113 = arith.constant 0 : index
    %160 = vector.load %arg7[%c2_111, %c0_112, %c0_113] : memref<10x10x128xbf16, #tpu.memory_space<vmem>>, vector<8x8x128xbf16>
    %161 = arith.extf %160 : vector<8x8x128xbf16> to vector<8x8x128xf32>
    %162 = vector.extract_strided_slice %110 {offsets = [6, 0], sizes = [1, 128], strides = [1, 1]} : vector<9x128xf32> to vector<1x128xf32>
    %163 = vector.shape_cast %162 : vector<1x128xf32> to vector<128xf32>
    %164 = vector.shape_cast %163 : vector<128xf32> to vector<1x1x128xf32>
    %165 = vector.broadcast %164 : vector<1x1x128xf32> to vector<8x8x128xf32>
    %166 = arith.mulf %161, %165 : vector<8x8x128xf32>
    %167 = arith.addf %159, %166 : vector<8x8x128xf32>
    %c2_114 = arith.constant 2 : index
    %c1_115 = arith.constant 1 : index
    %c0_116 = arith.constant 0 : index
    %168 = vector.load %arg7[%c2_114, %c1_115, %c0_116] : memref<10x10x128xbf16, #tpu.memory_space<vmem>>, vector<8x8x128xbf16>
    %169 = arith.extf %168 : vector<8x8x128xbf16> to vector<8x8x128xf32>
    %170 = vector.extract_strided_slice %110 {offsets = [7, 0], sizes = [1, 128], strides = [1, 1]} : vector<9x128xf32> to vector<1x128xf32>
    %171 = vector.shape_cast %170 : vector<1x128xf32> to vector<128xf32>
    %172 = vector.shape_cast %171 : vector<128xf32> to vector<1x1x128xf32>
    %173 = vector.broadcast %172 : vector<1x1x128xf32> to vector<8x8x128xf32>
    %174 = arith.mulf %169, %173 : vector<8x8x128xf32>
    %175 = arith.addf %167, %174 : vector<8x8x128xf32>
    %c2_117 = arith.constant 2 : index
    %c2_118 = arith.constant 2 : index
    %c0_119 = arith.constant 0 : index
    %176 = vector.load %arg7[%c2_117, %c2_118, %c0_119] : memref<10x10x128xbf16, #tpu.memory_space<vmem>>, vector<8x8x128xbf16>
    %177 = arith.extf %176 : vector<8x8x128xbf16> to vector<8x8x128xf32>
    %178 = vector.extract_strided_slice %110 {offsets = [8, 0], sizes = [1, 128], strides = [1, 1]} : vector<9x128xf32> to vector<1x128xf32>
    %179 = vector.shape_cast %178 : vector<1x128xf32> to vector<128xf32>
    %180 = vector.shape_cast %179 : vector<128xf32> to vector<1x1x128xf32>
    %181 = vector.broadcast %180 : vector<1x1x128xf32> to vector<8x8x128xf32>
    %182 = arith.mulf %177, %181 : vector<8x8x128xf32>
    %183 = arith.addf %175, %182 : vector<8x8x128xf32>
    %184 = vector.shape_cast %75 : vector<128xf32> to vector<1x1x128xf32>
    %185 = vector.broadcast %184 : vector<1x1x128xf32> to vector<8x8x128xf32>
    %186 = arith.mulf %183, %185 : vector<8x8x128xf32>
    %187 = vector.shape_cast %77 : vector<128xf32> to vector<1x1x128xf32>
    %188 = vector.broadcast %187 : vector<1x1x128xf32> to vector<8x8x128xf32>
    %189 = arith.addf %186, %188 : vector<8x8x128xf32>
    %190 = arith.negf %189 : vector<8x8x128xf32>
    %191 = math.exp %190 : vector<8x8x128xf32>
    %cst_120 = arith.constant 1.000000e+00 : f32
    %192 = vector.broadcast %cst_120 : f32 to vector<8x8x128xf32>
    %193 = arith.addf %192, %191 : vector<8x8x128xf32>
    %194 = arith.divf %192, %193 : vector<8x8x128xf32>
    %195 = arith.mulf %189, %194 : vector<8x8x128xf32>
    %196 = vector.shape_cast %83 : vector<128xf32> to vector<1x1x128xf32>
    %197 = vector.broadcast %196 : vector<1x1x128xf32> to vector<8x8x128xf32>
    %198 = arith.mulf %195, %197 : vector<8x8x128xf32>
    %199 = vector.shape_cast %85 : vector<128xf32> to vector<1x1x128xf32>
    %200 = vector.broadcast %199 : vector<1x1x128xf32> to vector<8x8x128xf32>
    %201 = arith.addf %198, %200 : vector<8x8x128xf32>
    %202 = arith.negf %201 : vector<8x8x128xf32>
    %203 = math.exp %202 : vector<8x8x128xf32>
    %cst_121 = arith.constant 1.000000e+00 : f32
    %204 = vector.broadcast %cst_121 : f32 to vector<8x8x128xf32>
    %205 = arith.addf %204, %203 : vector<8x8x128xf32>
    %206 = arith.divf %204, %205 : vector<8x8x128xf32>
    %207 = arith.mulf %201, %206 : vector<8x8x128xf32>
    %208 = vector.extract_strided_slice %97 {offsets = [1, 0, 0], sizes = [8, 8, 128], strides = [1, 1, 1]} : vector<10x8x128xf32> to vector<8x8x128xf32>
    %209 = vector.shape_cast %79 : vector<128xf32> to vector<1x1x128xf32>
    %210 = vector.broadcast %209 : vector<1x1x128xf32> to vector<8x8x128xf32>
    %211 = arith.mulf %208, %210 : vector<8x8x128xf32>
    %212 = vector.shape_cast %81 : vector<128xf32> to vector<1x1x128xf32>
    %213 = vector.broadcast %212 : vector<1x1x128xf32> to vector<8x8x128xf32>
    %214 = arith.addf %211, %213 : vector<8x8x128xf32>
    %215 = arith.negf %214 : vector<8x8x128xf32>
    %216 = math.exp %215 : vector<8x8x128xf32>
    %cst_122 = arith.constant 1.000000e+00 : f32
    %217 = vector.broadcast %cst_122 : f32 to vector<8x8x128xf32>
    %218 = arith.addf %217, %216 : vector<8x8x128xf32>
    %219 = arith.divf %217, %218 : vector<8x8x128xf32>
    %220 = arith.mulf %214, %219 : vector<8x8x128xf32>
    %221 = arith.truncf %220 : vector<8x8x128xf32> to vector<8x8x128xbf16>
    %c0_123 = arith.constant 0 : index
    %c0_124 = arith.constant 0 : index
    %c0_125 = arith.constant 0 : index
    %c0_126 = arith.constant 0 : index
    %222 = vector.load %arg6[%c0_123, %c0_124, %c0_125, %c0_126] : memref<1x8x8x256xbf16, #tpu.memory_space<vmem>>, vector<1x8x8x128xbf16>
    %223 = vector.shape_cast %222 : vector<1x8x8x128xbf16> to vector<8x8x128xbf16>
    %224 = vector.shape_cast %221 : vector<8x8x128xbf16> to vector<1x8x8x128xbf16>
    tpu.vector_store %arg6[%c0_123, %c0_124, %c0_125, %c0_126], %224 {strides = array<i32>} : memref<1x8x8x256xbf16, #tpu.memory_space<vmem>>, vector<1x8x8x128xbf16>,
    %225 = arith.truncf %207 : vector<8x8x128xf32> to vector<8x8x128xbf16>
    %c0_127 = arith.constant 0 : index
    %c0_128 = arith.constant 0 : index
    %c0_129 = arith.constant 0 : index
    %c128 = arith.constant 128 : index
    %226 = vector.load %arg6[%c0_127, %c0_128, %c0_129, %c128] : memref<1x8x8x256xbf16, #tpu.memory_space<vmem>>, vector<1x8x8x128xbf16>
    %227 = vector.shape_cast %226 : vector<1x8x8x128xbf16> to vector<8x8x128xbf16>
    %228 = vector.shape_cast %225 : vector<8x8x128xbf16> to vector<1x8x8x128xbf16>
    tpu.vector_store %arg6[%c0_127, %c0_128, %c0_129, %c128], %228 {strides = array<i32>} : memref<1x8x8x256xbf16, #tpu.memory_space<vmem>>, vector<1x8x8x128xbf16>,
    return
  }
  func.func @transform_0(%arg0: i32, %arg1: i32) -> (i32, i32, i32, i32) {
    %c1_i32 = arith.constant 1 : i32
    %0 = arith.muli %arg0, %c1_i32 : i32
    %1 = arith.addi %0, %arg1 : i32
    %c0_i32 = arith.constant 0 : i32
    %c0_i32_0 = arith.constant 0 : i32
    %c0_i32_1 = arith.constant 0 : i32
    %c0_i32_2 = arith.constant 0 : i32
    return %1, %c0_i32, %c0_i32_0, %c0_i32_1 : i32, i32, i32, i32
  }
  func.func @transform_1(%arg0: i32, %arg1: i32) -> (i32, i32, i32) {
    %c0_i32 = arith.constant 0 : i32
    %c0_i32_0 = arith.constant 0 : i32
    %c0_i32_1 = arith.constant 0 : i32
    %c0_i32_2 = arith.constant 0 : i32
    return %c0_i32, %c0_i32_0, %c0_i32_1 : i32, i32, i32
  }
  func.func @transform_2(%arg0: i32, %arg1: i32) -> (i32, i32) {
    %c0_i32 = arith.constant 0 : i32
    %c0_i32_0 = arith.constant 0 : i32
    %c0_i32_1 = arith.constant 0 : i32
    return %c0_i32, %c0_i32_0 : i32, i32
  }
  func.func @transform_3(%arg0: i32, %arg1: i32) -> (i32, i32) {
    %c0_i32 = arith.constant 0 : i32
    %c0_i32_0 = arith.constant 0 : i32
    %c0_i32_1 = arith.constant 0 : i32
    return %c0_i32, %c0_i32_0 : i32, i32
  }
  func.func @transform_4(%arg0: i32, %arg1: i32) -> (i32, i32, i32, i32) {
    %c0_i32 = arith.constant 0 : i32
    %c0_i32_0 = arith.constant 0 : i32
    %c0_i32_1 = arith.constant 0 : i32
    return %arg0, %arg1, %c0_i32, %c0_i32_0 : i32, i32, i32, i32
  }
}

</mosaic_0001>

<llo_original>
// kernel: pgconv_forward.3
$region0: #{pgconv_forward.3}
  #allocation0 [shape = 'u32[]', space=smem, size = 0x4, offset = 0x4, fixed_abs, tag = 'smem constant byte address 0x4 - core index']
  #allocation1 [shape = 'u32[144,128]{1,0:T(1,128)}', space=vmem, size = 0x12000, scoped, tag = 'internal scratch']
  %s0 = inlined_call_operand.vmem [shape: bf16[128,128], index: 0, kind: input, shape index: {}]
  %s1 = inlined_call_operand.vmem [shape: bf16[128,256], index: 1, kind: input, shape index: {}]
  %s2 = inlined_call_operand.vmem [shape: f32[2,128], index: 2, kind: input, shape index: {}]
  %s3 = inlined_call_operand.vmem [shape: bf16[384,128], index: 3, kind: input, shape index: {}]
  %s4 = inlined_call_operand.vmem [shape: f32[2,128], index: 4, kind: input, shape index: {}]
  %s5 = inlined_call_operand.vmem [shape: bf16[128,128], index: 5, kind: output, shape index: {}]
  %s6 = sld [smem:[#allocation0]]
  $region30: #{pgconv_forward.3} parent=0
    _
  %s8 = ssub.s32 1, %s6
  %s9 = scalar_select 0, %s8, %s6
  // Predicated region
  $region2: #{pgconv_forward.3} parent=0 // pred_check
    _
  $region3: #{pgconv_forward.3} parent=0 // pred_check_branch
    %11 = sbr.rel (0) target = $region5
  $region4: #{pgconv_forward.3} parent=0 // pred_region
    _
  $region5: #{pgconv_forward.3} parent=0 // pred_fallthru
    _
  // Predicated region
  $region6: #{pgconv_forward.3} parent=0 // pred_check
    _
  $region7: #{pgconv_forward.3} parent=0 // pred_check_branch
    %13 = sbr.rel (0) target = $region9
  $region8: #{pgconv_forward.3} parent=0 // pred_region
    _
  $region9: #{pgconv_forward.3} parent=0 // pred_fallthru
    _
  // Predicated region
  $region10: #{pgconv_forward.3} parent=0 // pred_check
    _
  $region11: #{pgconv_forward.3} parent=0 // pred_check_branch
    %15 = sbr.rel (0) target = $region13
  $region12: #{pgconv_forward.3} parent=0 // pred_region
    _
  $region13: #{pgconv_forward.3} parent=0 // pred_fallthru
    _
  // Predicated region
  $region14: #{pgconv_forward.3} parent=0 // pred_check
    _
  $region15: #{pgconv_forward.3} parent=0 // pred_check_branch
    %17 = sbr.rel (0) target = $region17
  $region16: #{pgconv_forward.3} parent=0 // pred_region
    _
  $region17: #{pgconv_forward.3} parent=0 // pred_fallthru
    _
  // Predicated region
  $region18: #{pgconv_forward.3} parent=0 // pred_check
    _
  $region19: #{pgconv_forward.3} parent=0 // pred_check_branch
    %19 = sbr.rel (0) target = $region21
  $region20: #{pgconv_forward.3} parent=0 // pred_region
    _
  $region21: #{pgconv_forward.3} parent=0 // pred_fallthru
    _
  %v21 = vld [vmem:[%s0] sm:$0xf]
  %v22 = vld [vmem:[%s0 + $0x4] sm:$0xf]
  %v23 = vld [vmem:[%s0 + $0x8] sm:$0xf]
  %v24 = vld [vmem:[%s0 + $0xc] sm:$0xf]
  %v25 = vld [vmem:[%s0 + $0x10] sm:$0xf]
  %v26 = vld [vmem:[%s0 + $0x14] sm:$0xf]
  %v27 = vld [vmem:[%s0 + $0x18] sm:$0xf]
  %v28 = vld [vmem:[%s0 + $0x1c] sm:$0xf]
  %v29 = vld [vmem:[%s0 + $0x20] sm:$0xf]
  %v30 = vld [vmem:[%s0 + $0x24] sm:$0xf]
  %v31 = vld [vmem:[%s0 + $0x28] sm:$0xf]
  %v32 = vld [vmem:[%s0 + $0x2c] sm:$0xf]
  %v33 = vld [vmem:[%s0 + $0x30] sm:$0xf]
  %v34 = vld [vmem:[%s0 + $0x34] sm:$0xf]
  %v35 = vld [vmem:[%s0 + $0x38] sm:$0xf]
  %v36 = vld [vmem:[%s0 + $0x3c] sm:$0xf]
  %v37 = vunpack.c.l.bf16 %v21
  %v38 = vunpack.c.l.bf16 %v22
  %v39 = vunpack.c.l.bf16 %v23
  %v40 = vunpack.c.l.bf16 %v24
  %v41 = vunpack.c.l.bf16 %v25
  %v42 = vunpack.c.l.bf16 %v26
  %v43 = vunpack.c.l.bf16 %v27
  %v44 = vunpack.c.l.bf16 %v28
  %v45 = vunpack.c.l.bf16 %v29
  %v46 = vunpack.c.l.bf16 %v30
  %v47 = vunpack.c.l.bf16 %v31
  %v48 = vunpack.c.l.bf16 %v32
  %v49 = vunpack.c.l.bf16 %v33
  %v50 = vunpack.c.l.bf16 %v34
  %v51 = vunpack.c.l.bf16 %v35
  %v52 = vunpack.c.l.bf16 %v36
  %v53 = vld [vmem:[%s2] sm:$0x1]
  %v54 = vlaneseq
  %v55 = vshrl.u32 %v54, 7
  %v56 = vsub.s32 0, %v55
  %v57 = vrot.slane %v53, %v56
  %v58 = vmul.f32 %v37, %v57
  %v59 = vmul.f32 %v38, %v57
  %v60 = vmul.f32 %v39, %v57
  %v61 = vmul.f32 %v40, %v57
  %v62 = vmul.f32 %v41, %v57
  %v63 = vmul.f32 %v42, %v57
  %v64 = vmul.f32 %v43, %v57
  %v65 = vmul.f32 %v44, %v57
  %v66 = vmul.f32 %v45, %v57
  %v67 = vmul.f32 %v46, %v57
  %v68 = vmul.f32 %v47, %v57
  %v69 = vmul.f32 %v48, %v57
  %v70 = vmul.f32 %v49, %v57
  %v71 = vmul.f32 %v50, %v57
  %v72 = vmul.f32 %v51, %v57
  %v73 = vmul.f32 %v52, %v57
  %v74 = vld [vmem:[%s2 + $0x1] sm:$0x1]
  %v75 = vlaneseq
  %v76 = vshrl.u32 %v75, 7
  %v77 = vsub.s32 0, %v76
  %v78 = vrot.slane %v74, %v77
  %v79 = vadd.f32 %v58, %v78
  %v80 = vadd.f32 %v59, %v78
  %v81 = vadd.f32 %v60, %v78
  %v82 = vadd.f32 %v61, %v78
  %v83 = vadd.f32 %v62, %v78
  %v84 = vadd.f32 %v63, %v78
  %v85 = vadd.f32 %v64, %v78
  %v86 = vadd.f32 %v65, %v78
  %v87 = vadd.f32 %v66, %v78
  %v88 = vadd.f32 %v67, %v78
  %v89 = vadd.f32 %v68, %v78
  %v90 = vadd.f32 %v69, %v78
  %v91 = vadd.f32 %v70, %v78
  %v92 = vadd.f32 %v71, %v78
  %v93 = vadd.f32 %v72, %v78
  %v94 = vadd.f32 %v73, %v78
  %v95 = vxor.u32 %v79, 2147483648
  %v96 = vxor.u32 %v80, 2147483648
  %v97 = vxor.u32 %v81, 2147483648
  %v98 = vxor.u32 %v82, 2147483648
  %v99 = vxor.u32 %v83, 2147483648
  %v100 = vxor.u32 %v84, 2147483648
  %v101 = vxor.u32 %v85, 2147483648
  %v102 = vxor.u32 %v86, 2147483648
  %v103 = vxor.u32 %v87, 2147483648
  %v104 = vxor.u32 %v88, 2147483648
  %v105 = vxor.u32 %v89, 2147483648
  %v106 = vxor.u32 %v90, 2147483648
  %v107 = vxor.u32 %v91, 2147483648
  %v108 = vxor.u32 %v92, 2147483648
  %v109 = vxor.u32 %v93, 2147483648
  %v110 = vxor.u32 %v94, 2147483648
  %v111 = vmul.f32 %v95, 1.442695
  %v112 = vpow.pop %v111
  %v113 = vmul.f32 %v96, 1.442695
  %v114 = vpow.pop %v113
  %v115 = vmul.f32 %v97, 1.442695
  %v116 = vpow.pop %v115
  %v117 = vmul.f32 %v98, 1.442695
  %v118 = vpow.pop %v117
  %v119 = vmul.f32 %v99, 1.442695
  %v120 = vpow.pop %v119
  %v121 = vmul.f32 %v100, 1.442695
  %v122 = vpow.pop %v121
  %v123 = vmul.f32 %v101, 1.442695
  %v124 = vpow.pop %v123
  %v125 = vmul.f32 %v102, 1.442695
  %v126 = vpow.pop %v125
  %v127 = vmul.f32 %v103, 1.442695
  %v128 = vpow.pop %v127
  %v129 = vmul.f32 %v104, 1.442695
  %v130 = vpow.pop %v129
  %v131 = vmul.f32 %v105, 1.442695
  %v132 = vpow.pop %v131
  %v133 = vmul.f32 %v106, 1.442695
  %v134 = vpow.pop %v133
  %v135 = vmul.f32 %v107, 1.442695
  %v136 = vpow.pop %v135
  %v137 = vmul.f32 %v108, 1.442695
  %v138 = vpow.pop %v137
  %v139 = vmul.f32 %v109, 1.442695
  %v140 = vpow.pop %v139
  %v141 = vmul.f32 %v110, 1.442695
  %v142 = vpow.pop %v141
  %v143 = vadd.f32 %v112, 1.0
  %v144 = vadd.f32 %v114, 1.0
  %v145 = vadd.f32 %v116, 1.0
  %v146 = vadd.f32 %v118, 1.0
  %v147 = vadd.f32 %v120, 1.0
  %v148 = vadd.f32 %v122, 1.0
  %v149 = vadd.f32 %v124, 1.0
  %v150 = vadd.f32 %v126, 1.0
  %v151 = vadd.f32 %v128, 1.0
  %v152 = vadd.f32 %v130, 1.0
  %v153 = vadd.f32 %v132, 1.0
  %v154 = vadd.f32 %v134, 1.0
  %v155 = vadd.f32 %v136, 1.0
  %v156 = vadd.f32 %v138, 1.0
  %v157 = vadd.f32 %v140, 1.0
  %v158 = vadd.f32 %v142, 1.0
  %v159 = vrcp.pop %v143
  %v160 = vmul.f32 1.0, %v159
  %v161 = vrcp.pop %v144
  %v162 = vmul.f32 1.0, %v161
  %v163 = vrcp.pop %v145
  %v164 = vmul.f32 1.0, %v163
  %v165 = vrcp.pop %v146
  %v166 = vmul.f32 1.0, %v165
  %v167 = vrcp.pop %v147
  %v168 = vmul.f32 1.0, %v167
  %v169 = vrcp.pop %v148
  %v170 = vmul.f32 1.0, %v169
  %v171 = vrcp.pop %v149
  %v172 = vmul.f32 1.0, %v171
  %v173 = vrcp.pop %v150
  %v174 = vmul.f32 1.0, %v173
  %v175 = vrcp.pop %v151
  %v176 = vmul.f32 1.0, %v175
  %v177 = vrcp.pop %v152
  %v178 = vmul.f32 1.0, %v177
  %v179 = vrcp.pop %v153
  %v180 = vmul.f32 1.0, %v179
  %v181 = vrcp.pop %v154
  %v182 = vmul.f32 1.0, %v181
  %v183 = vrcp.pop %v155
  %v184 = vmul.f32 1.0, %v183
  %v185 = vrcp.pop %v156
  %v186 = vmul.f32 1.0, %v185
  %v187 = vrcp.pop %v157
  %v188 = vmul.f32 1.0, %v187
  %v189 = vrcp.pop %v158
  %v190 = vmul.f32 1.0, %v189
  %v191 = vmul.f32 %v79, %v160
  %v192 = vmul.f32 %v80, %v162
  %v193 = vmul.f32 %v81, %v164
  %v194 = vmul.f32 %v82, %v166
  %v195 = vmul.f32 %v83, %v168
  %v196 = vmul.f32 %v84, %v170
  %v197 = vmul.f32 %v85, %v172
  %v198 = vmul.f32 %v86, %v174
  %v199 = vmul.f32 %v87, %v176
  %v200 = vmul.f32 %v88, %v178
  %v201 = vmul.f32 %v89, %v180
  %v202 = vmul.f32 %v90, %v182
  %v203 = vmul.f32 %v91, %v184
  %v204 = vmul.f32 %v92, %v186
  %v205 = vmul.f32 %v93, %v188
  %v206 = vmul.f32 %v94, %v190
  %v207 = vpack.c.bf16 %v192, %v191
  %v208 = vpack.c.bf16 %v194, %v193
  %v209 = vpack.c.bf16 %v196, %v195
  %v210 = vpack.c.bf16 %v198, %v197
  %v211 = vpack.c.bf16 %v200, %v199
  %v212 = vpack.c.bf16 %v202, %v201
  %v213 = vpack.c.bf16 %v204, %v203
  %v214 = vpack.c.bf16 %v206, %v205
  %v215 = vld [vmem:[%s3] sm:$0xf]
  %v216 = vld [vmem:[%s3 + $0x4] sm:$0xf]
  %v217 = vld [vmem:[%s3 + $0x8] sm:$0xf]
  %v218 = vld [vmem:[%s3 + $0xc] sm:$0xf]
  %v219 = vld [vmem:[%s3 + $0x10] sm:$0xf]
  %v220 = vld [vmem:[%s3 + $0x14] sm:$0xf]
  %v221 = vld [vmem:[%s3 + $0x18] sm:$0xf]
  %v222 = vld [vmem:[%s3 + $0x1c] sm:$0xf]
  %v223 = vld [vmem:[%s3 + $0x20] sm:$0xf]
  %v224 = vld [vmem:[%s3 + $0x24] sm:$0xf]
  %v225 = vld [vmem:[%s3 + $0x28] sm:$0xf]
  %v226 = vld [vmem:[%s3 + $0x2c] sm:$0xf]
  %v227 = vld [vmem:[%s3 + $0x30] sm:$0xf]
  %v228 = vld [vmem:[%s3 + $0x34] sm:$0xf]
  %v229 = vld [vmem:[%s3 + $0x38] sm:$0xf]
  %v230 = vld [vmem:[%s3 + $0x3c] sm:$0xf]
  %v231 = vld [vmem:[%s1] sm:$0xff]
  %v232 = vld [vmem:[%s1 + $0x8] sm:$0xff]
  %v233 = vld [vmem:[%s1 + $0x10] sm:$0xff]
  %v234 = vld [vmem:[%s1 + $0x18] sm:$0xff]
  %v235 = vld [vmem:[%s1 + $0x20] sm:$0xff]
  %v236 = vld [vmem:[%s1 + $0x28] sm:$0xff]
  %v237 = vld [vmem:[%s1 + $0x30] sm:$0xff]
  %v238 = vld [vmem:[%s1 + $0x38] sm:$0xff]
  %v239 = vld [vmem:[%s1 + $0x40] sm:$0xff]
  %v240 = vld [vmem:[%s1 + $0x48] sm:$0xff]
  %v241 = vld [vmem:[%s1 + $0x50] sm:$0xff]
  %v242 = vld [vmem:[%s1 + $0x58] sm:$0xff]
  %v243 = vld [vmem:[%s1 + $0x60] sm:$0xff]
  %v244 = vld [vmem:[%s1 + $0x68] sm:$0xff]
  %v245 = vld [vmem:[%s1 + $0x70] sm:$0xff]
  %v246 = vld [vmem:[%s1 + $0x78] sm:$0xff]
  %v247 = vld [vmem:[%s3 + $0x40] sm:$0xf]
  %v248 = vld [vmem:[%s3 + $0x44] sm:$0xf]
  %v249 = vld [vmem:[%s3 + $0x48] sm:$0xf]
  %v250 = vld [vmem:[%s3 + $0x4c] sm:$0xf]
  %v251 = vld [vmem:[%s3 + $0x50] sm:$0xf]
  %v252 = vld [vmem:[%s3 + $0x54] sm:$0xf]
  %v253 = vld [vmem:[%s3 + $0x58] sm:$0xf]
  %v254 = vld [vmem:[%s3 + $0x5c] sm:$0xf]
  %v255 = vld [vmem:[%s3 + $0x60] sm:$0xf]
  %v256 = vld [vmem:[%s3 + $0x64] sm:$0xf]
  %v257 = vld [vmem:[%s3 + $0x68] sm:$0xf]
  %v258 = vld [vmem:[%s3 + $0x6c] sm:$0xf]
  %v259 = vld [vmem:[%s3 + $0x70] sm:$0xf]
  %v260 = vld [vmem:[%s3 + $0x74] sm:$0xf]
  %v261 = vld [vmem:[%s3 + $0x78] sm:$0xf]
  %v262 = vld [vmem:[%s3 + $0x7c] sm:$0xf]
  %v263 = vld [vmem:[%s3 + $0x80] sm:$0xf]
  %v264 = vld [vmem:[%s3 + $0x84] sm:$0xf]
  %v265 = vld [vmem:[%s3 + $0x88] sm:$0xf]
  %v266 = vld [vmem:[%s3 + $0x8c] sm:$0xf]
  %v267 = vld [vmem:[%s3 + $0x90] sm:$0xf]
  %v268 = vld [vmem:[%s3 + $0x94] sm:$0xf]
  %v269 = vld [vmem:[%s3 + $0x98] sm:$0xf]
  %v270 = vld [vmem:[%s3 + $0x9c] sm:$0xf]
  %v271 = vld [vmem:[%s3 + $0xa0] sm:$0xf]
  %v272 = vld [vmem:[%s3 + $0xa4] sm:$0xf]
  %v273 = vld [vmem:[%s3 + $0xa8] sm:$0xf]
  %v274 = vld [vmem:[%s3 + $0xac] sm:$0xf]
  %v275 = vld [vmem:[%s3 + $0xb0] sm:$0xf]
  %v276 = vld [vmem:[%s3 + $0xb4] sm:$0xf]
  %v277 = vld [vmem:[%s3 + $0xb8] sm:$0xf]
  %v278 = vld [vmem:[%s3 + $0xbc] sm:$0xf]
  %v295 = vunpack.c.l.b16 %v231
  %v296 = vunpack.c.h.b16 %v231
  %v297 = vunpack.c.l.b16 %v232
  %v298 = vunpack.c.h.b16 %v232
  %v299 = vunpack.c.l.b16 %v233
  %v300 = vunpack.c.h.b16 %v233
  %v301 = vunpack.c.l.b16 %v234
  %v302 = vunpack.c.h.b16 %v234
  %v303 = vunpack.c.l.b16 %v235
  %v304 = vunpack.c.h.b16 %v235
  %v305 = vunpack.c.l.b16 %v236
  %v306 = vunpack.c.h.b16 %v236
  %v307 = vunpack.c.l.b16 %v237
  %v308 = vunpack.c.h.b16 %v237
  %v309 = vunpack.c.l.b16 %v238
  %v310 = vunpack.c.h.b16 %v238
  %v311 = vunpack.c.l.b16 %v239
  %v312 = vunpack.c.h.b16 %v239
  %v313 = vunpack.c.l.b16 %v240
  %v314 = vunpack.c.h.b16 %v240
  %v315 = vunpack.c.l.b16 %v241
  %v316 = vunpack.c.h.b16 %v241
  %v317 = vunpack.c.l.b16 %v242
  %v318 = vunpack.c.h.b16 %v242
  %v319 = vunpack.c.l.b16 %v243
  %v320 = vunpack.c.h.b16 %v243
  %v321 = vunpack.c.l.b16 %v244
  %v322 = vunpack.c.h.b16 %v244
  %v323 = vunpack.c.l.b16 %v245
  %v324 = vunpack.c.h.b16 %v245
  %v325 = vunpack.c.l.b16 %v246
  %v326 = vunpack.c.h.b16 %v246
  %v327 = vpack.c.b16 %v297, %v295
  %v328 = vpack.c.b16 %v298, %v296
  %v329 = vpack.c.b16 %v301, %v299
  %v330 = vpack.c.b16 %v302, %v300
  %v331 = vpack.c.b16 %v305, %v303
  %v332 = vpack.c.b16 %v306, %v304
  %v333 = vpack.c.b16 %v309, %v307
  %v334 = vpack.c.b16 %v310, %v308
  %v335 = vpack.c.b16 %v313, %v311
  %v336 = vpack.c.b16 %v314, %v312
  %v337 = vpack.c.b16 %v317, %v315
  %v338 = vpack.c.b16 %v318, %v316
  %v339 = vpack.c.b16 %v321, %v319
  %v340 = vpack.c.b16 %v322, %v320
  %v341 = vpack.c.b16 %v325, %v323
  %v342 = vpack.c.b16 %v326, %v324
  %v391 = vunpack.c.l.b16 %v247
  %v392 = vunpack.c.l.b16 %v248
  %v393 = vunpack.c.l.b16 %v249
  %v394 = vunpack.c.l.b16 %v250
  %v395 = vunpack.c.l.b16 %v251
  %v396 = vunpack.c.l.b16 %v252
  %v397 = vunpack.c.l.b16 %v253
  %v398 = vunpack.c.l.b16 %v254
  %v399 = vunpack.c.l.b16 %v255
  %v400 = vunpack.c.l.b16 %v256
  %v401 = vunpack.c.l.b16 %v257
  %v402 = vunpack.c.l.b16 %v258
  %v403 = vunpack.c.l.b16 %v259
  %v404 = vunpack.c.l.b16 %v260
  %v405 = vunpack.c.l.b16 %v261
  %v406 = vunpack.c.l.b16 %v262
  %v407 = vunpack.c.l.b16 %v263
  %v408 = vunpack.c.l.b16 %v264
  %v409 = vunpack.c.l.b16 %v265
  %v410 = vunpack.c.l.b16 %v266
  %v411 = vunpack.c.l.b16 %v267
  %v412 = vunpack.c.l.b16 %v268
  %v413 = vunpack.c.l.b16 %v269
  %v414 = vunpack.c.l.b16 %v270
  %v415 = vunpack.c.l.b16 %v271
  %v416 = vunpack.c.l.b16 %v272
  %v417 = vunpack.c.l.b16 %v273
  %v418 = vunpack.c.l.b16 %v274
  %v419 = vunpack.c.l.b16 %v275
  %v420 = vunpack.c.l.b16 %v276
  %v421 = vunpack.c.l.b16 %v277
  %v422 = vunpack.c.l.b16 %v278
  %v423 = vpack.c.b16 %v392, %v391
  %v424 = vpack.c.b16 %v394, %v393
  %v425 = vpack.c.b16 %v396, %v395
  %v426 = vpack.c.b16 %v398, %v397
  %v427 = vpack.c.b16 %v400, %v399
  %v428 = vpack.c.b16 %v402, %v401
  %v429 = vpack.c.b16 %v404, %v403
  %v430 = vpack.c.b16 %v406, %v405
  %v431 = vpack.c.b16 %v408, %v407
  %v432 = vpack.c.b16 %v410, %v409
  %v433 = vpack.c.b16 %v412, %v411
  %v434 = vpack.c.b16 %v414, %v413
  %v435 = vpack.c.b16 %v416, %v415
  %v436 = vpack.c.b16 %v418, %v417
  %v437 = vpack.c.b16 %v420, %v419
  %v438 = vpack.c.b16 %v422, %v421
  %455 = vmatprep.subr.bf16.mxu0 0
  %456 = vmatpush1.bf16.msra.mxu0 %v423
  %457 = vmatprep.subr.bf16.mxu0 0
  %458 = vmatpush1.bf16.msra.mxu0 %v424
  %459 = vmatprep.subr.bf16.mxu0 0
  %460 = vmatpush1.bf16.msra.mxu0 %v425
  %461 = vmatprep.subr.bf16.mxu0 0
  %462 = vmatpush1.bf16.msra.mxu0 %v426
  %463 = vmatprep.subr.bf16.mxu0 0
  %464 = vmatpush1.bf16.msra.mxu0 %v427
  %465 = vmatprep.subr.bf16.mxu0 0
  %466 = vmatpush1.bf16.msra.mxu0 %v428
  %467 = vmatprep.subr.bf16.mxu0 0
  %468 = vmatpush1.bf16.msra.mxu0 %v429
  %469 = vmatprep.subr.bf16.mxu0 0
  %470 = vmatpush1.bf16.msra.mxu0 %v430
  %471 = vmatprep.subr.bf16.mxu0 0
  %472 = vmatpush1.bf16.msra.mxu0 %v431
  %473 = vmatprep.subr.bf16.mxu0 0
  %474 = vmatpush1.bf16.msra.mxu0 %v432
  %475 = vmatprep.subr.bf16.mxu0 0
  %476 = vmatpush1.bf16.msra.mxu0 %v433
  %477 = vmatprep.subr.bf16.mxu0 0
  %478 = vmatpush1.bf16.msra.mxu0 %v434
  %479 = vmatprep.subr.bf16.mxu0 0
  %480 = vmatpush1.bf16.msra.mxu0 %v435
  %481 = vmatprep.subr.bf16.mxu0 0
  %482 = vmatpush1.bf16.msra.mxu0 %v436
  %483 = vmatprep.subr.bf16.mxu0 0
  %484 = vmatpush1.bf16.msra.mxu0 %v437
  %485 = vmatprep.subr.bf16.mxu0 0
  %486 = vmatpush1.bf16.msra.mxu0 %v438
  %487 = vmatprep.mubr.bf16.mxu0 %v328
  %488 = vmatmul.mubr.bf16.gmra.mrb[0].mxu0 %v327
  %v489 = vpop.f32.mrb[0].mxu0
  %v490 = vadd.f32 0.0, %v489
  %v491 = vpop.f32.mrb[0].mxu0
  %v492 = vpop.f32.mrb[0].mxu0
  %v493 = vadd.f32 0.0, %v492
  %v494 = vpop.f32.mrb[0].mxu0
  %495 = vmatprep.mubr.bf16.mxu0 %v330
  %496 = vmatmul.mubr.bf16.gmra.mrb[0].mxu0 %v329
  %v497 = vpop.f32.mrb[0].mxu0
  %v498 = vadd.f32 0.0, %v497
  %v499 = vpop.f32.mrb[0].mxu0
  %v500 = vpop.f32.mrb[0].mxu0
  %v501 = vadd.f32 0.0, %v500
  %v502 = vpop.f32.mrb[0].mxu0
  %503 = vmatprep.mubr.bf16.mxu0 %v332
  %504 = vmatmul.mubr.bf16.gmra.mrb[0].mxu0 %v331
  %v505 = vpop.f32.mrb[0].mxu0
  %v506 = vadd.f32 0.0, %v505
  %v507 = vpop.f32.mrb[0].mxu0
  %v508 = vpop.f32.mrb[0].mxu0
  %v509 = vadd.f32 0.0, %v508
  %v510 = vpop.f32.mrb[0].mxu0
  %511 = vmatprep.mubr.bf16.mxu0 %v334
  %512 = vmatmul.mubr.bf16.gmra.mrb[0].mxu0 %v333
  %v513 = vpop.f32.mrb[0].mxu0
  %v514 = vadd.f32 0.0, %v513
  %v515 = vpop.f32.mrb[0].mxu0
  %v516 = vpop.f32.mrb[0].mxu0
  %v517 = vadd.f32 0.0, %v516
  %v518 = vpop.f32.mrb[0].mxu0
  %519 = vmatprep.mubr.bf16.mxu0 %v336
  %520 = vmatmul.mubr.bf16.gmra.mrb[0].mxu0 %v335
  %v521 = vpop.f32.mrb[0].mxu0
  %v522 = vadd.f32 0.0, %v521
  %v523 = vpop.f32.mrb[0].mxu0
  %v524 = vpop.f32.mrb[0].mxu0
  %v525 = vadd.f32 0.0, %v524
  %v526 = vpop.f32.mrb[0].mxu0
  %527 = vmatprep.mubr.bf16.mxu0 %v338
  %528 = vmatmul.mubr.bf16.gmra.mrb[0].mxu0 %v337
  %v529 = vpop.f32.mrb[0].mxu0
  %v530 = vadd.f32 0.0, %v529
  %v531 = vpop.f32.mrb[0].mxu0
  %v532 = vpop.f32.mrb[0].mxu0
  %v533 = vadd.f32 0.0, %v532
  %v534 = vpop.f32.mrb[0].mxu0
  %535 = vmatprep.mubr.bf16.mxu0 %v340
  %536 = vmatmul.mubr.bf16.gmra.mrb[0].mxu0 %v339
  %v537 = vpop.f32.mrb[0].mxu0
  %v538 = vadd.f32 0.0, %v537
  %v539 = vpop.f32.mrb[0].mxu0
  %v540 = vpop.f32.mrb[0].mxu0
  %v541 = vadd.f32 0.0, %v540
  %v542 = vpop.f32.mrb[0].mxu0
  %543 = vmatprep.mubr.bf16.mxu0 %v342
  %544 = vmatmul.mubr.bf16.gmra.mrb[0].mxu0 %v341
  %v545 = vpop.f32.mrb[0].mxu0
  %v546 = vadd.f32 0.0, %v545
  %v547 = vpop.f32.mrb[0].mxu0
  %v548 = vpop.f32.mrb[0].mxu0
  %v549 = vadd.f32 0.0, %v548
  %v550 = vpop.f32.mrb[0].mxu0
  %551 = vdwg.mxu0
  %v568 = vunpack.c.l.b16 %v215
  %v569 = vunpack.c.l.b16 %v216
  %v570 = vunpack.c.l.b16 %v217
  %v571 = vunpack.c.l.b16 %v218
  %v572 = vunpack.c.l.b16 %v219
  %v573 = vunpack.c.l.b16 %v220
  %v574 = vunpack.c.l.b16 %v221
  %v575 = vunpack.c.l.b16 %v222
  %v576 = vunpack.c.l.b16 %v223
  %v577 = vunpack.c.l.b16 %v224
  %v578 = vunpack.c.l.b16 %v225
  %v579 = vunpack.c.l.b16 %v226
  %v580 = vunpack.c.l.b16 %v227
  %v581 = vunpack.c.l.b16 %v228
  %v582 = vunpack.c.l.b16 %v229
  %v583 = vunpack.c.l.b16 %v230
  %v584 = vpack.c.b16 %v569, %v568
  %v585 = vpack.c.b16 %v571, %v570
  %v586 = vpack.c.b16 %v573, %v572
  %v587 = vpack.c.b16 %v575, %v574
  %v588 = vpack.c.b16 %v577, %v576
  %v589 = vpack.c.b16 %v579, %v578
  %v590 = vpack.c.b16 %v581, %v580
  %v591 = vpack.c.b16 %v583, %v582
  %600 = vmatprep.subr.bf16.mxu0 0
  %601 = vmatpush1.bf16.msra.mxu0 %v584
  %602 = vmatprep.subr.bf16.mxu0 0
  %603 = vmatpush1.bf16.msra.mxu0 %v585
  %604 = vmatprep.subr.bf16.mxu0 0
  %605 = vmatpush1.bf16.msra.mxu0 %v586
  %606 = vmatprep.subr.bf16.mxu0 0
  %607 = vmatpush1.bf16.msra.mxu0 %v587
  %608 = vmatprep.subr.bf16.mxu0 0
  %609 = vmatpush1.bf16.msra.mxu0 %v588
  %610 = vmatprep.subr.bf16.mxu0 0
  %611 = vmatpush1.bf16.msra.mxu0 %v589
  %612 = vmatprep.subr.bf16.mxu0 0
  %613 = vmatpush1.bf16.msra.mxu0 %v590
  %614 = vmatprep.subr.bf16.mxu0 0
  %615 = vmatpush1.bf16.msra.mxu0 %v591
  %616 = vmatprep.subr.bf16.mxu0 0
  %617 = vmatpush1.bf16.msra.mxu0 0
  %618 = vmatprep.subr.bf16.mxu0 0
  %619 = vmatpush1.bf16.msra.mxu0 0
  %620 = vmatprep.subr.bf16.mxu0 0
  %621 = vmatpush1.bf16.msra.mxu0 0
  %622 = vmatprep.subr.bf16.mxu0 0
  %623 = vmatpush1.bf16.msra.mxu0 0
  %624 = vmatprep.subr.bf16.mxu0 0
  %625 = vmatpush1.bf16.msra.mxu0 0
  %626 = vmatprep.subr.bf16.mxu0 0
  %627 = vmatpush1.bf16.msra.mxu0 0
  %628 = vmatprep.subr.bf16.mxu0 0
  %629 = vmatpush1.bf16.msra.mxu0 0
  %630 = vmatprep.subr.bf16.mxu0 0
  %631 = vmatpush1.bf16.msra.mxu0 0
  %632 = vmatprep.mubr.bf16.mxu0 0
  %633 = vmatmul.mubr.bf16.gmra.mrb[0].mxu0 %v207
  %v634 = vpop.f32.mrb[0].mxu0
  %v635 = vadd.f32 %v490, %v634
  %v636 = vpop.f32.mrb[0].mxu0
  %v637 = vpop.f32.mrb[0].mxu0
  %v638 = vadd.f32 %v493, %v637
  %v639 = vpop.f32.mrb[0].mxu0
  %640 = vmatprep.mubr.bf16.mxu0 0
  %641 = vmatmul.mubr.bf16.gmra.mrb[0].mxu0 %v208
  %v642 = vpop.f32.mrb[0].mxu0
  %v643 = vadd.f32 %v498, %v642
  %v644 = vpop.f32.mrb[0].mxu0
  %v645 = vpop.f32.mrb[0].mxu0
  %v646 = vadd.f32 %v501, %v645
  %v647 = vpop.f32.mrb[0].mxu0
  %648 = vmatprep.mubr.bf16.mxu0 0
  %649 = vmatmul.mubr.bf16.gmra.mrb[0].mxu0 %v209
  %v650 = vpop.f32.mrb[0].mxu0
  %v651 = vadd.f32 %v506, %v650
  %v652 = vpop.f32.mrb[0].mxu0
  %v653 = vpop.f32.mrb[0].mxu0
  %v654 = vadd.f32 %v509, %v653
  %v655 = vpop.f32.mrb[0].mxu0
  %656 = vmatprep.mubr.bf16.mxu0 0
  %657 = vmatmul.mubr.bf16.gmra.mrb[0].mxu0 %v210
  %v658 = vpop.f32.mrb[0].mxu0
  %v659 = vadd.f32 %v514, %v658
  %v660 = vpop.f32.mrb[0].mxu0
  %v661 = vpop.f32.mrb[0].mxu0
  %v662 = vadd.f32 %v517, %v661
  %v663 = vpop.f32.mrb[0].mxu0
  %664 = vmatprep.mubr.bf16.mxu0 0
  %665 = vmatmul.mubr.bf16.gmra.mrb[0].mxu0 %v211
  %v666 = vpop.f32.mrb[0].mxu0
  %v667 = vadd.f32 %v522, %v666
  %v668 = vpop.f32.mrb[0].mxu0
  %v669 = vpop.f32.mrb[0].mxu0
  %v670 = vadd.f32 %v525, %v669
  %v671 = vpop.f32.mrb[0].mxu0
  %672 = vmatprep.mubr.bf16.mxu0 0
  %673 = vmatmul.mubr.bf16.gmra.mrb[0].mxu0 %v212
  %v674 = vpop.f32.mrb[0].mxu0
  %v675 = vadd.f32 %v530, %v674
  %v676 = vpop.f32.mrb[0].mxu0
  %v677 = vpop.f32.mrb[0].mxu0
  %v678 = vadd.f32 %v533, %v677
  %v679 = vpop.f32.mrb[0].mxu0
  %680 = vmatprep.mubr.bf16.mxu0 0
  %681 = vmatmul.mubr.bf16.gmra.mrb[0].mxu0 %v213
  %v682 = vpop.f32.mrb[0].mxu0
  %v683 = vadd.f32 %v538, %v682
  %v684 = vpop.f32.mrb[0].mxu0
  %v685 = vpop.f32.mrb[0].mxu0
  %v686 = vadd.f32 %v541, %v685
  %v687 = vpop.f32.mrb[0].mxu0
  %688 = vmatprep.mubr.bf16.mxu0 0
  %689 = vmatmul.mubr.bf16.gmra.mrb[0].mxu0 %v214
  %v690 = vpop.f32.mrb[0].mxu0
  %v691 = vadd.f32 %v546, %v690
  %v692 = vpop.f32.mrb[0].mxu0
  %v693 = vpop.f32.mrb[0].mxu0
  %v694 = vadd.f32 %v549, %v693
  %v695 = vpop.f32.mrb[0].mxu0
  %696 = vdwg.mxu0
  %v697 = vld [vmem:[%s4] sm:$0x1]
  %v698 = vlaneseq
  %v699 = vshrl.u32 %v698, 7
  %v700 = vsub.s32 0, %v699
  %v701 = vrot.slane %v697, %v700
  %v702 = vmul.f32 %v635, %v701
  %v703 = vmul.f32 %v638, %v701
  %v704 = vmul.f32 %v643, %v701
  %v705 = vmul.f32 %v646, %v701
  %v706 = vmul.f32 %v651, %v701
  %v707 = vmul.f32 %v654, %v701
  %v708 = vmul.f32 %v659, %v701
  %v709 = vmul.f32 %v662, %v701
  %v710 = vmul.f32 %v667, %v701
  %v711 = vmul.f32 %v670, %v701
  %v712 = vmul.f32 %v675, %v701
  %v713 = vmul.f32 %v678, %v701
  %v714 = vmul.f32 %v683, %v701
  %v715 = vmul.f32 %v686, %v701
  %v716 = vmul.f32 %v691, %v701
  %v717 = vmul.f32 %v694, %v701
  %v718 = vld [vmem:[%s4 + $0x1] sm:$0x1]
  %v719 = vlaneseq
  %v720 = vshrl.u32 %v719, 7
  %v721 = vsub.s32 0, %v720
  %v722 = vrot.slane %v718, %v721
  %v723 = vadd.f32 %v702, %v722
  %v724 = vadd.f32 %v703, %v722
  %v725 = vadd.f32 %v704, %v722
  %v726 = vadd.f32 %v705, %v722
  %v727 = vadd.f32 %v706, %v722
  %v728 = vadd.f32 %v707, %v722
  %v729 = vadd.f32 %v708, %v722
  %v730 = vadd.f32 %v709, %v722
  %v731 = vadd.f32 %v710, %v722
  %v732 = vadd.f32 %v711, %v722
  %v733 = vadd.f32 %v712, %v722
  %v734 = vadd.f32 %v713, %v722
  %v735 = vadd.f32 %v714, %v722
  %v736 = vadd.f32 %v715, %v722
  %v737 = vadd.f32 %v716, %v722
  %v738 = vadd.f32 %v717, %v722
  %v739 = vxor.u32 %v723, 2147483648
  %v740 = vxor.u32 %v724, 2147483648
  %v741 = vxor.u32 %v725, 2147483648
  %v742 = vxor.u32 %v726, 2147483648
  %v743 = vxor.u32 %v727, 2147483648
  %v744 = vxor.u32 %v728, 2147483648
  %v745 = vxor.u32 %v729, 2147483648
  %v746 = vxor.u32 %v730, 2147483648
  %v747 = vxor.u32 %v731, 2147483648
  %v748 = vxor.u32 %v732, 2147483648
  %v749 = vxor.u32 %v733, 2147483648
  %v750 = vxor.u32 %v734, 2147483648
  %v751 = vxor.u32 %v735, 2147483648
  %v752 = vxor.u32 %v736, 2147483648
  %v753 = vxor.u32 %v737, 2147483648
  %v754 = vxor.u32 %v738, 2147483648
  %v755 = vmul.f32 %v739, 1.442695
  %v756 = vpow.pop %v755
  %v757 = vmul.f32 %v740, 1.442695
  %v758 = vpow.pop %v757
  %v759 = vmul.f32 %v741, 1.442695
  %v760 = vpow.pop %v759
  %v761 = vmul.f32 %v742, 1.442695
  %v762 = vpow.pop %v761
  %v763 = vmul.f32 %v743, 1.442695
  %v764 = vpow.pop %v763
  %v765 = vmul.f32 %v744, 1.442695
  %v766 = vpow.pop %v765
  %v767 = vmul.f32 %v745, 1.442695
  %v768 = vpow.pop %v767
  %v769 = vmul.f32 %v746, 1.442695
  %v770 = vpow.pop %v769
  %v771 = vmul.f32 %v747, 1.442695
  %v772 = vpow.pop %v771
  %v773 = vmul.f32 %v748, 1.442695
  %v774 = vpow.pop %v773
  %v775 = vmul.f32 %v749, 1.442695
  %v776 = vpow.pop %v775
  %v777 = vmul.f32 %v750, 1.442695
  %v778 = vpow.pop %v777
  %v779 = vmul.f32 %v751, 1.442695
  %v780 = vpow.pop %v779
  %v781 = vmul.f32 %v752, 1.442695
  %v782 = vpow.pop %v781
  %v783 = vmul.f32 %v753, 1.442695
  %v784 = vpow.pop %v783
  %v785 = vmul.f32 %v754, 1.442695
  %v786 = vpow.pop %v785
  %v787 = vadd.f32 %v756, 1.0
  %v788 = vadd.f32 %v758, 1.0
  %v789 = vadd.f32 %v760, 1.0
  %v790 = vadd.f32 %v762, 1.0
  %v791 = vadd.f32 %v764, 1.0
  %v792 = vadd.f32 %v766, 1.0
  %v793 = vadd.f32 %v768, 1.0
  %v794 = vadd.f32 %v770, 1.0
  %v795 = vadd.f32 %v772, 1.0
  %v796 = vadd.f32 %v774, 1.0
  %v797 = vadd.f32 %v776, 1.0
  %v798 = vadd.f32 %v778, 1.0
  %v799 = vadd.f32 %v780, 1.0
  %v800 = vadd.f32 %v782, 1.0
  %v801 = vadd.f32 %v784, 1.0
  %v802 = vadd.f32 %v786, 1.0
  %v803 = vrcp.pop %v787
  %v804 = vmul.f32 1.0, %v803
  %v805 = vrcp.pop %v788
  %v806 = vmul.f32 1.0, %v805
  %v807 = vrcp.pop %v789
  %v808 = vmul.f32 1.0, %v807
  %v809 = vrcp.pop %v790
  %v810 = vmul.f32 1.0, %v809
  %v811 = vrcp.pop %v791
  %v812 = vmul.f32 1.0, %v811
  %v813 = vrcp.pop %v792
  %v814 = vmul.f32 1.0, %v813
  %v815 = vrcp.pop %v793
  %v816 = vmul.f32 1.0, %v815
  %v817 = vrcp.pop %v794
  %v818 = vmul.f32 1.0, %v817
  %v819 = vrcp.pop %v795
  %v820 = vmul.f32 1.0, %v819
  %v821 = vrcp.pop %v796
  %v822 = vmul.f32 1.0, %v821
  %v823 = vrcp.pop %v797
  %v824 = vmul.f32 1.0, %v823
  %v825 = vrcp.pop %v798
  %v826 = vmul.f32 1.0, %v825
  %v827 = vrcp.pop %v799
  %v828 = vmul.f32 1.0, %v827
  %v829 = vrcp.pop %v800
  %v830 = vmul.f32 1.0, %v829
  %v831 = vrcp.pop %v801
  %v832 = vmul.f32 1.0, %v831
  %v833 = vrcp.pop %v802
  %v834 = vmul.f32 1.0, %v833
  %v835 = vmul.f32 %v723, %v804
  %v836 = vmul.f32 %v724, %v806
  %v837 = vmul.f32 %v725, %v808
  %v838 = vmul.f32 %v726, %v810
  %v839 = vmul.f32 %v727, %v812
  %v840 = vmul.f32 %v728, %v814
  %v841 = vmul.f32 %v729, %v816
  %v842 = vmul.f32 %v730, %v818
  %v843 = vmul.f32 %v731, %v820
  %v844 = vmul.f32 %v732, %v822
  %v845 = vmul.f32 %v733, %v824
  %v846 = vmul.f32 %v734, %v826
  %v847 = vmul.f32 %v735, %v828
  %v848 = vmul.f32 %v736, %v830
  %v849 = vmul.f32 %v737, %v832
  %v850 = vmul.f32 %v738, %v834
  %v851 = vpack.c.bf16 %v836, %v835
  %v852 = vpack.c.bf16 %v838, %v837
  %v853 = vpack.c.bf16 %v840, %v839
  %v854 = vpack.c.bf16 %v842, %v841
  %v855 = vpack.c.bf16 %v844, %v843
  %v856 = vpack.c.bf16 %v846, %v845
  %v857 = vpack.c.bf16 %v848, %v847
  %v858 = vpack.c.bf16 %v850, %v849
  %v867 = vunpack.c.l.b16 %v851
  %v868 = vunpack.c.h.b16 %v851
  %v869 = vunpack.c.l.b16 %v852
  %v870 = vunpack.c.h.b16 %v852
  %v871 = vunpack.c.l.b16 %v853
  %v872 = vunpack.c.h.b16 %v853
  %v873 = vunpack.c.l.b16 %v854
  %v874 = vunpack.c.h.b16 %v854
  %v875 = vunpack.c.l.b16 %v855
  %v876 = vunpack.c.h.b16 %v855
  %v877 = vunpack.c.l.b16 %v856
  %v878 = vunpack.c.h.b16 %v856
  %v879 = vunpack.c.l.b16 %v857
  %v880 = vunpack.c.h.b16 %v857
  %v881 = vunpack.c.l.b16 %v858
  %v882 = vunpack.c.h.b16 %v858
  %v883 = vpack.c.b16 %v867, %v867
  %v884 = vpack.c.b16 %v868, %v868
  %v885 = vpack.c.b16 %v869, %v869
  %v886 = vpack.c.b16 %v870, %v870
  %v887 = vpack.c.b16 %v871, %v871
  %v888 = vpack.c.b16 %v872, %v872
  %v889 = vpack.c.b16 %v873, %v873
  %v890 = vpack.c.b16 %v874, %v874
  %v891 = vpack.c.b16 %v875, %v875
  %v892 = vpack.c.b16 %v876, %v876
  %v893 = vpack.c.b16 %v877, %v877
  %v894 = vpack.c.b16 %v878, %v878
  %v895 = vpack.c.b16 %v879, %v879
  %v896 = vpack.c.b16 %v880, %v880
  %v897 = vpack.c.b16 %v881, %v881
  %v898 = vpack.c.b16 %v882, %v882
  %915 = vst [vmem:[%s5] sm:$0xf] %v883
  %916 = vst [vmem:[%s5 + $0x4] sm:$0xf] %v884
  %917 = vst [vmem:[%s5 + $0x8] sm:$0xf] %v885
  %918 = vst [vmem:[%s5 + $0xc] sm:$0xf] %v886
  %919 = vst [vmem:[%s5 + $0x10] sm:$0xf] %v887
  %920 = vst [vmem:[%s5 + $0x14] sm:$0xf] %v888
  %921 = vst [vmem:[%s5 + $0x18] sm:$0xf] %v889
  %922 = vst [vmem:[%s5 + $0x1c] sm:$0xf] %v890
  %923 = vst [vmem:[%s5 + $0x20] sm:$0xf] %v891
  %924 = vst [vmem:[%s5 + $0x24] sm:$0xf] %v892
  %925 = vst [vmem:[%s5 + $0x28] sm:$0xf] %v893
  %926 = vst [vmem:[%s5 + $0x2c] sm:$0xf] %v894
  %927 = vst [vmem:[%s5 + $0x30] sm:$0xf] %v895
  %928 = vst [vmem:[%s5 + $0x34] sm:$0xf] %v896
  %929 = vst [vmem:[%s5 + $0x38] sm:$0xf] %v897
  %930 = vst [vmem:[%s5 + $0x3c] sm:$0xf] %v898
  // Predicated region
  $region22: #{pgconv_forward.3} parent=0 // pred_check
    _
  $region23: #{pgconv_forward.3} parent=0 // pred_check_branch
    %932 = sbr.rel (0) target = $region25
  $region24: #{pgconv_forward.3} parent=0 // pred_region
    _
  $region25: #{pgconv_forward.3} parent=0 // pred_fallthru
    _
  // Predicated region
  $region26: #{pgconv_forward.3} parent=0 // pred_check
    _
  $region27: #{pgconv_forward.3} parent=0 // pred_check_branch
    %934 = sbr.rel (0) target = $region29
  $region28: #{pgconv_forward.3} parent=0 // pred_region
    _
  $region29: #{pgconv_forward.3} parent=0 // pred_fallthru
    _

// kernel: pgconv_forward.2
$region0: #{pgconv_forward.2}
  #allocation0 [shape = 'u32[]', space=smem, size = 0x4, offset = 0x4, fixed_abs, tag = 'smem constant byte address 0x4 - core index']
  #allocation1 [shape = 'u32[144,128]{1,0:T(1,128)}', space=vmem, size = 0x12000, scoped, tag = 'internal scratch']
  #allocation2 [shape = 'bf16[10,10,128]{2,1,0:T(8,128)(2,1)}', space=vmem, size = 0xa000, scoped, tag = 'scratch operand']
  %s0 = inlined_call_operand.vmem [shape: bf16[2,44,16,128], index: 0, kind: input, shape index: {}]
  %s1 = inlined_call_operand.vmem [shape: bf16[9,128,128], index: 1, kind: input, shape index: {}]
  %s2 = inlined_call_operand.vmem [shape: f32[9,128], index: 2, kind: input, shape index: {}]
  %s3 = inlined_call_operand.vmem [shape: f32[8,128], index: 3, kind: input, shape index: {}]
  %s4 = inlined_call_operand.vmem [shape: bf16[2,8,8,256], index: 4, kind: output, shape index: {}]
  %s5 = sld [smem:[#allocation0]]
  $region53: #{pgconv_forward.2} parent=0
    _
  %s7 = ssub.s32 1, %s5
  %s8 = scalar_select 0, %s7, %s5
  loop: start=0, step=1, limit=4
  $region2: #{pgconv_forward.2} parent=0 // loop_pre_header
    _
  $region3: #{pgconv_forward.2} parent=0 // loop_header
    %s10 = sphi 0, %s14
    %p11 = scmp.ge.s32.totalorder %s10, 4
    %s17 = sphi 0, %s29
    %s18 = sphi 0, %s25
    %s19 = sphi 0, %s17
    %s20 = sphi 0, %s18
    %s21 = sphi 0, %s19
    %s22 = sphi 0, %s20
    %s34 = sphi 0, %s36
    %s37 = sphi 0, %s34
    %s38 = sphi 0, %s37
    %s54 = sphi 0, %s38
    %s58 = sphi 0, %s58
    %s60 = sphi 0, %s58
    %s61 = sphi 0, %s60
    %s75 = sphi 0, %s61
    %s79 = sphi 0, %s79
    %s81 = sphi 0, %s79
    %s82 = sphi 0, %s81
    %s96 = sphi 0, %s82
    %s100 = sphi 0, %s100
    %s102 = sphi 0, %s100
    %s103 = sphi 0, %s102
    %s117 = sphi 0, %s103
    %s125 = sphi 0, %s127
    %s128 = sphi 0, %s125
    %s129 = sphi 0, %s128
    %s145 = sphi 0, %s129
  $region4: #{pgconv_forward.2} parent=0 // loop_header_branch
    %13 = sbr.rel (%p11) target = $region8
  $region5: #{pgconv_forward.2} parent=0 // loop_body
    %s15 = ssub.s32 %s10, 1
    %s16 = ssub.s32 %s10, 2
    %s23 = sadd.s32 1, %s18
    %p24 = scmp.ge.s32.totalorder %s23, 1
    %s25 = scalar_select %p24, 0, %s23
    %s26 = sadd.s32 1, %s17
    %s27 = scalar_select %p24, %s26, %s17
    %p28 = scmp.ge.s32.totalorder %s27, 2
    %s29 = scalar_select %p28, 0, %s27
    %s30 = sadd.s32 %s17, %s18
    %s31 = sadd.s32 %s29, %s25
    %s32 = ssub.s32 %s30, %s31
    %p33 = scmp.eq.s32.totalorder %s32, 0
    %s35 = sadd.s32 %s34, 1
    %s36 = scalar_select %p33, %s34, %s35
    %p39 = pneg %p33
    %p40 = scmp.eq.s32.totalorder %s10, 1
    %p41 = por %p39, %p40
    %p42 = scmp.ne.s32.totalorder %s34, %s37
    %p43 = scmp.eq.s32.totalorder %s10, 0
    %p44 = por %p42, %p43
    %p45 = scmp.ne.s32.totalorder %s34, %s37
    %p46 = scmp.eq.s32.totalorder %s15, 1
    %p47 = por %p45, %p46
    %p48 = scmp.ne.s32.totalorder %s37, %s38
    %p49 = scmp.eq.s32.totalorder %s15, 0
    %p50 = por %p48, %p49
    %p51 = scmp.ne.s32.totalorder %s37, %s38
    %p52 = scmp.eq.s32.totalorder %s16, 1
    %p53 = por %p51, %p52
    %p55 = scmp.ne.s32.totalorder %s38, %s54
    %p56 = scmp.eq.s32.totalorder %s16, 0
    %p57 = por %p55, %p56
    %s59 = sadd.s32 %s58, 1
    %p62 = scmp.eq.s32.totalorder %s10, 1
    %p63 = scmp.ne.s32.totalorder %s58, %s60
    %p64 = scmp.eq.s32.totalorder %s10, 0
    %p65 = por %p63, %p64
    %p66 = scmp.ne.s32.totalorder %s58, %s60
    %p67 = scmp.eq.s32.totalorder %s15, 1
    %p68 = por %p66, %p67
    %p69 = scmp.ne.s32.totalorder %s60, %s61
    %p70 = scmp.eq.s32.totalorder %s15, 0
    %p71 = por %p69, %p70
    %p72 = scmp.ne.s32.totalorder %s60, %s61
    %p73 = scmp.eq.s32.totalorder %s16, 1
    %p74 = por %p72, %p73
    %p76 = scmp.ne.s32.totalorder %s61, %s75
    %p77 = scmp.eq.s32.totalorder %s16, 0
    %p78 = por %p76, %p77
    %s80 = sadd.s32 %s79, 1
    %p83 = scmp.eq.s32.totalorder %s10, 1
    %p84 = scmp.ne.s32.totalorder %s79, %s81
    %p85 = scmp.eq.s32.totalorder %s10, 0
    %p86 = por %p84, %p85
    %p87 = scmp.ne.s32.totalorder %s79, %s81
    %p88 = scmp.eq.s32.totalorder %s15, 1
    %p89 = por %p87, %p88
    %p90 = scmp.ne.s32.totalorder %s81, %s82
    %p91 = scmp.eq.s32.totalorder %s15, 0
    %p92 = por %p90, %p91
    %p93 = scmp.ne.s32.totalorder %s81, %s82
    %p94 = scmp.eq.s32.totalorder %s16, 1
    %p95 = por %p93, %p94
    %p97 = scmp.ne.s32.totalorder %s82, %s96
    %p98 = scmp.eq.s32.totalorder %s16, 0
    %p99 = por %p97, %p98
    %s101 = sadd.s32 %s100, 1
    %p104 = scmp.eq.s32.totalorder %s10, 1
    %p105 = scmp.ne.s32.totalorder %s100, %s102
    %p106 = scmp.eq.s32.totalorder %s10, 0
    %p107 = por %p105, %p106
    %p108 = scmp.ne.s32.totalorder %s100, %s102
    %p109 = scmp.eq.s32.totalorder %s15, 1
    %p110 = por %p108, %p109
    %p111 = scmp.ne.s32.totalorder %s102, %s103
    %p112 = scmp.eq.s32.totalorder %s15, 0
    %p113 = por %p111, %p112
    %p114 = scmp.ne.s32.totalorder %s102, %s103
    %p115 = scmp.eq.s32.totalorder %s16, 1
    %p116 = por %p114, %p115
    %p118 = scmp.ne.s32.totalorder %s103, %s117
    %p119 = scmp.eq.s32.totalorder %s16, 0
    %p120 = por %p118, %p119
    %s121 = ssub.s32 %s17, %s29
    %s122 = ssub.s32 %s18, %s25
    %s123 = sor.u32 %s121, %s122
    %p124 = scmp.eq.s32.totalorder %s123, 0
    %s126 = sadd.s32 %s125, 1
    %s127 = scalar_select %p124, %s125, %s126
    %p130 = pneg %p124
    %p131 = scmp.eq.s32.totalorder %s10, 1
    %p132 = por %p130, %p131
    %p133 = scmp.ne.s32.totalorder %s125, %s128
    %p134 = scmp.eq.s32.totalorder %s10, 0
    %p135 = por %p133, %p134
    %p136 = scmp.ne.s32.totalorder %s125, %s128
    %p137 = scmp.eq.s32.totalorder %s15, 1
    %p138 = por %p136, %p137
    %p139 = scmp.ne.s32.totalorder %s128, %s129
    %p140 = scmp.eq.s32.totalorder %s15, 0
    %p141 = por %p139, %p140
    %p142 = scmp.ne.s32.totalorder %s128, %s129
    %p143 = scmp.eq.s32.totalorder %s16, 1
    %p144 = por %p142, %p143
    %p146 = scmp.ne.s32.totalorder %s129, %s145
    %p147 = scmp.eq.s32.totalorder %s16, 0
    %p148 = por %p146, %p147
    %p149 = scmp.le.s32.totalorder 1, %s10
    %p150 = scmp.lt.s32.totalorder %s10, 3
    %p151 = pnand %p149, %p150
    %p152 = pneg %p151
    // Predicated region
    $region9: #{pgconv_forward.2} parent=5 // pred_check
      _
    $region10: #{pgconv_forward.2} parent=5 // pred_check_branch
      %154 = sbr.rel (%p151) target = $region12
    $region11: #{pgconv_forward.2} parent=5 // pred_region
      %s155 = ssub.s32 %s10, 1
      // Predicated region
      $region13: #{pgconv_forward.2} parent=11 // pred_check
        %p156 = pneg %p71
      $region14: #{pgconv_forward.2} parent=11 // pred_check_branch
        %158 = sbr.rel (%p156) target = $region16
      $region15: #{pgconv_forward.2} parent=11 // pred_region
        _
      $region16: #{pgconv_forward.2} parent=11 // pred_fallthru
        _
      // Predicated region
      $region17: #{pgconv_forward.2} parent=11 // pred_check
        %p159 = pneg %p92
      $region18: #{pgconv_forward.2} parent=11 // pred_check_branch
        %161 = sbr.rel (%p159) target = $region20
      $region19: #{pgconv_forward.2} parent=11 // pred_region
        _
      $region20: #{pgconv_forward.2} parent=11 // pred_fallthru
        _
      // Predicated region
      $region21: #{pgconv_forward.2} parent=11 // pred_check
        %p162 = pneg %p113
      $region22: #{pgconv_forward.2} parent=11 // pred_check_branch
        %164 = sbr.rel (%p162) target = $region24
      $region23: #{pgconv_forward.2} parent=11 // pred_region
        _
      $region24: #{pgconv_forward.2} parent=11 // pred_fallthru
        _
    $region12: #{pgconv_forward.2} parent=5 // pred_fallthru
      _
    %p165 = scmp.lt.s32.totalorder %s10, 2
    // Predicated region
    $region25: #{pgconv_forward.2} parent=5 // pred_check
      %p166 = pneg %p165
    $region26: #{pgconv_forward.2} parent=5 // pred_check_branch
      %168 = sbr.rel (%p166) target = $region28
    $region27: #{pgconv_forward.2} parent=5 // pred_region
      // Predicated region
      $region29: #{pgconv_forward.2} parent=27 // pred_check
        %p169 = pneg %p44
      $region30: #{pgconv_forward.2} parent=27 // pred_check_branch
        %171 = sbr.rel (%p169) target = $region32
      $region31: #{pgconv_forward.2} parent=27 // pred_region
        %s172 = sadd.s32 %s17, %s18
        %p173 = scmp.lt.s32.totalorder %s172, 1
        %s174 = scalar_select %p173, %s172, 1
        %s175 = smul.addr %s174, 88
        %s176 = smul.addr %s175, 4
        %s177 = scalar_lea.vmem %s0, %s176
        %s178 = sadd.s32 %s17, %s18
      $region32: #{pgconv_forward.2} parent=27 // pred_fallthru
        _
    $region28: #{pgconv_forward.2} parent=5 // pred_fallthru
      _
    %p179 = scmp.le.s32.totalorder 1, %s10
    %p180 = scmp.lt.s32.totalorder %s10, 3
    %p181 = pnand %p179, %p180
    %p182 = pneg %p181
    // Predicated region
    $region33: #{pgconv_forward.2} parent=5 // pred_check
      _
    $region34: #{pgconv_forward.2} parent=5 // pred_check_branch
      %184 = sbr.rel (%p181) target = $region36
    $region35: #{pgconv_forward.2} parent=5 // pred_region
      %s185 = ssub.s32 %s10, 1
      %s186 = sadd.s32 %s19, %s20
      %p187 = scmp.lt.s32.totalorder %s186, 1
      %s188 = scalar_select %p187, %s186, 1
      %s189 = smul.addr %s188, 88
      %s190 = smul.addr %s189, 4
      %s191 = scalar_lea.vmem %s0, %s190
      %p192 = pneg %p50
      %p193 = pneg %p47
      %p194 = pneg %p71
      %p195 = pneg %p68
      %p196 = pneg %p92
      %p197 = pneg %p89
      %p198 = pneg %p113
      %p199 = pneg %p110
      %p200 = pneg %p141
      %p201 = pneg %p138
      %s202 = smul.u32 8, %s20
      %p203 = scmp.lt.s32.totalorder %s19, 1
      %s204 = scalar_select %p203, %s19, 1
      %p205 = scmp.lt.s32.totalorder %s202, 7
      %s206 = scalar_select %p205, %s202, 7
      %s207 = smul.addr %s206, 2
      %s208 = smul.addr %s204, 16
      %s209 = sadd.s32 %s207, %s208
      %s210 = smul.addr %s209, 4
      %s211 = scalar_lea.vmem %s4, %s210
      %s212 = sadd.s32 %s19, %s20
      %p213 = scmp.lt.s32.totalorder %s212, 1
      %s214 = scalar_select %p213, %s212, 1
      %s215 = smul.addr %s214, 88
      %s216 = smul.addr %s215, 4
      %s217 = scalar_lea.vmem %s0, %s216
      %s218 = sadd.s32 %s19, %s20
      %s219 = smul.u32 8, %s20
      %p220 = scmp.lt.s32.totalorder %s19, 1
      %s221 = scalar_select %p220, %s19, 1
      %p222 = scmp.lt.s32.totalorder %s219, 7
      %s223 = scalar_select %p222, %s219, 7
      %s224 = smul.addr %s223, 2
      %s225 = smul.addr %s221, 16
      %s226 = sadd.s32 %s224, %s225
      %s227 = smul.addr %s226, 4
      %s228 = scalar_lea.vmem %s4, %s227
      %s229 = smul.u32 8, %s20
      %v231 = vld [vmem:[%s217] sm:$0xf]
      %v232 = vld [vmem:[%s217 + $0x4] sm:$0xf]
      %v233 = vld [vmem:[%s217 + $0x8] sm:$0xf]
      %v234 = vld [vmem:[%s217 + $0xc] sm:$0xf]
      %v235 = vld [vmem:[%s217 + $0x10] sm:$0xf]
      %v236 = vld [vmem:[%s217 + $0x14] sm:$0xf]
      %v237 = vld [vmem:[%s217 + $0x18] sm:$0xf]
      %v238 = vld [vmem:[%s217 + $0x1c] sm:$0xf]
      %v239 = vld [vmem:[%s217 + $0x20] sm:$0xf]
      %v240 = vld [vmem:[%s217 + $0x24] sm:$0xf]
      %v241 = vld [vmem:[%s217 + $0x28] sm:$0xf]
      %v242 = vld [vmem:[%s217 + $0x2c] sm:$0xf]
      %v243 = vld [vmem:[%s217 + $0x30] sm:$0xf]
      %v244 = vld [vmem:[%s217 + $0x34] sm:$0xf]
      %v245 = vld [vmem:[%s217 + $0x38] sm:$0xf]
      %v246 = vld [vmem:[%s217 + $0x3c] sm:$0xf]
      %v247 = vld [vmem:[%s217 + $0x40] sm:$0xf]
      %v248 = vld [vmem:[%s217 + $0x44] sm:$0xf]
      %v249 = vld [vmem:[%s217 + $0x48] sm:$0xf]
      %v250 = vld [vmem:[%s217 + $0x4c] sm:$0xf]
      %v251 = vld [vmem:[%s1] sm:$0xf]
      %v252 = vld [vmem:[%s1 + $0x4] sm:$0xf]
      %v253 = vld [vmem:[%s1 + $0x8] sm:$0xf]
      %v254 = vld [vmem:[%s1 + $0xc] sm:$0xf]
      %v255 = vld [vmem:[%s1 + $0x10] sm:$0xf]
      %v256 = vld [vmem:[%s1 + $0x14] sm:$0xf]
      %v257 = vld [vmem:[%s1 + $0x18] sm:$0xf]
      %v258 = vld [vmem:[%s1 + $0x1c] sm:$0xf]
      %v259 = vld [vmem:[%s1 + $0x20] sm:$0xf]
      %v260 = vld [vmem:[%s1 + $0x24] sm:$0xf]
      %v261 = vld [vmem:[%s1 + $0x28] sm:$0xf]
      %v262 = vld [vmem:[%s1 + $0x2c] sm:$0xf]
      %v263 = vld [vmem:[%s1 + $0x30] sm:$0xf]
      %v264 = vld [vmem:[%s1 + $0x34] sm:$0xf]
      %v265 = vld [vmem:[%s1 + $0x38] sm:$0xf]
      %v266 = vld [vmem:[%s1 + $0x3c] sm:$0xf]
      %s267 = scalar_lea.vmem %s217, 88
      %v268 = vld [vmem:[%s267] sm:$0xf]
      %v269 = vld [vmem:[%s267 + $0x4] sm:$0xf]
      %v270 = vld [vmem:[%s267 + $0x8] sm:$0xf]
      %v271 = vld [vmem:[%s267 + $0xc] sm:$0xf]
      %v272 = vld [vmem:[%s267 + $0x10] sm:$0xf]
      %v273 = vld [vmem:[%s267 + $0x14] sm:$0xf]
      %v274 = vld [vmem:[%s267 + $0x18] sm:$0xf]
      %v275 = vld [vmem:[%s267 + $0x1c] sm:$0xf]
      %v276 = vld [vmem:[%s267 + $0x20] sm:$0xf]
      %v277 = vld [vmem:[%s267 + $0x24] sm:$0xf]
      %v278 = vld [vmem:[%s267 + $0x28] sm:$0xf]
      %v279 = vld [vmem:[%s267 + $0x2c] sm:$0xf]
      %v280 = vld [vmem:[%s267 + $0x30] sm:$0xf]
      %v281 = vld [vmem:[%s267 + $0x34] sm:$0xf]
      %v282 = vld [vmem:[%s267 + $0x38] sm:$0xf]
      %v283 = vld [vmem:[%s267 + $0x3c] sm:$0xf]
      %v284 = vld [vmem:[%s267 + $0x40] sm:$0xf]
      %v285 = vld [vmem:[%s267 + $0x44] sm:$0xf]
      %v286 = vld [vmem:[%s267 + $0x48] sm:$0xf]
      %v287 = vld [vmem:[%s267 + $0x4c] sm:$0xf]
      %s288 = scalar_lea.vmem %s1, 64
      %v289 = vld [vmem:[%s288] sm:$0xf]
      %v290 = vld [vmem:[%s288 + $0x4] sm:$0xf]
      %v291 = vld [vmem:[%s288 + $0x8] sm:$0xf]
      %v292 = vld [vmem:[%s288 + $0xc] sm:$0xf]
      %v293 = vld [vmem:[%s288 + $0x10] sm:$0xf]
      %v294 = vld [vmem:[%s288 + $0x14] sm:$0xf]
      %v295 = vld [vmem:[%s288 + $0x18] sm:$0xf]
      %v296 = vld [vmem:[%s288 + $0x1c] sm:$0xf]
      %v297 = vld [vmem:[%s288 + $0x20] sm:$0xf]
      %v298 = vld [vmem:[%s288 + $0x24] sm:$0xf]
      %v299 = vld [vmem:[%s288 + $0x28] sm:$0xf]
      %v300 = vld [vmem:[%s288 + $0x2c] sm:$0xf]
      %v301 = vld [vmem:[%s288 + $0x30] sm:$0xf]
      %v302 = vld [vmem:[%s288 + $0x34] sm:$0xf]
      %v303 = vld [vmem:[%s288 + $0x38] sm:$0xf]
      %v304 = vld [vmem:[%s288 + $0x3c] sm:$0xf]
      %v325 = vunpack.c.l.b16 %v268
      %v326 = vunpack.c.l.b16 %v269
      %v327 = vunpack.c.l.b16 %v270
      %v328 = vunpack.c.l.b16 %v271
      %v329 = vunpack.c.l.b16 %v272
      %v330 = vunpack.c.l.b16 %v273
      %v331 = vunpack.c.l.b16 %v274
      %v332 = vunpack.c.l.b16 %v275
      %v333 = vunpack.c.l.b16 %v276
      %v334 = vunpack.c.l.b16 %v277
      %v335 = vunpack.c.l.b16 %v278
      %v336 = vunpack.c.l.b16 %v279
      %v337 = vunpack.c.l.b16 %v280
      %v338 = vunpack.c.l.b16 %v281
      %v339 = vunpack.c.l.b16 %v282
      %v340 = vunpack.c.l.b16 %v283
      %v341 = vunpack.c.l.b16 %v284
      %v342 = vunpack.c.l.b16 %v285
      %v343 = vunpack.c.l.b16 %v286
      %v344 = vunpack.c.l.b16 %v287
      %v345 = vpack.c.b16 %v326, %v325
      %v346 = vpack.c.b16 %v328, %v327
      %v347 = vpack.c.b16 %v330, %v329
      %v348 = vpack.c.b16 %v332, %v331
      %v349 = vpack.c.b16 %v334, %v333
      %v350 = vpack.c.b16 %v336, %v335
      %v351 = vpack.c.b16 %v338, %v337
      %v352 = vpack.c.b16 %v340, %v339
      %v353 = vpack.c.b16 %v342, %v341
      %v354 = vpack.c.b16 %v344, %v343
      %v381 = vunpack.c.l.b16 %v289
      %v382 = vunpack.c.l.b16 %v290
      %v383 = vunpack.c.l.b16 %v291
      %v384 = vunpack.c.l.b16 %v292
      %v385 = vunpack.c.l.b16 %v293
      %v386 = vunpack.c.l.b16 %v294
      %v387 = vunpack.c.l.b16 %v295
      %v388 = vunpack.c.l.b16 %v296
      %v389 = vunpack.c.l.b16 %v297
      %v390 = vunpack.c.l.b16 %v298
      %v391 = vunpack.c.l.b16 %v299
      %v392 = vunpack.c.l.b16 %v300
      %v393 = vunpack.c.l.b16 %v301
      %v394 = vunpack.c.l.b16 %v302
      %v395 = vunpack.c.l.b16 %v303
      %v396 = vunpack.c.l.b16 %v304
      %v397 = vpack.c.b16 %v382, %v381
      %v398 = vpack.c.b16 %v384, %v383
      %v399 = vpack.c.b16 %v386, %v385
      %v400 = vpack.c.b16 %v388, %v387
      %v401 = vpack.c.b16 %v390, %v389
      %v402 = vpack.c.b16 %v392, %v391
      %v403 = vpack.c.b16 %v394, %v393
      %v404 = vpack.c.b16 %v396, %v395
      %413 = vmatprep.subr.bf16.mxu0 0
      %414 = vmatpush1.bf16.msra.mxu0 %v397
      %415 = vmatprep.subr.bf16.mxu0 0
      %416 = vmatpush1.bf16.msra.mxu0 %v398
      %417 = vmatprep.subr.bf16.mxu0 0
      %418 = vmatpush1.bf16.msra.mxu0 %v399
      %419 = vmatprep.subr.bf16.mxu0 0
      %420 = vmatpush1.bf16.msra.mxu0 %v400
      %421 = vmatprep.subr.bf16.mxu0 0
      %422 = vmatpush1.bf16.msra.mxu0 %v401
      %423 = vmatprep.subr.bf16.mxu0 0
      %424 = vmatpush1.bf16.msra.mxu0 %v402
      %425 = vmatprep.subr.bf16.mxu0 0
      %426 = vmatpush1.bf16.msra.mxu0 %v403
      %427 = vmatprep.subr.bf16.mxu0 0
      %428 = vmatpush1.bf16.msra.mxu0 %v404
      %429 = vmatprep.subr.bf16.mxu0 0
      %430 = vmatpush1.bf16.msra.mxu0 0
      %431 = vmatprep.subr.bf16.mxu0 0
      %432 = vmatpush1.bf16.msra.mxu0 0
      %433 = vmatprep.subr.bf16.mxu0 0
      %434 = vmatpush1.bf16.msra.mxu0 0
      %435 = vmatprep.subr.bf16.mxu0 0
      %436 = vmatpush1.bf16.msra.mxu0 0
      %437 = vmatprep.subr.bf16.mxu0 0
      %438 = vmatpush1.bf16.msra.mxu0 0
      %439 = vmatprep.subr.bf16.mxu0 0
      %440 = vmatpush1.bf16.msra.mxu0 0
      %441 = vmatprep.subr.bf16.mxu0 0
      %442 = vmatpush1.bf16.msra.mxu0 0
      %443 = vmatprep.subr.bf16.mxu0 0
      %444 = vmatpush1.bf16.msra.mxu0 0
      %445 = vmatprep.mubr.bf16.mxu0 0
      %446 = vmatmul.mubr.bf16.gmra.mrb[0].mxu0 %v345
      %v447 = vpop.f32.mrb[0].mxu0
      %v448 = vadd.f32 0.0, %v447
      %v449 = vpop.f32.mrb[0].mxu0
      %v450 = vpop.f32.mrb[0].mxu0
      %v451 = vpop.f32.mrb[0].mxu0
      %452 = vmatprep.mubr.bf16.mxu0 0
      %453 = vmatmul.mubr.bf16.gmra.mrb[0].mxu0 %v346
      %v454 = vpop.f32.mrb[0].mxu0
      %v455 = vadd.f32 0.0, %v454
      %v456 = vpop.f32.mrb[0].mxu0
      %v457 = vpop.f32.mrb[0].mxu0
      %v458 = vpop.f32.mrb[0].mxu0
      %459 = vmatprep.mubr.bf16.mxu0 0
      %460 = vmatmul.mubr.bf16.gmra.mrb[0].mxu0 %v347
      %v461 = vpop.f32.mrb[0].mxu0
      %v462 = vadd.f32 0.0, %v461
      %v463 = vpop.f32.mrb[0].mxu0
      %v464 = vpop.f32.mrb[0].mxu0
      %v465 = vpop.f32.mrb[0].mxu0
      %466 = vmatprep.mubr.bf16.mxu0 0
      %467 = vmatmul.mubr.bf16.gmra.mrb[0].mxu0 %v348
      %v468 = vpop.f32.mrb[0].mxu0
      %v469 = vadd.f32 0.0, %v468
      %v470 = vpop.f32.mrb[0].mxu0
      %v471 = vpop.f32.mrb[0].mxu0
      %v472 = vpop.f32.mrb[0].mxu0
      %473 = vmatprep.mubr.bf16.mxu0 0
      %474 = vmatmul.mubr.bf16.gmra.mrb[0].mxu0 %v349
      %v475 = vpop.f32.mrb[0].mxu0
      %v476 = vadd.f32 0.0, %v475
      %v477 = vpop.f32.mrb[0].mxu0
      %v478 = vpop.f32.mrb[0].mxu0
      %v479 = vpop.f32.mrb[0].mxu0
      %480 = vmatprep.mubr.bf16.mxu0 0
      %481 = vmatmul.mubr.bf16.gmra.mrb[0].mxu0 %v350
      %v482 = vpop.f32.mrb[0].mxu0
      %v483 = vadd.f32 0.0, %v482
      %v484 = vpop.f32.mrb[0].mxu0
      %v485 = vpop.f32.mrb[0].mxu0
      %v486 = vpop.f32.mrb[0].mxu0
      %487 = vmatprep.mubr.bf16.mxu0 0
      %488 = vmatmul.mubr.bf16.gmra.mrb[0].mxu0 %v351
      %v489 = vpop.f32.mrb[0].mxu0
      %v490 = vadd.f32 0.0, %v489
      %v491 = vpop.f32.mrb[0].mxu0
      %v492 = vpop.f32.mrb[0].mxu0
      %v493 = vpop.f32.mrb[0].mxu0
      %494 = vmatprep.mubr.bf16.mxu0 0
      %495 = vmatmul.mubr.bf16.gmra.mrb[0].mxu0 %v352
      %v496 = vpop.f32.mrb[0].mxu0
      %v497 = vadd.f32 0.0, %v496
      %v498 = vpop.f32.mrb[0].mxu0
      %v499 = vpop.f32.mrb[0].mxu0
      %v500 = vpop.f32.mrb[0].mxu0
      %501 = vmatprep.mubr.bf16.mxu0 0
      %502 = vmatmul.mubr.bf16.gmra.mrb[0].mxu0 %v353
      %v503 = vpop.f32.mrb[0].mxu0
      %v504 = vadd.f32 0.0, %v503
      %v505 = vpop.f32.mrb[0].mxu0
      %v506 = vpop.f32.mrb[0].mxu0
      %v507 = vpop.f32.mrb[0].mxu0
      %508 = vmatprep.mubr.bf16.mxu0 0
      %509 = vmatmul.mubr.bf16.gmra.mrb[0].mxu0 %v354
      %v510 = vpop.f32.mrb[0].mxu0
      %v511 = vadd.f32 0.0, %v510
      %v512 = vpop.f32.mrb[0].mxu0
      %v513 = vpop.f32.mrb[0].mxu0
      %v514 = vpop.f32.mrb[0].mxu0
      %515 = vdwg.mxu0
      %v536 = vunpack.c.l.b16 %v231
      %v537 = vunpack.c.l.b16 %v232
      %v538 = vunpack.c.l.b16 %v233
      %v539 = vunpack.c.l.b16 %v234
      %v540 = vunpack.c.l.b16 %v235
      %v541 = vunpack.c.l.b16 %v236
      %v542 = vunpack.c.l.b16 %v237
      %v543 = vunpack.c.l.b16 %v238
      %v544 = vunpack.c.l.b16 %v239
      %v545 = vunpack.c.l.b16 %v240
      %v546 = vunpack.c.l.b16 %v241
      %v547 = vunpack.c.l.b16 %v242
      %v548 = vunpack.c.l.b16 %v243
      %v549 = vunpack.c.l.b16 %v244
      %v550 = vunpack.c.l.b16 %v245
      %v551 = vunpack.c.l.b16 %v246
      %v552 = vunpack.c.l.b16 %v247
      %v553 = vunpack.c.l.b16 %v248
      %v554 = vunpack.c.l.b16 %v249
      %v555 = vunpack.c.l.b16 %v250
      %v556 = vpack.c.b16 %v537, %v536
      %v557 = vpack.c.b16 %v539, %v538
      %v558 = vpack.c.b16 %v541, %v540
      %v559 = vpack.c.b16 %v543, %v542
      %v560 = vpack.c.b16 %v545, %v544
      %v561 = vpack.c.b16 %v547, %v546
      %v562 = vpack.c.b16 %v549, %v548
      %v563 = vpack.c.b16 %v551, %v550
      %v564 = vpack.c.b16 %v553, %v552
      %v565 = vpack.c.b16 %v555, %v554
      %v592 = vunpack.c.l.b16 %v251
      %v593 = vunpack.c.l.b16 %v252
      %v594 = vunpack.c.l.b16 %v253
      %v595 = vunpack.c.l.b16 %v254
      %v596 = vunpack.c.l.b16 %v255
      %v597 = vunpack.c.l.b16 %v256
      %v598 = vunpack.c.l.b16 %v257
      %v599 = vunpack.c.l.b16 %v258
      %v600 = vunpack.c.l.b16 %v259
      %v601 = vunpack.c.l.b16 %v260
      %v602 = vunpack.c.l.b16 %v261
      %v603 = vunpack.c.l.b16 %v262
      %v604 = vunpack.c.l.b16 %v263
      %v605 = vunpack.c.l.b16 %v264
      %v606 = vunpack.c.l.b16 %v265
      %v607 = vunpack.c.l.b16 %v266
      %v608 = vpack.c.b16 %v593, %v592
      %v609 = vpack.c.b16 %v595, %v594
      %v610 = vpack.c.b16 %v597, %v596
      %v611 = vpack.c.b16 %v599, %v598
      %v612 = vpack.c.b16 %v601, %v600
      %v613 = vpack.c.b16 %v603, %v602
      %v614 = vpack.c.b16 %v605, %v604
      %v615 = vpack.c.b16 %v607, %v606
      %624 = vmatprep.subr.bf16.mxu0 0
      %625 = vmatpush1.bf16.msra.mxu0 %v608
      %626 = vmatprep.subr.bf16.mxu0 0
      %627 = vmatpush1.bf16.msra.mxu0 %v609
      %628 = vmatprep.subr.bf16.mxu0 0
      %629 = vmatpush1.bf16.msra.mxu0 %v610
      %630 = vmatprep.subr.bf16.mxu0 0
      %631 = vmatpush1.bf16.msra.mxu0 %v611
      %632 = vmatprep.subr.bf16.mxu0 0
      %633 = vmatpush1.bf16.msra.mxu0 %v612
      %634 = vmatprep.subr.bf16.mxu0 0
      %635 = vmatpush1.bf16.msra.mxu0 %v613
      %636 = vmatprep.subr.bf16.mxu0 0
      %637 = vmatpush1.bf16.msra.mxu0 %v614
      %638 = vmatprep.subr.bf16.mxu0 0
      %639 = vmatpush1.bf16.msra.mxu0 %v615
      %640 = vmatprep.subr.bf16.mxu0 0
      %641 = vmatpush1.bf16.msra.mxu0 0
      %642 = vmatprep.subr.bf16.mxu0 0
      %643 = vmatpush1.bf16.msra.mxu0 0
      %644 = vmatprep.subr.bf16.mxu0 0
      %645 = vmatpush1.bf16.msra.mxu0 0
      %646 = vmatprep.subr.bf16.mxu0 0
      %647 = vmatpush1.bf16.msra.mxu0 0
      %648 = vmatprep.subr.bf16.mxu0 0
      %649 = vmatpush1.bf16.msra.mxu0 0
      %650 = vmatprep.subr.bf16.mxu0 0
      %651 = vmatpush1.bf16.msra.mxu0 0
      %652 = vmatprep.subr.bf16.mxu0 0
      %653 = vmatpush1.bf16.msra.mxu0 0
      %654 = vmatprep.subr.bf16.mxu0 0
      %655 = vmatpush1.bf16.msra.mxu0 0
      %656 = vmatprep.mubr.bf16.mxu0 0
      %657 = vmatmul.mubr.bf16.gmra.mrb[0].mxu0 %v556
      %v658 = vpop.f32.mrb[0].mxu0
      %v659 = vadd.f32 %v448, %v658
      %v660 = vpop.f32.mrb[0].mxu0
      %v661 = vpop.f32.mrb[0].mxu0
      %v662 = vpop.f32.mrb[0].mxu0
      %663 = vmatprep.mubr.bf16.mxu0 0
      %664 = vmatmul.mubr.bf16.gmra.mrb[0].mxu0 %v557
      %v665 = vpop.f32.mrb[0].mxu0
      %v666 = vadd.f32 %v455, %v665
      %v667 = vpop.f32.mrb[0].mxu0
      %v668 = vpop.f32.mrb[0].mxu0
      %v669 = vpop.f32.mrb[0].mxu0
      %670 = vmatprep.mubr.bf16.mxu0 0
      %671 = vmatmul.mubr.bf16.gmra.mrb[0].mxu0 %v558
      %v672 = vpop.f32.mrb[0].mxu0
      %v673 = vadd.f32 %v462, %v672
      %v674 = vpop.f32.mrb[0].mxu0
      %v675 = vpop.f32.mrb[0].mxu0
      %v676 = vpop.f32.mrb[0].mxu0
      %677 = vmatprep.mubr.bf16.mxu0 0
      %678 = vmatmul.mubr.bf16.gmra.mrb[0].mxu0 %v559
      %v679 = vpop.f32.mrb[0].mxu0
      %v680 = vadd.f32 %v469, %v679
      %v681 = vpop.f32.mrb[0].mxu0
      %v682 = vpop.f32.mrb[0].mxu0
      %v683 = vpop.f32.mrb[0].mxu0
      %684 = vmatprep.mubr.bf16.mxu0 0
      %685 = vmatmul.mubr.bf16.gmra.mrb[0].mxu0 %v560
      %v686 = vpop.f32.mrb[0].mxu0
      %v687 = vadd.f32 %v476, %v686
      %v688 = vpop.f32.mrb[0].mxu0
      %v689 = vpop.f32.mrb[0].mxu0
      %v690 = vpop.f32.mrb[0].mxu0
      %691 = vmatprep.mubr.bf16.mxu0 0
      %692 = vmatmul.mubr.bf16.gmra.mrb[0].mxu0 %v561
      %v693 = vpop.f32.mrb[0].mxu0
      %v694 = vadd.f32 %v483, %v693
      %v695 = vpop.f32.mrb[0].mxu0
      %v696 = vpop.f32.mrb[0].mxu0
      %v697 = vpop.f32.mrb[0].mxu0
      %698 = vmatprep.mubr.bf16.mxu0 0
      %699 = vmatmul.mubr.bf16.gmra.mrb[0].mxu0 %v562
      %v700 = vpop.f32.mrb[0].mxu0
      %v701 = vadd.f32 %v490, %v700
      %v702 = vpop.f32.mrb[0].mxu0
      %v703 = vpop.f32.mrb[0].mxu0
      %v704 = vpop.f32.mrb[0].mxu0
      %705 = vmatprep.mubr.bf16.mxu0 0
      %706 = vmatmul.mubr.bf16.gmra.mrb[0].mxu0 %v563
      %v707 = vpop.f32.mrb[0].mxu0
      %v708 = vadd.f32 %v497, %v707
      %v709 = vpop.f32.mrb[0].mxu0
      %v710 = vpop.f32.mrb[0].mxu0
      %v711 = vpop.f32.mrb[0].mxu0
      %712 = vmatprep.mubr.bf16.mxu0 0
      %713 = vmatmul.mubr.bf16.gmra.mrb[0].mxu0 %v564
      %v714 = vpop.f32.mrb[0].mxu0
      %v715 = vadd.f32 %v504, %v714
      %v716 = vpop.f32.mrb[0].mxu0
      %v717 = vpop.f32.mrb[0].mxu0
      %v718 = vpop.f32.mrb[0].mxu0
      %719 = vmatprep.mubr.bf16.mxu0 0
      %720 = vmatmul.mubr.bf16.gmra.mrb[0].mxu0 %v565
      %v721 = vpop.f32.mrb[0].mxu0
      %v722 = vadd.f32 %v511, %v721
      %v723 = vpop.f32.mrb[0].mxu0
      %v724 = vpop.f32.mrb[0].mxu0
      %v725 = vpop.f32.mrb[0].mxu0
      %726 = vdwg.mxu0
      %s727 = scalar_lea.vmem %s1, 128
      %v728 = vld [vmem:[%s727] sm:$0xf]
      %v729 = vld [vmem:[%s727 + $0x4] sm:$0xf]
      %v730 = vld [vmem:[%s727 + $0x8] sm:$0xf]
      %v731 = vld [vmem:[%s727 + $0xc] sm:$0xf]
      %v732 = vld [vmem:[%s727 + $0x10] sm:$0xf]
      %v733 = vld [vmem:[%s727 + $0x14] sm:$0xf]
      %v734 = vld [vmem:[%s727 + $0x18] sm:$0xf]
      %v735 = vld [vmem:[%s727 + $0x1c] sm:$0xf]
      %v736 = vld [vmem:[%s727 + $0x20] sm:$0xf]
      %v737 = vld [vmem:[%s727 + $0x24] sm:$0xf]
      %v738 = vld [vmem:[%s727 + $0x28] sm:$0xf]
      %v739 = vld [vmem:[%s727 + $0x2c] sm:$0xf]
      %v740 = vld [vmem:[%s727 + $0x30] sm:$0xf]
      %v741 = vld [vmem:[%s727 + $0x34] sm:$0xf]
      %v742 = vld [vmem:[%s727 + $0x38] sm:$0xf]
      %v743 = vld [vmem:[%s727 + $0x3c] sm:$0xf]
      %s744 = scalar_lea.vmem %s217, 176
      %v745 = vld [vmem:[%s744] sm:$0xf]
      %v746 = vld [vmem:[%s744 + $0x4] sm:$0xf]
      %v747 = vld [vmem:[%s744 + $0x8] sm:$0xf]
      %v748 = vld [vmem:[%s744 + $0xc] sm:$0xf]
      %v749 = vld [vmem:[%s744 + $0x10] sm:$0xf]
      %v750 = vld [vmem:[%s744 + $0x14] sm:$0xf]
      %v751 = vld [vmem:[%s744 + $0x18] sm:$0xf]
      %v752 = vld [vmem:[%s744 + $0x1c] sm:$0xf]
      %v753 = vld [vmem:[%s744 + $0x20] sm:$0xf]
      %v754 = vld [vmem:[%s744 + $0x24] sm:$0xf]
      %v755 = vld [vmem:[%s744 + $0x28] sm:$0xf]
      %v756 = vld [vmem:[%s744 + $0x2c] sm:$0xf]
      %v757 = vld [vmem:[%s744 + $0x30] sm:$0xf]
      %v758 = vld [vmem:[%s744 + $0x34] sm:$0xf]
      %v759 = vld [vmem:[%s744 + $0x38] sm:$0xf]
      %v760 = vld [vmem:[%s744 + $0x3c] sm:$0xf]
      %v761 = vld [vmem:[%s744 + $0x40] sm:$0xf]
      %v762 = vld [vmem:[%s744 + $0x44] sm:$0xf]
      %v763 = vld [vmem:[%s744 + $0x48] sm:$0xf]
      %v764 = vld [vmem:[%s744 + $0x4c] sm:$0xf]
      %s765 = scalar_lea.vmem %s1, 192
      %v766 = vld [vmem:[%s765] sm:$0xf]
      %v767 = vld [vmem:[%s765 + $0x4] sm:$0xf]
      %v768 = vld [vmem:[%s765 + $0x8] sm:$0xf]
      %v769 = vld [vmem:[%s765 + $0xc] sm:$0xf]
      %v770 = vld [vmem:[%s765 + $0x10] sm:$0xf]
      %v771 = vld [vmem:[%s765 + $0x14] sm:$0xf]
      %v772 = vld [vmem:[%s765 + $0x18] sm:$0xf]
      %v773 = vld [vmem:[%s765 + $0x1c] sm:$0xf]
      %v774 = vld [vmem:[%s765 + $0x20] sm:$0xf]
      %v775 = vld [vmem:[%s765 + $0x24] sm:$0xf]
      %v776 = vld [vmem:[%s765 + $0x28] sm:$0xf]
      %v777 = vld [vmem:[%s765 + $0x2c] sm:$0xf]
      %v778 = vld [vmem:[%s765 + $0x30] sm:$0xf]
      %v779 = vld [vmem:[%s765 + $0x34] sm:$0xf]
      %v780 = vld [vmem:[%s765 + $0x38] sm:$0xf]
      %v781 = vld [vmem:[%s765 + $0x3c] sm:$0xf]
      %v802 = vunpack.c.l.b16 %v745
      %v803 = vunpack.c.l.b16 %v746
      %v804 = vunpack.c.l.b16 %v747
      %v805 = vunpack.c.l.b16 %v748
      %v806 = vunpack.c.l.b16 %v749
      %v807 = vunpack.c.l.b16 %v750
      %v808 = vunpack.c.l.b16 %v751
      %v809 = vunpack.c.l.b16 %v752
      %v810 = vunpack.c.l.b16 %v753
      %v811 = vunpack.c.l.b16 %v754
      %v812 = vunpack.c.l.b16 %v755
      %v813 = vunpack.c.l.b16 %v756
      %v814 = vunpack.c.l.b16 %v757
      %v815 = vunpack.c.l.b16 %v758
      %v816 = vunpack.c.l.b16 %v759
      %v817 = vunpack.c.l.b16 %v760
      %v818 = vunpack.c.l.b16 %v761
      %v819 = vunpack.c.l.b16 %v762
      %v820 = vunpack.c.l.b16 %v763
      %v821 = vunpack.c.l.b16 %v764
      %v822 = vpack.c.b16 %v803, %v802
      %v823 = vpack.c.b16 %v805, %v804
      %v824 = vpack.c.b16 %v807, %v806
      %v825 = vpack.c.b16 %v809, %v808
      %v826 = vpack.c.b16 %v811, %v810
      %v827 = vpack.c.b16 %v813, %v812
      %v828 = vpack.c.b16 %v815, %v814
      %v829 = vpack.c.b16 %v817, %v816
      %v830 = vpack.c.b16 %v819, %v818
      %v831 = vpack.c.b16 %v821, %v820
      %v858 = vunpack.c.l.b16 %v766
      %v859 = vunpack.c.l.b16 %v767
      %v860 = vunpack.c.l.b16 %v768
      %v861 = vunpack.c.l.b16 %v769
      %v862 = vunpack.c.l.b16 %v770
      %v863 = vunpack.c.l.b16 %v771
      %v864 = vunpack.c.l.b16 %v772
      %v865 = vunpack.c.l.b16 %v773
      %v866 = vunpack.c.l.b16 %v774
      %v867 = vunpack.c.l.b16 %v775
      %v868 = vunpack.c.l.b16 %v776
      %v869 = vunpack.c.l.b16 %v777
      %v870 = vunpack.c.l.b16 %v778
      %v871 = vunpack.c.l.b16 %v779
      %v872 = vunpack.c.l.b16 %v780
      %v873 = vunpack.c.l.b16 %v781
      %v874 = vpack.c.b16 %v859, %v858
      %v875 = vpack.c.b16 %v861, %v860
      %v876 = vpack.c.b16 %v863, %v862
      %v877 = vpack.c.b16 %v865, %v864
      %v878 = vpack.c.b16 %v867, %v866
      %v879 = vpack.c.b16 %v869, %v868
      %v880 = vpack.c.b16 %v871, %v870
      %v881 = vpack.c.b16 %v873, %v872
      %890 = vmatprep.subr.bf16.mxu0 0
      %891 = vmatpush1.bf16.msra.mxu0 %v874
      %892 = vmatprep.subr.bf16.mxu0 0
      %893 = vmatpush1.bf16.msra.mxu0 %v875
      %894 = vmatprep.subr.bf16.mxu0 0
      %895 = vmatpush1.bf16.msra.mxu0 %v876
      %896 = vmatprep.subr.bf16.mxu0 0
      %897 = vmatpush1.bf16.msra.mxu0 %v877
      %898 = vmatprep.subr.bf16.mxu0 0
      %899 = vmatpush1.bf16.msra.mxu0 %v878
      %900 = vmatprep.subr.bf16.mxu0 0
      %901 = vmatpush1.bf16.msra.mxu0 %v879
      %902 = vmatprep.subr.bf16.mxu0 0
      %903 = vmatpush1.bf16.msra.mxu0 %v880
      %904 = vmatprep.subr.bf16.mxu0 0
      %905 = vmatpush1.bf16.msra.mxu0 %v881
      %906 = vmatprep.subr.bf16.mxu0 0
      %907 = vmatpush1.bf16.msra.mxu0 0
      %908 = vmatprep.subr.bf16.mxu0 0
      %909 = vmatpush1.bf16.msra.mxu0 0
      %910 = vmatprep.subr.bf16.mxu0 0
      %911 = vmatpush1.bf16.msra.mxu0 0
      %912 = vmatprep.subr.bf16.mxu0 0
      %913 = vmatpush1.bf16.msra.mxu0 0
      %914 = vmatprep.subr.bf16.mxu0 0
      %915 = vmatpush1.bf16.msra.mxu0 0
      %916 = vmatprep.subr.bf16.mxu0 0
      %917 = vmatpush1.bf16.msra.mxu0 0
      %918 = vmatprep.subr.bf16.mxu0 0
      %919 = vmatpush1.bf16.msra.mxu0 0
      %920 = vmatprep.subr.bf16.mxu0 0
      %921 = vmatpush1.bf16.msra.mxu0 0
      %922 = vmatprep.mubr.bf16.mxu0 0
      %923 = vmatmul.mubr.bf16.gmra.mrb[0].mxu0 %v822
      %v924 = vpop.f32.mrb[0].mxu0
      %v925 = vadd.f32 0.0, %v924
      %v926 = vpop.f32.mrb[0].mxu0
      %v927 = vpop.f32.mrb[0].mxu0
      %v928 = vpop.f32.mrb[0].mxu0
      %929 = vmatprep.mubr.bf16.mxu0 0
      %930 = vmatmul.mubr.bf16.gmra.mrb[0].mxu0 %v823
      %v931 = vpop.f32.mrb[0].mxu0
      %v932 = vadd.f32 0.0, %v931
      %v933 = vpop.f32.mrb[0].mxu0
      %v934 = vpop.f32.mrb[0].mxu0
      %v935 = vpop.f32.mrb[0].mxu0
      %936 = vmatprep.mubr.bf16.mxu0 0
      %937 = vmatmul.mubr.bf16.gmra.mrb[0].mxu0 %v824
      %v938 = vpop.f32.mrb[0].mxu0
      %v939 = vadd.f32 0.0, %v938
      %v940 = vpop.f32.mrb[0].mxu0
      %v941 = vpop.f32.mrb[0].mxu0
      %v942 = vpop.f32.mrb[0].mxu0
      %943 = vmatprep.mubr.bf16.mxu0 0
      %944 = vmatmul.mubr.bf16.gmra.mrb[0].mxu0 %v825
      %v945 = vpop.f32.mrb[0].mxu0
      %v946 = vadd.f32 0.0, %v945
      %v947 = vpop.f32.mrb[0].mxu0
      %v948 = vpop.f32.mrb[0].mxu0
      %v949 = vpop.f32.mrb[0].mxu0
      %950 = vmatprep.mubr.bf16.mxu0 0
      %951 = vmatmul.mubr.bf16.gmra.mrb[0].mxu0 %v826
      %v952 = vpop.f32.mrb[0].mxu0
      %v953 = vadd.f32 0.0, %v952
      %v954 = vpop.f32.mrb[0].mxu0
      %v955 = vpop.f32.mrb[0].mxu0
      %v956 = vpop.f32.mrb[0].mxu0
      %957 = vmatprep.mubr.bf16.mxu0 0
      %958 = vmatmul.mubr.bf16.gmra.mrb[0].mxu0 %v827
      %v959 = vpop.f32.mrb[0].mxu0
      %v960 = vadd.f32 0.0, %v959
      %v961 = vpop.f32.mrb[0].mxu0
      %v962 = vpop.f32.mrb[0].mxu0
      %v963 = vpop.f32.mrb[0].mxu0
      %964 = vmatprep.mubr.bf16.mxu0 0
      %965 = vmatmul.mubr.bf16.gmra.mrb[0].mxu0 %v828
      %v966 = vpop.f32.mrb[0].mxu0
      %v967 = vadd.f32 0.0, %v966
      %v968 = vpop.f32.mrb[0].mxu0
      %v969 = vpop.f32.mrb[0].mxu0
      %v970 = vpop.f32.mrb[0].mxu0
      %971 = vmatprep.mubr.bf16.mxu0 0
      %972 = vmatmul.mubr.bf16.gmra.mrb[0].mxu0 %v829
      %v973 = vpop.f32.mrb[0].mxu0
      %v974 = vadd.f32 0.0, %v973
      %v975 = vpop.f32.mrb[0].mxu0
      %v976 = vpop.f32.mrb[0].mxu0
      %v977 = vpop.f32.mrb[0].mxu0
      %978 = vmatprep.mubr.bf16.mxu0 0
      %979 = vmatmul.mubr.bf16.gmra.mrb[0].mxu0 %v830
      %v980 = vpop.f32.mrb[0].mxu0
      %v981 = vadd.f32 0.0, %v980
      %v982 = vpop.f32.mrb[0].mxu0
      %v983 = vpop.f32.mrb[0].mxu0
      %v984 = vpop.f32.mrb[0].mxu0
      %985 = vmatprep.mubr.bf16.mxu0 0
      %986 = vmatmul.mubr.bf16.gmra.mrb[0].mxu0 %v831
      %v987 = vpop.f32.mrb[0].mxu0
      %v988 = vadd.f32 0.0, %v987
      %v989 = vpop.f32.mrb[0].mxu0
      %v990 = vpop.f32.mrb[0].mxu0
      %v991 = vpop.f32.mrb[0].mxu0
      %992 = vdwg.mxu0
      %v993 = vadd.f32 %v659, %v925
      %v994 = vadd.f32 %v666, %v932
      %v995 = vadd.f32 %v673, %v939
      %v996 = vadd.f32 %v680, %v946
      %v997 = vadd.f32 %v687, %v953
      %v998 = vadd.f32 %v694, %v960
      %v999 = vadd.f32 %v701, %v967
      %v1000 = vadd.f32 %v708, %v974
      %v1001 = vadd.f32 %v715, %v981
      %v1002 = vadd.f32 %v722, %v988
      %s1003 = scalar_lea.vmem %s217, 264
      %v1004 = vld [vmem:[%s1003] sm:$0xf]
      %v1005 = vld [vmem:[%s1003 + $0x4] sm:$0xf]
      %v1006 = vld [vmem:[%s1003 + $0x8] sm:$0xf]
      %v1007 = vld [vmem:[%s1003 + $0xc] sm:$0xf]
      %v1008 = vld [vmem:[%s1003 + $0x10] sm:$0xf]
      %v1009 = vld [vmem:[%s1003 + $0x14] sm:$0xf]
      %v1010 = vld [vmem:[%s1003 + $0x18] sm:$0xf]
      %v1011 = vld [vmem:[%s1003 + $0x1c] sm:$0xf]
      %v1012 = vld [vmem:[%s1003 + $0x20] sm:$0xf]
      %v1013 = vld [vmem:[%s1003 + $0x24] sm:$0xf]
      %v1014 = vld [vmem:[%s1003 + $0x28] sm:$0xf]
      %v1015 = vld [vmem:[%s1003 + $0x2c] sm:$0xf]
      %v1016 = vld [vmem:[%s1003 + $0x30] sm:$0xf]
      %v1017 = vld [vmem:[%s1003 + $0x34] sm:$0xf]
      %v1018 = vld [vmem:[%s1003 + $0x38] sm:$0xf]
      %v1019 = vld [vmem:[%s1003 + $0x3c] sm:$0xf]
      %v1020 = vld [vmem:[%s1003 + $0x40] sm:$0xf]
      %v1021 = vld [vmem:[%s1003 + $0x44] sm:$0xf]
      %v1022 = vld [vmem:[%s1003 + $0x48] sm:$0xf]
      %v1023 = vld [vmem:[%s1003 + $0x4c] sm:$0xf]
      %s1024 = scalar_lea.vmem %s1, 256
      %v1025 = vld [vmem:[%s1024] sm:$0xf]
      %v1026 = vld [vmem:[%s1024 + $0x4] sm:$0xf]
      %v1027 = vld [vmem:[%s1024 + $0x8] sm:$0xf]
      %v1028 = vld [vmem:[%s1024 + $0xc] sm:$0xf]
      %v1029 = vld [vmem:[%s1024 + $0x10] sm:$0xf]
      %v1030 = vld [vmem:[%s1024 + $0x14] sm:$0xf]
      %v1031 = vld [vmem:[%s1024 + $0x18] sm:$0xf]
      %v1032 = vld [vmem:[%s1024 + $0x1c] sm:$0xf]
      %v1033 = vld [vmem:[%s1024 + $0x20] sm:$0xf]
      %v1034 = vld [vmem:[%s1024 + $0x24] sm:$0xf]
      %v1035 = vld [vmem:[%s1024 + $0x28] sm:$0xf]
      %v1036 = vld [vmem:[%s1024 + $0x2c] sm:$0xf]
      %v1037 = vld [vmem:[%s1024 + $0x30] sm:$0xf]
      %v1038 = vld [vmem:[%s1024 + $0x34] sm:$0xf]
      %v1039 = vld [vmem:[%s1024 + $0x38] sm:$0xf]
      %v1040 = vld [vmem:[%s1024 + $0x3c] sm:$0xf]
      %v1061 = vunpack.c.l.b16 %v1004
      %v1062 = vunpack.c.l.b16 %v1005
      %v1063 = vunpack.c.l.b16 %v1006
      %v1064 = vunpack.c.l.b16 %v1007
      %v1065 = vunpack.c.l.b16 %v1008
      %v1066 = vunpack.c.l.b16 %v1009
      %v1067 = vunpack.c.l.b16 %v1010
      %v1068 = vunpack.c.l.b16 %v1011
      %v1069 = vunpack.c.l.b16 %v1012
      %v1070 = vunpack.c.l.b16 %v1013
      %v1071 = vunpack.c.l.b16 %v1014
      %v1072 = vunpack.c.l.b16 %v1015
      %v1073 = vunpack.c.l.b16 %v1016
      %v1074 = vunpack.c.l.b16 %v1017
      %v1075 = vunpack.c.l.b16 %v1018
      %v1076 = vunpack.c.l.b16 %v1019
      %v1077 = vunpack.c.l.b16 %v1020
      %v1078 = vunpack.c.l.b16 %v1021
      %v1079 = vunpack.c.l.b16 %v1022
      %v1080 = vunpack.c.l.b16 %v1023
      %v1081 = vpack.c.b16 %v1062, %v1061
      %v1082 = vpack.c.b16 %v1064, %v1063
      %v1083 = vpack.c.b16 %v1066, %v1065
      %v1084 = vpack.c.b16 %v1068, %v1067
      %v1085 = vpack.c.b16 %v1070, %v1069
      %v1086 = vpack.c.b16 %v1072, %v1071
      %v1087 = vpack.c.b16 %v1074, %v1073
      %v1088 = vpack.c.b16 %v1076, %v1075
      %v1089 = vpack.c.b16 %v1078, %v1077
      %v1090 = vpack.c.b16 %v1080, %v1079
      %v1117 = vunpack.c.l.b16 %v1025
      %v1118 = vunpack.c.l.b16 %v1026
      %v1119 = vunpack.c.l.b16 %v1027
      %v1120 = vunpack.c.l.b16 %v1028
      %v1121 = vunpack.c.l.b16 %v1029
      %v1122 = vunpack.c.l.b16 %v1030
      %v1123 = vunpack.c.l.b16 %v1031
      %v1124 = vunpack.c.l.b16 %v1032
      %v1125 = vunpack.c.l.b16 %v1033
      %v1126 = vunpack.c.l.b16 %v1034
      %v1127 = vunpack.c.l.b16 %v1035
      %v1128 = vunpack.c.l.b16 %v1036
      %v1129 = vunpack.c.l.b16 %v1037
      %v1130 = vunpack.c.l.b16 %v1038
      %v1131 = vunpack.c.l.b16 %v1039
      %v1132 = vunpack.c.l.b16 %v1040
      %v1133 = vpack.c.b16 %v1118, %v1117
      %v1134 = vpack.c.b16 %v1120, %v1119
      %v1135 = vpack.c.b16 %v1122, %v1121
      %v1136 = vpack.c.b16 %v1124, %v1123
      %v1137 = vpack.c.b16 %v1126, %v1125
      %v1138 = vpack.c.b16 %v1128, %v1127
      %v1139 = vpack.c.b16 %v1130, %v1129
      %v1140 = vpack.c.b16 %v1132, %v1131
      %1149 = vmatprep.subr.bf16.mxu0 0
      %1150 = vmatpush1.bf16.msra.mxu0 %v1133
      %1151 = vmatprep.subr.bf16.mxu0 0
      %1152 = vmatpush1.bf16.msra.mxu0 %v1134
      %1153 = vmatprep.subr.bf16.mxu0 0
      %1154 = vmatpush1.bf16.msra.mxu0 %v1135
      %1155 = vmatprep.subr.bf16.mxu0 0
      %1156 = vmatpush1.bf16.msra.mxu0 %v1136
      %1157 = vmatprep.subr.bf16.mxu0 0
      %1158 = vmatpush1.bf16.msra.mxu0 %v1137
      %1159 = vmatprep.subr.bf16.mxu0 0
      %1160 = vmatpush1.bf16.msra.mxu0 %v1138
      %1161 = vmatprep.subr.bf16.mxu0 0
      %1162 = vmatpush1.bf16.msra.mxu0 %v1139
      %1163 = vmatprep.subr.bf16.mxu0 0
      %1164 = vmatpush1.bf16.msra.mxu0 %v1140
      %1165 = vmatprep.subr.bf16.mxu0 0
      %1166 = vmatpush1.bf16.msra.mxu0 0
      %1167 = vmatprep.subr.bf16.mxu0 0
      %1168 = vmatpush1.bf16.msra.mxu0 0
      %1169 = vmatprep.subr.bf16.mxu0 0
      %1170 = vmatpush1.bf16.msra.mxu0 0
      %1171 = vmatprep.subr.bf16.mxu0 0
      %1172 = vmatpush1.bf16.msra.mxu0 0
      %1173 = vmatprep.subr.bf16.mxu0 0
      %1174 = vmatpush1.bf16.msra.mxu0 0
      %1175 = vmatprep.subr.bf16.mxu0 0
      %1176 = vmatpush1.bf16.msra.mxu0 0
      %1177 = vmatprep.subr.bf16.mxu0 0
      %1178 = vmatpush1.bf16.msra.mxu0 0
      %1179 = vmatprep.subr.bf16.mxu0 0
      %1180 = vmatpush1.bf16.msra.mxu0 0
      %1181 = vmatprep.mubr.bf16.mxu0 0
      %1182 = vmatmul.mubr.bf16.gmra.mrb[0].mxu0 %v1081
      %v1183 = vpop.f32.mrb[0].mxu0
      %v1184 = vadd.f32 0.0, %v1183
      %v1185 = vpop.f32.mrb[0].mxu0
      %v1186 = vpop.f32.mrb[0].mxu0
      %v1187 = vpop.f32.mrb[0].mxu0
      %1188 = vmatprep.mubr.bf16.mxu0 0
      %1189 = vmatmul.mubr.bf16.gmra.mrb[0].mxu0 %v1082
      %v1190 = vpop.f32.mrb[0].mxu0
      %v1191 = vadd.f32 0.0, %v1190
      %v1192 = vpop.f32.mrb[0].mxu0
      %v1193 = vpop.f32.mrb[0].mxu0
      %v1194 = vpop.f32.mrb[0].mxu0
      %1195 = vmatprep.mubr.bf16.mxu0 0
      %1196 = vmatmul.mubr.bf16.gmra.mrb[0].mxu0 %v1083
      %v1197 = vpop.f32.mrb[0].mxu0
      %v1198 = vadd.f32 0.0, %v1197
      %v1199 = vpop.f32.mrb[0].mxu0
      %v1200 = vpop.f32.mrb[0].mxu0
      %v1201 = vpop.f32.mrb[0].mxu0
      %1202 = vmatprep.mubr.bf16.mxu0 0
      %1203 = vmatmul.mubr.bf16.gmra.mrb[0].mxu0 %v1084
      %v1204 = vpop.f32.mrb[0].mxu0
      %v1205 = vadd.f32 0.0, %v1204
      %v1206 = vpop.f32.mrb[0].mxu0
      %v1207 = vpop.f32.mrb[0].mxu0
      %v1208 = vpop.f32.mrb[0].mxu0
      %1209 = vmatprep.mubr.bf16.mxu0 0
      %1210 = vmatmul.mubr.bf16.gmra.mrb[0].mxu0 %v1085
      %v1211 = vpop.f32.mrb[0].mxu0
      %v1212 = vadd.f32 0.0, %v1211
      %v1213 = vpop.f32.mrb[0].mxu0
      %v1214 = vpop.f32.mrb[0].mxu0
      %v1215 = vpop.f32.mrb[0].mxu0
      %1216 = vmatprep.mubr.bf16.mxu0 0
      %1217 = vmatmul.mubr.bf16.gmra.mrb[0].mxu0 %v1086
      %v1218 = vpop.f32.mrb[0].mxu0
      %v1219 = vadd.f32 0.0, %v1218
      %v1220 = vpop.f32.mrb[0].mxu0
      %v1221 = vpop.f32.mrb[0].mxu0
      %v1222 = vpop.f32.mrb[0].mxu0
      %1223 = vmatprep.mubr.bf16.mxu0 0
      %1224 = vmatmul.mubr.bf16.gmra.mrb[0].mxu0 %v1087
      %v1225 = vpop.f32.mrb[0].mxu0
      %v1226 = vadd.f32 0.0, %v1225
      %v1227 = vpop.f32.mrb[0].mxu0
      %v1228 = vpop.f32.mrb[0].mxu0
      %v1229 = vpop.f32.mrb[0].mxu0
      %1230 = vmatprep.mubr.bf16.mxu0 0
      %1231 = vmatmul.mubr.bf16.gmra.mrb[0].mxu0 %v1088
      %v1232 = vpop.f32.mrb[0].mxu0
      %v1233 = vadd.f32 0.0, %v1232
      %v1234 = vpop.f32.mrb[0].mxu0
      %v1235 = vpop.f32.mrb[0].mxu0
      %v1236 = vpop.f32.mrb[0].mxu0
      %1237 = vmatprep.mubr.bf16.mxu0 0
      %1238 = vmatmul.mubr.bf16.gmra.mrb[0].mxu0 %v1089
      %v1239 = vpop.f32.mrb[0].mxu0
      %v1240 = vadd.f32 0.0, %v1239
      %v1241 = vpop.f32.mrb[0].mxu0
      %v1242 = vpop.f32.mrb[0].mxu0
      %v1243 = vpop.f32.mrb[0].mxu0
      %1244 = vmatprep.mubr.bf16.mxu0 0
      %1245 = vmatmul.mubr.bf16.gmra.mrb[0].mxu0 %v1090
      %v1246 = vpop.f32.mrb[0].mxu0
      %v1247 = vadd.f32 0.0, %v1246
      %v1248 = vpop.f32.mrb[0].mxu0
      %v1249 = vpop.f32.mrb[0].mxu0
      %v1250 = vpop.f32.mrb[0].mxu0
      %1251 = vdwg.mxu0
      %v1252 = vadd.f32 %v993, %v1184
      %v1253 = vadd.f32 %v994, %v1191
      %v1254 = vadd.f32 %v995, %v1198
      %v1255 = vadd.f32 %v996, %v1205
      %v1256 = vadd.f32 %v997, %v1212
      %v1257 = vadd.f32 %v998, %v1219
      %v1258 = vadd.f32 %v999, %v1226
      %v1259 = vadd.f32 %v1000, %v1233
      %v1260 = vadd.f32 %v1001, %v1240
      %v1261 = vadd.f32 %v1002, %v1247
      %s1262 = scalar_lea.vmem %s1, 320
      %v1263 = vld [vmem:[%s1262] sm:$0xf]
      %v1264 = vld [vmem:[%s1262 + $0x4] sm:$0xf]
      %v1265 = vld [vmem:[%s1262 + $0x8] sm:$0xf]
      %v1266 = vld [vmem:[%s1262 + $0xc] sm:$0xf]
      %v1267 = vld [vmem:[%s1262 + $0x10] sm:$0xf]
      %v1268 = vld [vmem:[%s1262 + $0x14] sm:$0xf]
      %v1269 = vld [vmem:[%s1262 + $0x18] sm:$0xf]
      %v1270 = vld [vmem:[%s1262 + $0x1c] sm:$0xf]
      %v1271 = vld [vmem:[%s1262 + $0x20] sm:$0xf]
      %v1272 = vld [vmem:[%s1262 + $0x24] sm:$0xf]
      %v1273 = vld [vmem:[%s1262 + $0x28] sm:$0xf]
      %v1274 = vld [vmem:[%s1262 + $0x2c] sm:$0xf]
      %v1275 = vld [vmem:[%s1262 + $0x30] sm:$0xf]
      %v1276 = vld [vmem:[%s1262 + $0x34] sm:$0xf]
      %v1277 = vld [vmem:[%s1262 + $0x38] sm:$0xf]
      %v1278 = vld [vmem:[%s1262 + $0x3c] sm:$0xf]
      %v1295 = vunpack.c.l.b16 %v1263
      %v1296 = vunpack.c.l.b16 %v1264
      %v1297 = vunpack.c.l.b16 %v1265
      %v1298 = vunpack.c.l.b16 %v1266
      %v1299 = vunpack.c.l.b16 %v1267
      %v1300 = vunpack.c.l.b16 %v1268
      %v1301 = vunpack.c.l.b16 %v1269
      %v1302 = vunpack.c.l.b16 %v1270
      %v1303 = vunpack.c.l.b16 %v1271
      %v1304 = vunpack.c.l.b16 %v1272
      %v1305 = vunpack.c.l.b16 %v1273
      %v1306 = vunpack.c.l.b16 %v1274
      %v1307 = vunpack.c.l.b16 %v1275
      %v1308 = vunpack.c.l.b16 %v1276
      %v1309 = vunpack.c.l.b16 %v1277
      %v1310 = vunpack.c.l.b16 %v1278
      %v1311 = vpack.c.b16 %v1296, %v1295
      %v1312 = vpack.c.b16 %v1298, %v1297
      %v1313 = vpack.c.b16 %v1300, %v1299
      %v1314 = vpack.c.b16 %v1302, %v1301
      %v1315 = vpack.c.b16 %v1304, %v1303
      %v1316 = vpack.c.b16 %v1306, %v1305
      %v1317 = vpack.c.b16 %v1308, %v1307
      %v1318 = vpack.c.b16 %v1310, %v1309
      %1327 = vmatprep.subr.bf16.mxu0 0
      %1328 = vmatpush1.bf16.msra.mxu0 %v1311
      %1329 = vmatprep.subr.bf16.mxu0 0
      %1330 = vmatpush1.bf16.msra.mxu0 %v1312
      %1331 = vmatprep.subr.bf16.mxu0 0
      %1332 = vmatpush1.bf16.msra.mxu0 %v1313
      %1333 = vmatprep.subr.bf16.mxu0 0
      %1334 = vmatpush1.bf16.msra.mxu0 %v1314
      %1335 = vmatprep.subr.bf16.mxu0 0
      %1336 = vmatpush1.bf16.msra.mxu0 %v1315
      %1337 = vmatprep.subr.bf16.mxu0 0
      %1338 = vmatpush1.bf16.msra.mxu0 %v1316
      %1339 = vmatprep.subr.bf16.mxu0 0
      %1340 = vmatpush1.bf16.msra.mxu0 %v1317
      %1341 = vmatprep.subr.bf16.mxu0 0
      %1342 = vmatpush1.bf16.msra.mxu0 %v1318
      %1343 = vmatprep.subr.bf16.mxu0 0
      %1344 = vmatpush1.bf16.msra.mxu0 0
      %1345 = vmatprep.subr.bf16.mxu0 0
      %1346 = vmatpush1.bf16.msra.mxu0 0
      %1347 = vmatprep.subr.bf16.mxu0 0
      %1348 = vmatpush1.bf16.msra.mxu0 0
      %1349 = vmatprep.subr.bf16.mxu0 0
      %1350 = vmatpush1.bf16.msra.mxu0 0
      %1351 = vmatprep.subr.bf16.mxu0 0
      %1352 = vmatpush1.bf16.msra.mxu0 0
      %1353 = vmatprep.subr.bf16.mxu0 0
      %1354 = vmatpush1.bf16.msra.mxu0 0
      %1355 = vmatprep.subr.bf16.mxu0 0
      %1356 = vmatpush1.bf16.msra.mxu0 0
      %1357 = vmatprep.subr.bf16.mxu0 0
      %1358 = vmatpush1.bf16.msra.mxu0 0
      %1359 = vmatprep.mubr.bf16.mxu0 0
      %1360 = vmatmul.mubr.bf16.gmra.mrb[0].mxu0 %v822
      %v1361 = vpop.f32.mrb[0].mxu0
      %v1362 = vadd.f32 0.0, %v1361
      %v1363 = vpop.f32.mrb[0].mxu0
      %v1364 = vpop.f32.mrb[0].mxu0
      %v1365 = vadd.f32 0.0, %v1364
      %v1366 = vpop.f32.mrb[0].mxu0
      %1367 = vmatprep.mubr.bf16.mxu0 0
      %1368 = vmatmul.mubr.bf16.gmra.mrb[0].mxu0 %v823
      %v1369 = vpop.f32.mrb[0].mxu0
      %v1370 = vadd.f32 0.0, %v1369
      %v1371 = vpop.f32.mrb[0].mxu0
      %v1372 = vpop.f32.mrb[0].mxu0
      %v1373 = vadd.f32 0.0, %v1372
      %v1374 = vpop.f32.mrb[0].mxu0
      %1375 = vmatprep.mubr.bf16.mxu0 0
      %1376 = vmatmul.mubr.bf16.gmra.mrb[0].mxu0 %v824
      %v1377 = vpop.f32.mrb[0].mxu0
      %v1378 = vadd.f32 0.0, %v1377
      %v1379 = vpop.f32.mrb[0].mxu0
      %v1380 = vpop.f32.mrb[0].mxu0
      %v1381 = vadd.f32 0.0, %v1380
      %v1382 = vpop.f32.mrb[0].mxu0
      %1383 = vmatprep.mubr.bf16.mxu0 0
      %1384 = vmatmul.mubr.bf16.gmra.mrb[0].mxu0 %v825
      %v1385 = vpop.f32.mrb[0].mxu0
      %v1386 = vadd.f32 0.0, %v1385
      %v1387 = vpop.f32.mrb[0].mxu0
      %v1388 = vpop.f32.mrb[0].mxu0
      %v1389 = vadd.f32 0.0, %v1388
      %v1390 = vpop.f32.mrb[0].mxu0
      %1391 = vmatprep.mubr.bf16.mxu0 0
      %1392 = vmatmul.mubr.bf16.gmra.mrb[0].mxu0 %v826
      %v1393 = vpop.f32.mrb[0].mxu0
      %v1394 = vadd.f32 0.0, %v1393
      %v1395 = vpop.f32.mrb[0].mxu0
      %v1396 = vpop.f32.mrb[0].mxu0
      %v1397 = vadd.f32 0.0, %v1396
      %v1398 = vpop.f32.mrb[0].mxu0
      %1399 = vmatprep.mubr.bf16.mxu0 0
      %1400 = vmatmul.mubr.bf16.gmra.mrb[0].mxu0 %v827
      %v1401 = vpop.f32.mrb[0].mxu0
      %v1402 = vadd.f32 0.0, %v1401
      %v1403 = vpop.f32.mrb[0].mxu0
      %v1404 = vpop.f32.mrb[0].mxu0
      %v1405 = vadd.f32 0.0, %v1404
      %v1406 = vpop.f32.mrb[0].mxu0
      %1407 = vmatprep.mubr.bf16.mxu0 0
      %1408 = vmatmul.mubr.bf16.gmra.mrb[0].mxu0 %v828
      %v1409 = vpop.f32.mrb[0].mxu0
      %v1410 = vadd.f32 0.0, %v1409
      %v1411 = vpop.f32.mrb[0].mxu0
      %v1412 = vpop.f32.mrb[0].mxu0
      %v1413 = vadd.f32 0.0, %v1412
      %v1414 = vpop.f32.mrb[0].mxu0
      %1415 = vmatprep.mubr.bf16.mxu0 0
      %1416 = vmatmul.mubr.bf16.gmra.mrb[0].mxu0 %v829
      %v1417 = vpop.f32.mrb[0].mxu0
      %v1418 = vadd.f32 0.0, %v1417
      %v1419 = vpop.f32.mrb[0].mxu0
      %v1420 = vpop.f32.mrb[0].mxu0
      %v1421 = vadd.f32 0.0, %v1420
      %v1422 = vpop.f32.mrb[0].mxu0
      %1423 = vmatprep.mubr.bf16.mxu0 0
      %1424 = vmatmul.mubr.bf16.gmra.mrb[0].mxu0 %v830
      %v1425 = vpop.f32.mrb[0].mxu0
      %v1426 = vadd.f32 0.0, %v1425
      %v1427 = vpop.f32.mrb[0].mxu0
      %v1428 = vpop.f32.mrb[0].mxu0
      %v1429 = vadd.f32 0.0, %v1428
      %v1430 = vpop.f32.mrb[0].mxu0
      %1431 = vmatprep.mubr.bf16.mxu0 0
      %1432 = vmatmul.mubr.bf16.gmra.mrb[0].mxu0 %v831
      %v1433 = vpop.f32.mrb[0].mxu0
      %v1434 = vadd.f32 0.0, %v1433
      %v1435 = vpop.f32.mrb[0].mxu0
      %v1436 = vpop.f32.mrb[0].mxu0
      %v1437 = vadd.f32 0.0, %v1436
      %v1438 = vpop.f32.mrb[0].mxu0
      %1439 = vdwg.mxu0
      %v1456 = vunpack.c.l.b16 %v728
      %v1457 = vunpack.c.l.b16 %v729
      %v1458 = vunpack.c.l.b16 %v730
      %v1459 = vunpack.c.l.b16 %v731
      %v1460 = vunpack.c.l.b16 %v732
      %v1461 = vunpack.c.l.b16 %v733
      %v1462 = vunpack.c.l.b16 %v734
      %v1463 = vunpack.c.l.b16 %v735
      %v1464 = vunpack.c.l.b16 %v736
      %v1465 = vunpack.c.l.b16 %v737
      %v1466 = vunpack.c.l.b16 %v738
      %v1467 = vunpack.c.l.b16 %v739
      %v1468 = vunpack.c.l.b16 %v740
      %v1469 = vunpack.c.l.b16 %v741
      %v1470 = vunpack.c.l.b16 %v742
      %v1471 = vunpack.c.l.b16 %v743
      %v1472 = vpack.c.b16 %v1457, %v1456
      %v1473 = vpack.c.b16 %v1459, %v1458
      %v1474 = vpack.c.b16 %v1461, %v1460
      %v1475 = vpack.c.b16 %v1463, %v1462
      %v1476 = vpack.c.b16 %v1465, %v1464
      %v1477 = vpack.c.b16 %v1467, %v1466
      %v1478 = vpack.c.b16 %v1469, %v1468
      %v1479 = vpack.c.b16 %v1471, %v1470
      %1488 = vmatprep.subr.bf16.mxu0 0
      %1489 = vmatpush1.bf16.msra.mxu0 %v1472
      %1490 = vmatprep.subr.bf16.mxu0 0
      %1491 = vmatpush1.bf16.msra.mxu0 %v1473
      %1492 = vmatprep.subr.bf16.mxu0 0
      %1493 = vmatpush1.bf16.msra.mxu0 %v1474
      %1494 = vmatprep.subr.bf16.mxu0 0
      %1495 = vmatpush1.bf16.msra.mxu0 %v1475
      %1496 = vmatprep.subr.bf16.mxu0 0
      %1497 = vmatpush1.bf16.msra.mxu0 %v1476
      %1498 = vmatprep.subr.bf16.mxu0 0
      %1499 = vmatpush1.bf16.msra.mxu0 %v1477
      %1500 = vmatprep.subr.bf16.mxu0 0
      %1501 = vmatpush1.bf16.msra.mxu0 %v1478
      %1502 = vmatprep.subr.bf16.mxu0 0
      %1503 = vmatpush1.bf16.msra.mxu0 %v1479
      %1504 = vmatprep.subr.bf16.mxu0 0
      %1505 = vmatpush1.bf16.msra.mxu0 0
      %1506 = vmatprep.subr.bf16.mxu0 0
      %1507 = vmatpush1.bf16.msra.mxu0 0
      %1508 = vmatprep.subr.bf16.mxu0 0
      %1509 = vmatpush1.bf16.msra.mxu0 0
      %1510 = vmatprep.subr.bf16.mxu0 0
      %1511 = vmatpush1.bf16.msra.mxu0 0
      %1512 = vmatprep.subr.bf16.mxu0 0
      %1513 = vmatpush1.bf16.msra.mxu0 0
      %1514 = vmatprep.subr.bf16.mxu0 0
      %1515 = vmatpush1.bf16.msra.mxu0 0
      %1516 = vmatprep.subr.bf16.mxu0 0
      %1517 = vmatpush1.bf16.msra.mxu0 0
      %1518 = vmatprep.subr.bf16.mxu0 0
      %1519 = vmatpush1.bf16.msra.mxu0 0
      %1520 = vmatprep.mubr.bf16.mxu0 0
      %1521 = vmatmul.mubr.bf16.gmra.mrb[0].mxu0 %v556
      %v1522 = vpop.f32.mrb[0].mxu0
      %v1523 = vadd.f32 %v1362, %v1522
      %v1524 = vpop.f32.mrb[0].mxu0
      %v1525 = vpop.f32.mrb[0].mxu0
      %v1526 = vadd.f32 %v1365, %v1525
      %v1527 = vpop.f32.mrb[0].mxu0
      %1528 = vmatprep.mubr.bf16.mxu0 0
      %1529 = vmatmul.mubr.bf16.gmra.mrb[0].mxu0 %v557
      %v1530 = vpop.f32.mrb[0].mxu0
      %v1531 = vadd.f32 %v1370, %v1530
      %v1532 = vpop.f32.mrb[0].mxu0
      %v1533 = vpop.f32.mrb[0].mxu0
      %v1534 = vadd.f32 %v1373, %v1533
      %v1535 = vpop.f32.mrb[0].mxu0
      %1536 = vmatprep.mubr.bf16.mxu0 0
      %1537 = vmatmul.mubr.bf16.gmra.mrb[0].mxu0 %v558
      %v1538 = vpop.f32.mrb[0].mxu0
      %v1539 = vadd.f32 %v1378, %v1538
      %v1540 = vpop.f32.mrb[0].mxu0
      %v1541 = vpop.f32.mrb[0].mxu0
      %v1542 = vadd.f32 %v1381, %v1541
      %v1543 = vpop.f32.mrb[0].mxu0
      %1544 = vmatprep.mubr.bf16.mxu0 0
      %1545 = vmatmul.mubr.bf16.gmra.mrb[0].mxu0 %v559
      %v1546 = vpop.f32.mrb[0].mxu0
      %v1547 = vadd.f32 %v1386, %v1546
      %v1548 = vpop.f32.mrb[0].mxu0
      %v1549 = vpop.f32.mrb[0].mxu0
      %v1550 = vadd.f32 %v1389, %v1549
      %v1551 = vpop.f32.mrb[0].mxu0
      %1552 = vmatprep.mubr.bf16.mxu0 0
      %1553 = vmatmul.mubr.bf16.gmra.mrb[0].mxu0 %v560
      %v1554 = vpop.f32.mrb[0].mxu0
      %v1555 = vadd.f32 %v1394, %v1554
      %v1556 = vpop.f32.mrb[0].mxu0
      %v1557 = vpop.f32.mrb[0].mxu0
      %v1558 = vadd.f32 %v1397, %v1557
      %v1559 = vpop.f32.mrb[0].mxu0
      %1560 = vmatprep.mubr.bf16.mxu0 0
      %1561 = vmatmul.mubr.bf16.gmra.mrb[0].mxu0 %v561
      %v1562 = vpop.f32.mrb[0].mxu0
      %v1563 = vadd.f32 %v1402, %v1562
      %v1564 = vpop.f32.mrb[0].mxu0
      %v1565 = vpop.f32.mrb[0].mxu0
      %v1566 = vadd.f32 %v1405, %v1565
      %v1567 = vpop.f32.mrb[0].mxu0
      %1568 = vmatprep.mubr.bf16.mxu0 0
      %1569 = vmatmul.mubr.bf16.gmra.mrb[0].mxu0 %v562
      %v1570 = vpop.f32.mrb[0].mxu0
      %v1571 = vadd.f32 %v1410, %v1570
      %v1572 = vpop.f32.mrb[0].mxu0
      %v1573 = vpop.f32.mrb[0].mxu0
      %v1574 = vadd.f32 %v1413, %v1573
      %v1575 = vpop.f32.mrb[0].mxu0
      %1576 = vmatprep.mubr.bf16.mxu0 0
      %1577 = vmatmul.mubr.bf16.gmra.mrb[0].mxu0 %v563
      %v1578 = vpop.f32.mrb[0].mxu0
      %v1579 = vadd.f32 %v1418, %v1578
      %v1580 = vpop.f32.mrb[0].mxu0
      %v1581 = vpop.f32.mrb[0].mxu0
      %v1582 = vadd.f32 %v1421, %v1581
      %v1583 = vpop.f32.mrb[0].mxu0
      %1584 = vmatprep.mubr.bf16.mxu0 0
      %1585 = vmatmul.mubr.bf16.gmra.mrb[0].mxu0 %v564
      %v1586 = vpop.f32.mrb[0].mxu0
      %v1587 = vadd.f32 %v1426, %v1586
      %v1588 = vpop.f32.mrb[0].mxu0
      %v1589 = vpop.f32.mrb[0].mxu0
      %v1590 = vadd.f32 %v1429, %v1589
      %v1591 = vpop.f32.mrb[0].mxu0
      %1592 = vmatprep.mubr.bf16.mxu0 0
      %1593 = vmatmul.mubr.bf16.gmra.mrb[0].mxu0 %v565
      %v1594 = vpop.f32.mrb[0].mxu0
      %v1595 = vadd.f32 %v1434, %v1594
      %v1596 = vpop.f32.mrb[0].mxu0
      %v1597 = vpop.f32.mrb[0].mxu0
      %v1598 = vadd.f32 %v1437, %v1597
      %v1599 = vpop.f32.mrb[0].mxu0
      %1600 = vdwg.mxu0
      %s1601 = scalar_lea.vmem %s217, 8
      %v1602 = vld [vmem:[%s1601] sm:$0xf]
      %v1603 = vld [vmem:[%s1601 + $0x4] sm:$0xf]
      %v1604 = vld [vmem:[%s1601 + $0x8] sm:$0xf]
      %v1605 = vld [vmem:[%s1601 + $0xc] sm:$0xf]
      %v1606 = vld [vmem:[%s1601 + $0x10] sm:$0xf]
      %v1607 = vld [vmem:[%s1601 + $0x14] sm:$0xf]
      %v1608 = vld [vmem:[%s1601 + $0x18] sm:$0xf]
      %v1609 = vld [vmem:[%s1601 + $0x1c] sm:$0xf]
      %v1610 = vld [vmem:[%s1601 + $0x20] sm:$0xf]
      %v1611 = vld [vmem:[%s1601 + $0x24] sm:$0xf]
      %v1612 = vld [vmem:[%s1601 + $0x28] sm:$0xf]
      %v1613 = vld [vmem:[%s1601 + $0x2c] sm:$0xf]
      %v1614 = vld [vmem:[%s1601 + $0x30] sm:$0xf]
      %v1615 = vld [vmem:[%s1601 + $0x34] sm:$0xf]
      %v1616 = vld [vmem:[%s1601 + $0x38] sm:$0xf]
      %v1617 = vld [vmem:[%s1601 + $0x3c] sm:$0xf]
      %v1618 = vld [vmem:[%s1601 + $0x40] sm:$0xf]
      %v1619 = vld [vmem:[%s1601 + $0x44] sm:$0xf]
      %v1620 = vld [vmem:[%s1601 + $0x48] sm:$0xf]
      %v1621 = vld [vmem:[%s1601 + $0x4c] sm:$0xf]
      %s1622 = scalar_lea.vmem %s1, 384
      %v1623 = vld [vmem:[%s1622] sm:$0xf]
      %v1624 = vld [vmem:[%s1622 + $0x4] sm:$0xf]
      %v1625 = vld [vmem:[%s1622 + $0x8] sm:$0xf]
      %v1626 = vld [vmem:[%s1622 + $0xc] sm:$0xf]
      %v1627 = vld [vmem:[%s1622 + $0x10] sm:$0xf]
      %v1628 = vld [vmem:[%s1622 + $0x14] sm:$0xf]
      %v1629 = vld [vmem:[%s1622 + $0x18] sm:$0xf]
      %v1630 = vld [vmem:[%s1622 + $0x1c] sm:$0xf]
      %v1631 = vld [vmem:[%s1622 + $0x20] sm:$0xf]
      %v1632 = vld [vmem:[%s1622 + $0x24] sm:$0xf]
      %v1633 = vld [vmem:[%s1622 + $0x28] sm:$0xf]
      %v1634 = vld [vmem:[%s1622 + $0x2c] sm:$0xf]
      %v1635 = vld [vmem:[%s1622 + $0x30] sm:$0xf]
      %v1636 = vld [vmem:[%s1622 + $0x34] sm:$0xf]
      %v1637 = vld [vmem:[%s1622 + $0x38] sm:$0xf]
      %v1638 = vld [vmem:[%s1622 + $0x3c] sm:$0xf]
      %v1659 = vunpack.c.l.b16 %v1602
      %v1660 = vunpack.c.l.b16 %v1603
      %v1661 = vunpack.c.l.b16 %v1604
      %v1662 = vunpack.c.l.b16 %v1605
      %v1663 = vunpack.c.l.b16 %v1606
      %v1664 = vunpack.c.l.b16 %v1607
      %v1665 = vunpack.c.l.b16 %v1608
      %v1666 = vunpack.c.l.b16 %v1609
      %v1667 = vunpack.c.l.b16 %v1610
      %v1668 = vunpack.c.l.b16 %v1611
      %v1669 = vunpack.c.l.b16 %v1612
      %v1670 = vunpack.c.l.b16 %v1613
      %v1671 = vunpack.c.l.b16 %v1614
      %v1672 = vunpack.c.l.b16 %v1615
      %v1673 = vunpack.c.l.b16 %v1616
      %v1674 = vunpack.c.l.b16 %v1617
      %v1675 = vunpack.c.l.b16 %v1618
      %v1676 = vunpack.c.l.b16 %v1619
      %v1677 = vunpack.c.l.b16 %v1620
      %v1678 = vunpack.c.l.b16 %v1621
      %v1679 = vpack.c.b16 %v1660, %v1659
      %v1680 = vpack.c.b16 %v1662, %v1661
      %v1681 = vpack.c.b16 %v1664, %v1663
      %v1682 = vpack.c.b16 %v1666, %v1665
      %v1683 = vpack.c.b16 %v1668, %v1667
      %v1684 = vpack.c.b16 %v1670, %v1669
      %v1685 = vpack.c.b16 %v1672, %v1671
      %v1686 = vpack.c.b16 %v1674, %v1673
      %v1687 = vpack.c.b16 %v1676, %v1675
      %v1688 = vpack.c.b16 %v1678, %v1677
      %v1715 = vunpack.c.l.b16 %v1623
      %v1716 = vunpack.c.l.b16 %v1624
      %v1717 = vunpack.c.l.b16 %v1625
      %v1718 = vunpack.c.l.b16 %v1626
      %v1719 = vunpack.c.l.b16 %v1627
      %v1720 = vunpack.c.l.b16 %v1628
      %v1721 = vunpack.c.l.b16 %v1629
      %v1722 = vunpack.c.l.b16 %v1630
      %v1723 = vunpack.c.l.b16 %v1631
      %v1724 = vunpack.c.l.b16 %v1632
      %v1725 = vunpack.c.l.b16 %v1633
      %v1726 = vunpack.c.l.b16 %v1634
      %v1727 = vunpack.c.l.b16 %v1635
      %v1728 = vunpack.c.l.b16 %v1636
      %v1729 = vunpack.c.l.b16 %v1637
      %v1730 = vunpack.c.l.b16 %v1638
      %v1731 = vpack.c.b16 %v1716, %v1715
      %v1732 = vpack.c.b16 %v1718, %v1717
      %v1733 = vpack.c.b16 %v1720, %v1719
      %v1734 = vpack.c.b16 %v1722, %v1721
      %v1735 = vpack.c.b16 %v1724, %v1723
      %v1736 = vpack.c.b16 %v1726, %v1725
      %v1737 = vpack.c.b16 %v1728, %v1727
      %v1738 = vpack.c.b16 %v1730, %v1729
      %1747 = vmatprep.subr.bf16.mxu0 0
      %1748 = vmatpush1.bf16.msra.mxu0 %v1731
      %1749 = vmatprep.subr.bf16.mxu0 0
      %1750 = vmatpush1.bf16.msra.mxu0 %v1732
      %1751 = vmatprep.subr.bf16.mxu0 0
      %1752 = vmatpush1.bf16.msra.mxu0 %v1733
      %1753 = vmatprep.subr.bf16.mxu0 0
      %1754 = vmatpush1.bf16.msra.mxu0 %v1734
      %1755 = vmatprep.subr.bf16.mxu0 0
      %1756 = vmatpush1.bf16.msra.mxu0 %v1735
      %1757 = vmatprep.subr.bf16.mxu0 0
      %1758 = vmatpush1.bf16.msra.mxu0 %v1736
      %1759 = vmatprep.subr.bf16.mxu0 0
      %1760 = vmatpush1.bf16.msra.mxu0 %v1737
      %1761 = vmatprep.subr.bf16.mxu0 0
      %1762 = vmatpush1.bf16.msra.mxu0 %v1738
      %1763 = vmatprep.subr.bf16.mxu0 0
      %1764 = vmatpush1.bf16.msra.mxu0 0
      %1765 = vmatprep.subr.bf16.mxu0 0
      %1766 = vmatpush1.bf16.msra.mxu0 0
      %1767 = vmatprep.subr.bf16.mxu0 0
      %1768 = vmatpush1.bf16.msra.mxu0 0
      %1769 = vmatprep.subr.bf16.mxu0 0
      %1770 = vmatpush1.bf16.msra.mxu0 0
      %1771 = vmatprep.subr.bf16.mxu0 0
      %1772 = vmatpush1.bf16.msra.mxu0 0
      %1773 = vmatprep.subr.bf16.mxu0 0
      %1774 = vmatpush1.bf16.msra.mxu0 0
      %1775 = vmatprep.subr.bf16.mxu0 0
      %1776 = vmatpush1.bf16.msra.mxu0 0
      %1777 = vmatprep.subr.bf16.mxu0 0
      %1778 = vmatpush1.bf16.msra.mxu0 0
      %1779 = vmatprep.mubr.bf16.mxu0 0
      %1780 = vmatmul.mubr.bf16.gmra.mrb[0].mxu0 %v1679
      %v1781 = vpop.f32.mrb[0].mxu0
      %v1782 = vadd.f32 0.0, %v1781
      %v1783 = vpop.f32.mrb[0].mxu0
      %v1784 = vpop.f32.mrb[0].mxu0
      %v1785 = vpop.f32.mrb[0].mxu0
      %1786 = vmatprep.mubr.bf16.mxu0 0
      %1787 = vmatmul.mubr.bf16.gmra.mrb[0].mxu0 %v1680
      %v1788 = vpop.f32.mrb[0].mxu0
      %v1789 = vadd.f32 0.0, %v1788
      %v1790 = vpop.f32.mrb[0].mxu0
      %v1791 = vpop.f32.mrb[0].mxu0
      %v1792 = vpop.f32.mrb[0].mxu0
      %1793 = vmatprep.mubr.bf16.mxu0 0
      %1794 = vmatmul.mubr.bf16.gmra.mrb[0].mxu0 %v1681
      %v1795 = vpop.f32.mrb[0].mxu0
      %v1796 = vadd.f32 0.0, %v1795
      %v1797 = vpop.f32.mrb[0].mxu0
      %v1798 = vpop.f32.mrb[0].mxu0
      %v1799 = vpop.f32.mrb[0].mxu0
      %1800 = vmatprep.mubr.bf16.mxu0 0
      %1801 = vmatmul.mubr.bf16.gmra.mrb[0].mxu0 %v1682
      %v1802 = vpop.f32.mrb[0].mxu0
      %v1803 = vadd.f32 0.0, %v1802
      %v1804 = vpop.f32.mrb[0].mxu0
      %v1805 = vpop.f32.mrb[0].mxu0
      %v1806 = vpop.f32.mrb[0].mxu0
      %1807 = vmatprep.mubr.bf16.mxu0 0
      %1808 = vmatmul.mubr.bf16.gmra.mrb[0].mxu0 %v1683
      %v1809 = vpop.f32.mrb[0].mxu0
      %v1810 = vadd.f32 0.0, %v1809
      %v1811 = vpop.f32.mrb[0].mxu0
      %v1812 = vpop.f32.mrb[0].mxu0
      %v1813 = vpop.f32.mrb[0].mxu0
      %1814 = vmatprep.mubr.bf16.mxu0 0
      %1815 = vmatmul.mubr.bf16.gmra.mrb[0].mxu0 %v1684
      %v1816 = vpop.f32.mrb[0].mxu0
      %v1817 = vadd.f32 0.0, %v1816
      %v1818 = vpop.f32.mrb[0].mxu0
      %v1819 = vpop.f32.mrb[0].mxu0
      %v1820 = vpop.f32.mrb[0].mxu0
      %1821 = vmatprep.mubr.bf16.mxu0 0
      %1822 = vmatmul.mubr.bf16.gmra.mrb[0].mxu0 %v1685
      %v1823 = vpop.f32.mrb[0].mxu0
      %v1824 = vadd.f32 0.0, %v1823
      %v1825 = vpop.f32.mrb[0].mxu0
      %v1826 = vpop.f32.mrb[0].mxu0
      %v1827 = vpop.f32.mrb[0].mxu0
      %1828 = vmatprep.mubr.bf16.mxu0 0
      %1829 = vmatmul.mubr.bf16.gmra.mrb[0].mxu0 %v1686
      %v1830 = vpop.f32.mrb[0].mxu0
      %v1831 = vadd.f32 0.0, %v1830
      %v1832 = vpop.f32.mrb[0].mxu0
      %v1833 = vpop.f32.mrb[0].mxu0
      %v1834 = vpop.f32.mrb[0].mxu0
      %1835 = vmatprep.mubr.bf16.mxu0 0
      %1836 = vmatmul.mubr.bf16.gmra.mrb[0].mxu0 %v1687
      %v1837 = vpop.f32.mrb[0].mxu0
      %v1838 = vadd.f32 0.0, %v1837
      %v1839 = vpop.f32.mrb[0].mxu0
      %v1840 = vpop.f32.mrb[0].mxu0
      %v1841 = vpop.f32.mrb[0].mxu0
      %1842 = vmatprep.mubr.bf16.mxu0 0
      %1843 = vmatmul.mubr.bf16.gmra.mrb[0].mxu0 %v1688
      %v1844 = vpop.f32.mrb[0].mxu0
      %v1845 = vadd.f32 0.0, %v1844
      %v1846 = vpop.f32.mrb[0].mxu0
      %v1847 = vpop.f32.mrb[0].mxu0
      %v1848 = vpop.f32.mrb[0].mxu0
      %1849 = vdwg.mxu0
      %v1850 = vadd.f32 %v1252, %v1782
      %v1851 = vadd.f32 %v1253, %v1789
      %v1852 = vadd.f32 %v1254, %v1796
      %v1853 = vadd.f32 %v1255, %v1803
      %v1854 = vadd.f32 %v1256, %v1810
      %v1855 = vadd.f32 %v1257, %v1817
      %v1856 = vadd.f32 %v1258, %v1824
      %v1857 = vadd.f32 %v1259, %v1831
      %v1858 = vadd.f32 %v1260, %v1838
      %v1859 = vadd.f32 %v1261, %v1845
      %s1860 = scalar_lea.vmem %s217, 96
      %v1861 = vld [vmem:[%s1860] sm:$0xf]
      %v1862 = vld [vmem:[%s1860 + $0x4] sm:$0xf]
      %v1863 = vld [vmem:[%s1860 + $0x8] sm:$0xf]
      %v1864 = vld [vmem:[%s1860 + $0xc] sm:$0xf]
      %v1865 = vld [vmem:[%s1860 + $0x10] sm:$0xf]
      %v1866 = vld [vmem:[%s1860 + $0x14] sm:$0xf]
      %v1867 = vld [vmem:[%s1860 + $0x18] sm:$0xf]
      %v1868 = vld [vmem:[%s1860 + $0x1c] sm:$0xf]
      %v1869 = vld [vmem:[%s1860 + $0x20] sm:$0xf]
      %v1870 = vld [vmem:[%s1860 + $0x24] sm:$0xf]
      %v1871 = vld [vmem:[%s1860 + $0x28] sm:$0xf]
      %v1872 = vld [vmem:[%s1860 + $0x2c] sm:$0xf]
      %v1873 = vld [vmem:[%s1860 + $0x30] sm:$0xf]
      %v1874 = vld [vmem:[%s1860 + $0x34] sm:$0xf]
      %v1875 = vld [vmem:[%s1860 + $0x38] sm:$0xf]
      %v1876 = vld [vmem:[%s1860 + $0x3c] sm:$0xf]
      %v1877 = vld [vmem:[%s1860 + $0x40] sm:$0xf]
      %v1878 = vld [vmem:[%s1860 + $0x44] sm:$0xf]
      %v1879 = vld [vmem:[%s1860 + $0x48] sm:$0xf]
      %v1880 = vld [vmem:[%s1860 + $0x4c] sm:$0xf]
      %s1881 = scalar_lea.vmem %s1, 448
      %v1882 = vld [vmem:[%s1881] sm:$0xf]
      %v1883 = vld [vmem:[%s1881 + $0x4] sm:$0xf]
      %v1884 = vld [vmem:[%s1881 + $0x8] sm:$0xf]
      %v1885 = vld [vmem:[%s1881 + $0xc] sm:$0xf]
      %v1886 = vld [vmem:[%s1881 + $0x10] sm:$0xf]
      %v1887 = vld [vmem:[%s1881 + $0x14] sm:$0xf]
      %v1888 = vld [vmem:[%s1881 + $0x18] sm:$0xf]
      %v1889 = vld [vmem:[%s1881 + $0x1c] sm:$0xf]
      %v1890 = vld [vmem:[%s1881 + $0x20] sm:$0xf]
      %v1891 = vld [vmem:[%s1881 + $0x24] sm:$0xf]
      %v1892 = vld [vmem:[%s1881 + $0x28] sm:$0xf]
      %v1893 = vld [vmem:[%s1881 + $0x2c] sm:$0xf]
      %v1894 = vld [vmem:[%s1881 + $0x30] sm:$0xf]
      %v1895 = vld [vmem:[%s1881 + $0x34] sm:$0xf]
      %v1896 = vld [vmem:[%s1881 + $0x38] sm:$0xf]
      %v1897 = vld [vmem:[%s1881 + $0x3c] sm:$0xf]
      %v1918 = vunpack.c.l.b16 %v1861
      %v1919 = vunpack.c.l.b16 %v1862
      %v1920 = vunpack.c.l.b16 %v1863
      %v1921 = vunpack.c.l.b16 %v1864
      %v1922 = vunpack.c.l.b16 %v1865
      %v1923 = vunpack.c.l.b16 %v1866
      %v1924 = vunpack.c.l.b16 %v1867
      %v1925 = vunpack.c.l.b16 %v1868
      %v1926 = vunpack.c.l.b16 %v1869
      %v1927 = vunpack.c.l.b16 %v1870
      %v1928 = vunpack.c.l.b16 %v1871
      %v1929 = vunpack.c.l.b16 %v1872
      %v1930 = vunpack.c.l.b16 %v1873
      %v1931 = vunpack.c.l.b16 %v1874
      %v1932 = vunpack.c.l.b16 %v1875
      %v1933 = vunpack.c.l.b16 %v1876
      %v1934 = vunpack.c.l.b16 %v1877
      %v1935 = vunpack.c.l.b16 %v1878
      %v1936 = vunpack.c.l.b16 %v1879
      %v1937 = vunpack.c.l.b16 %v1880
      %v1938 = vpack.c.b16 %v1919, %v1918
      %v1939 = vpack.c.b16 %v1921, %v1920
      %v1940 = vpack.c.b16 %v1923, %v1922
      %v1941 = vpack.c.b16 %v1925, %v1924
      %v1942 = vpack.c.b16 %v1927, %v1926
      %v1943 = vpack.c.b16 %v1929, %v1928
      %v1944 = vpack.c.b16 %v1931, %v1930
      %v1945 = vpack.c.b16 %v1933, %v1932
      %v1946 = vpack.c.b16 %v1935, %v1934
      %v1947 = vpack.c.b16 %v1937, %v1936
      %v1974 = vunpack.c.l.b16 %v1882
      %v1975 = vunpack.c.l.b16 %v1883
      %v1976 = vunpack.c.l.b16 %v1884
      %v1977 = vunpack.c.l.b16 %v1885
      %v1978 = vunpack.c.l.b16 %v1886
      %v1979 = vunpack.c.l.b16 %v1887
      %v1980 = vunpack.c.l.b16 %v1888
      %v1981 = vunpack.c.l.b16 %v1889
      %v1982 = vunpack.c.l.b16 %v1890
      %v1983 = vunpack.c.l.b16 %v1891
      %v1984 = vunpack.c.l.b16 %v1892
      %v1985 = vunpack.c.l.b16 %v1893
      %v1986 = vunpack.c.l.b16 %v1894
      %v1987 = vunpack.c.l.b16 %v1895
      %v1988 = vunpack.c.l.b16 %v1896
      %v1989 = vunpack.c.l.b16 %v1897
      %v1990 = vpack.c.b16 %v1975, %v1974
      %v1991 = vpack.c.b16 %v1977, %v1976
      %v1992 = vpack.c.b16 %v1979, %v1978
      %v1993 = vpack.c.b16 %v1981, %v1980
      %v1994 = vpack.c.b16 %v1983, %v1982
      %v1995 = vpack.c.b16 %v1985, %v1984
      %v1996 = vpack.c.b16 %v1987, %v1986
      %v1997 = vpack.c.b16 %v1989, %v1988
      %2006 = vmatprep.subr.bf16.mxu0 0
      %2007 = vmatpush1.bf16.msra.mxu0 %v1990
      %2008 = vmatprep.subr.bf16.mxu0 0
      %2009 = vmatpush1.bf16.msra.mxu0 %v1991
      %2010 = vmatprep.subr.bf16.mxu0 0
      %2011 = vmatpush1.bf16.msra.mxu0 %v1992
      %2012 = vmatprep.subr.bf16.mxu0 0
      %2013 = vmatpush1.bf16.msra.mxu0 %v1993
      %2014 = vmatprep.subr.bf16.mxu0 0
      %2015 = vmatpush1.bf16.msra.mxu0 %v1994
      %2016 = vmatprep.subr.bf16.mxu0 0
      %2017 = vmatpush1.bf16.msra.mxu0 %v1995
      %2018 = vmatprep.subr.bf16.mxu0 0
      %2019 = vmatpush1.bf16.msra.mxu0 %v1996
      %2020 = vmatprep.subr.bf16.mxu0 0
      %2021 = vmatpush1.bf16.msra.mxu0 %v1997
      %2022 = vmatprep.subr.bf16.mxu0 0
      %2023 = vmatpush1.bf16.msra.mxu0 0
      %2024 = vmatprep.subr.bf16.mxu0 0
      %2025 = vmatpush1.bf16.msra.mxu0 0
      %2026 = vmatprep.subr.bf16.mxu0 0
      %2027 = vmatpush1.bf16.msra.mxu0 0
      %2028 = vmatprep.subr.bf16.mxu0 0
      %2029 = vmatpush1.bf16.msra.mxu0 0
      %2030 = vmatprep.subr.bf16.mxu0 0
      %2031 = vmatpush1.bf16.msra.mxu0 0
      %2032 = vmatprep.subr.bf16.mxu0 0
      %2033 = vmatpush1.bf16.msra.mxu0 0
      %2034 = vmatprep.subr.bf16.mxu0 0
      %2035 = vmatpush1.bf16.msra.mxu0 0
      %2036 = vmatprep.subr.bf16.mxu0 0
      %2037 = vmatpush1.bf16.msra.mxu0 0
      %2038 = vmatprep.mubr.bf16.mxu0 0
      %2039 = vmatmul.mubr.bf16.gmra.mrb[0].mxu0 %v1938
      %v2040 = vpop.f32.mrb[0].mxu0
      %v2041 = vadd.f32 0.0, %v2040
      %v2042 = vpop.f32.mrb[0].mxu0
      %v2043 = vpop.f32.mrb[0].mxu0
      %v2044 = vpop.f32.mrb[0].mxu0
      %2045 = vmatprep.mubr.bf16.mxu0 0
      %2046 = vmatmul.mubr.bf16.gmra.mrb[0].mxu0 %v1939
      %v2047 = vpop.f32.mrb[0].mxu0
      %v2048 = vadd.f32 0.0, %v2047
      %v2049 = vpop.f32.mrb[0].mxu0
      %v2050 = vpop.f32.mrb[0].mxu0
      %v2051 = vpop.f32.mrb[0].mxu0
      %2052 = vmatprep.mubr.bf16.mxu0 0
      %2053 = vmatmul.mubr.bf16.gmra.mrb[0].mxu0 %v1940
      %v2054 = vpop.f32.mrb[0].mxu0
      %v2055 = vadd.f32 0.0, %v2054
      %v2056 = vpop.f32.mrb[0].mxu0
      %v2057 = vpop.f32.mrb[0].mxu0
      %v2058 = vpop.f32.mrb[0].mxu0
      %2059 = vmatprep.mubr.bf16.mxu0 0
      %2060 = vmatmul.mubr.bf16.gmra.mrb[0].mxu0 %v1941
      %v2061 = vpop.f32.mrb[0].mxu0
      %v2062 = vadd.f32 0.0, %v2061
      %v2063 = vpop.f32.mrb[0].mxu0
      %v2064 = vpop.f32.mrb[0].mxu0
      %v2065 = vpop.f32.mrb[0].mxu0
      %2066 = vmatprep.mubr.bf16.mxu0 0
      %2067 = vmatmul.mubr.bf16.gmra.mrb[0].mxu0 %v1942
      %v2068 = vpop.f32.mrb[0].mxu0
      %v2069 = vadd.f32 0.0, %v2068
      %v2070 = vpop.f32.mrb[0].mxu0
      %v2071 = vpop.f32.mrb[0].mxu0
      %v2072 = vpop.f32.mrb[0].mxu0
      %2073 = vmatprep.mubr.bf16.mxu0 0
      %2074 = vmatmul.mubr.bf16.gmra.mrb[0].mxu0 %v1943
      %v2075 = vpop.f32.mrb[0].mxu0
      %v2076 = vadd.f32 0.0, %v2075
      %v2077 = vpop.f32.mrb[0].mxu0
      %v2078 = vpop.f32.mrb[0].mxu0
      %v2079 = vpop.f32.mrb[0].mxu0
      %2080 = vmatprep.mubr.bf16.mxu0 0
      %2081 = vmatmul.mubr.bf16.gmra.mrb[0].mxu0 %v1944
      %v2082 = vpop.f32.mrb[0].mxu0
      %v2083 = vadd.f32 0.0, %v2082
      %v2084 = vpop.f32.mrb[0].mxu0
      %v2085 = vpop.f32.mrb[0].mxu0
      %v2086 = vpop.f32.mrb[0].mxu0
      %2087 = vmatprep.mubr.bf16.mxu0 0
      %2088 = vmatmul.mubr.bf16.gmra.mrb[0].mxu0 %v1945
      %v2089 = vpop.f32.mrb[0].mxu0
      %v2090 = vadd.f32 0.0, %v2089
      %v2091 = vpop.f32.mrb[0].mxu0
      %v2092 = vpop.f32.mrb[0].mxu0
      %v2093 = vpop.f32.mrb[0].mxu0
      %2094 = vmatprep.mubr.bf16.mxu0 0
      %2095 = vmatmul.mubr.bf16.gmra.mrb[0].mxu0 %v1946
      %v2096 = vpop.f32.mrb[0].mxu0
      %v2097 = vadd.f32 0.0, %v2096
      %v2098 = vpop.f32.mrb[0].mxu0
      %v2099 = vpop.f32.mrb[0].mxu0
      %v2100 = vpop.f32.mrb[0].mxu0
      %2101 = vmatprep.mubr.bf16.mxu0 0
      %2102 = vmatmul.mubr.bf16.gmra.mrb[0].mxu0 %v1947
      %v2103 = vpop.f32.mrb[0].mxu0
      %v2104 = vadd.f32 0.0, %v2103
      %v2105 = vpop.f32.mrb[0].mxu0
      %v2106 = vpop.f32.mrb[0].mxu0
      %v2107 = vpop.f32.mrb[0].mxu0
      %2108 = vdwg.mxu0
      %v2109 = vadd.f32 %v1850, %v2041
      %v2110 = vadd.f32 %v1851, %v2048
      %v2111 = vadd.f32 %v1852, %v2055
      %v2112 = vadd.f32 %v1853, %v2062
      %v2113 = vadd.f32 %v1854, %v2069
      %v2114 = vadd.f32 %v1855, %v2076
      %v2115 = vadd.f32 %v1856, %v2083
      %v2116 = vadd.f32 %v1857, %v2090
      %v2117 = vadd.f32 %v1858, %v2097
      %v2118 = vadd.f32 %v1859, %v2104
      %s2119 = scalar_lea.vmem %s1, 512
      %v2120 = vld [vmem:[%s2119] sm:$0xf]
      %v2121 = vld [vmem:[%s2119 + $0x4] sm:$0xf]
      %v2122 = vld [vmem:[%s2119 + $0x8] sm:$0xf]
      %v2123 = vld [vmem:[%s2119 + $0xc] sm:$0xf]
      %v2124 = vld [vmem:[%s2119 + $0x10] sm:$0xf]
      %v2125 = vld [vmem:[%s2119 + $0x14] sm:$0xf]
      %v2126 = vld [vmem:[%s2119 + $0x18] sm:$0xf]
      %v2127 = vld [vmem:[%s2119 + $0x1c] sm:$0xf]
      %v2128 = vld [vmem:[%s2119 + $0x20] sm:$0xf]
      %v2129 = vld [vmem:[%s2119 + $0x24] sm:$0xf]
      %v2130 = vld [vmem:[%s2119 + $0x28] sm:$0xf]
      %v2131 = vld [vmem:[%s2119 + $0x2c] sm:$0xf]
      %v2132 = vld [vmem:[%s2119 + $0x30] sm:$0xf]
      %v2133 = vld [vmem:[%s2119 + $0x34] sm:$0xf]
      %v2134 = vld [vmem:[%s2119 + $0x38] sm:$0xf]
      %v2135 = vld [vmem:[%s2119 + $0x3c] sm:$0xf]
      %v2152 = vunpack.c.l.b16 %v2120
      %v2153 = vunpack.c.l.b16 %v2121
      %v2154 = vunpack.c.l.b16 %v2122
      %v2155 = vunpack.c.l.b16 %v2123
      %v2156 = vunpack.c.l.b16 %v2124
      %v2157 = vunpack.c.l.b16 %v2125
      %v2158 = vunpack.c.l.b16 %v2126
      %v2159 = vunpack.c.l.b16 %v2127
      %v2160 = vunpack.c.l.b16 %v2128
      %v2161 = vunpack.c.l.b16 %v2129
      %v2162 = vunpack.c.l.b16 %v2130
      %v2163 = vunpack.c.l.b16 %v2131
      %v2164 = vunpack.c.l.b16 %v2132
      %v2165 = vunpack.c.l.b16 %v2133
      %v2166 = vunpack.c.l.b16 %v2134
      %v2167 = vunpack.c.l.b16 %v2135
      %v2168 = vpack.c.b16 %v2153, %v2152
      %v2169 = vpack.c.b16 %v2155, %v2154
      %v2170 = vpack.c.b16 %v2157, %v2156
      %v2171 = vpack.c.b16 %v2159, %v2158
      %v2172 = vpack.c.b16 %v2161, %v2160
      %v2173 = vpack.c.b16 %v2163, %v2162
      %v2174 = vpack.c.b16 %v2165, %v2164
      %v2175 = vpack.c.b16 %v2167, %v2166
      %2184 = vmatprep.subr.bf16.mxu0 0
      %2185 = vmatpush1.bf16.msra.mxu0 %v2168
      %2186 = vmatprep.subr.bf16.mxu0 0
      %2187 = vmatpush1.bf16.msra.mxu0 %v2169
      %2188 = vmatprep.subr.bf16.mxu0 0
      %2189 = vmatpush1.bf16.msra.mxu0 %v2170
      %2190 = vmatprep.subr.bf16.mxu0 0
      %2191 = vmatpush1.bf16.msra.mxu0 %v2171
      %2192 = vmatprep.subr.bf16.mxu0 0
      %2193 = vmatpush1.bf16.msra.mxu0 %v2172
      %2194 = vmatprep.subr.bf16.mxu0 0
      %2195 = vmatpush1.bf16.msra.mxu0 %v2173
      %2196 = vmatprep.subr.bf16.mxu0 0
      %2197 = vmatpush1.bf16.msra.mxu0 %v2174
      %2198 = vmatprep.subr.bf16.mxu0 0
      %2199 = vmatpush1.bf16.msra.mxu0 %v2175
      %2200 = vmatprep.subr.bf16.mxu0 0
      %2201 = vmatpush1.bf16.msra.mxu0 0
      %2202 = vmatprep.subr.bf16.mxu0 0
      %2203 = vmatpush1.bf16.msra.mxu0 0
      %2204 = vmatprep.subr.bf16.mxu0 0
      %2205 = vmatpush1.bf16.msra.mxu0 0
      %2206 = vmatprep.subr.bf16.mxu0 0
      %2207 = vmatpush1.bf16.msra.mxu0 0
      %2208 = vmatprep.subr.bf16.mxu0 0
      %2209 = vmatpush1.bf16.msra.mxu0 0
      %2210 = vmatprep.subr.bf16.mxu0 0
      %2211 = vmatpush1.bf16.msra.mxu0 0
      %2212 = vmatprep.subr.bf16.mxu0 0
      %2213 = vmatpush1.bf16.msra.mxu0 0
      %2214 = vmatprep.subr.bf16.mxu0 0
      %2215 = vmatpush1.bf16.msra.mxu0 0
      %2216 = vmatprep.mubr.bf16.mxu0 0
      %2217 = vmatmul.mubr.bf16.gmra.mrb[0].mxu0 %v1679
      %v2218 = vpop.f32.mrb[0].mxu0
      %v2219 = vadd.f32 0.0, %v2218
      %v2220 = vpop.f32.mrb[0].mxu0
      %v2221 = vpop.f32.mrb[0].mxu0
      %v2222 = vadd.f32 0.0, %v2221
      %v2223 = vpop.f32.mrb[0].mxu0
      %2224 = vmatprep.mubr.bf16.mxu0 0
      %2225 = vmatmul.mubr.bf16.gmra.mrb[0].mxu0 %v1680
      %v2226 = vpop.f32.mrb[0].mxu0
      %v2227 = vadd.f32 0.0, %v2226
      %v2228 = vpop.f32.mrb[0].mxu0
      %v2229 = vpop.f32.mrb[0].mxu0
      %v2230 = vadd.f32 0.0, %v2229
      %v2231 = vpop.f32.mrb[0].mxu0
      %2232 = vmatprep.mubr.bf16.mxu0 0
      %2233 = vmatmul.mubr.bf16.gmra.mrb[0].mxu0 %v1681
      %v2234 = vpop.f32.mrb[0].mxu0
      %v2235 = vadd.f32 0.0, %v2234
      %v2236 = vpop.f32.mrb[0].mxu0
      %v2237 = vpop.f32.mrb[0].mxu0
      %v2238 = vadd.f32 0.0, %v2237
      %v2239 = vpop.f32.mrb[0].mxu0
      %2240 = vmatprep.mubr.bf16.mxu0 0
      %2241 = vmatmul.mubr.bf16.gmra.mrb[0].mxu0 %v1682
      %v2242 = vpop.f32.mrb[0].mxu0
      %v2243 = vadd.f32 0.0, %v2242
      %v2244 = vpop.f32.mrb[0].mxu0
      %v2245 = vpop.f32.mrb[0].mxu0
      %v2246 = vadd.f32 0.0, %v2245
      %v2247 = vpop.f32.mrb[0].mxu0
      %2248 = vmatprep.mubr.bf16.mxu0 0
      %2249 = vmatmul.mubr.bf16.gmra.mrb[0].mxu0 %v1683
      %v2250 = vpop.f32.mrb[0].mxu0
      %v2251 = vadd.f32 0.0, %v2250
      %v2252 = vpop.f32.mrb[0].mxu0
      %v2253 = vpop.f32.mrb[0].mxu0
      %v2254 = vadd.f32 0.0, %v2253
      %v2255 = vpop.f32.mrb[0].mxu0
      %2256 = vmatprep.mubr.bf16.mxu0 0
      %2257 = vmatmul.mubr.bf16.gmra.mrb[0].mxu0 %v1684
      %v2258 = vpop.f32.mrb[0].mxu0
      %v2259 = vadd.f32 0.0, %v2258
      %v2260 = vpop.f32.mrb[0].mxu0
      %v2261 = vpop.f32.mrb[0].mxu0
      %v2262 = vadd.f32 0.0, %v2261
      %v2263 = vpop.f32.mrb[0].mxu0
      %2264 = vmatprep.mubr.bf16.mxu0 0
      %2265 = vmatmul.mubr.bf16.gmra.mrb[0].mxu0 %v1685
      %v2266 = vpop.f32.mrb[0].mxu0
      %v2267 = vadd.f32 0.0, %v2266
      %v2268 = vpop.f32.mrb[0].mxu0
      %v2269 = vpop.f32.mrb[0].mxu0
      %v2270 = vadd.f32 0.0, %v2269
      %v2271 = vpop.f32.mrb[0].mxu0
      %2272 = vmatprep.mubr.bf16.mxu0 0
      %2273 = vmatmul.mubr.bf16.gmra.mrb[0].mxu0 %v1686
      %v2274 = vpop.f32.mrb[0].mxu0
      %v2275 = vadd.f32 0.0, %v2274
      %v2276 = vpop.f32.mrb[0].mxu0
      %v2277 = vpop.f32.mrb[0].mxu0
      %v2278 = vadd.f32 0.0, %v2277
      %v2279 = vpop.f32.mrb[0].mxu0
      %2280 = vmatprep.mubr.bf16.mxu0 0
      %2281 = vmatmul.mubr.bf16.gmra.mrb[0].mxu0 %v1687
      %v2282 = vpop.f32.mrb[0].mxu0
      %v2283 = vadd.f32 0.0, %v2282
      %v2284 = vpop.f32.mrb[0].mxu0
      %v2285 = vpop.f32.mrb[0].mxu0
      %v2286 = vadd.f32 0.0, %v2285
      %v2287 = vpop.f32.mrb[0].mxu0
      %2288 = vmatprep.mubr.bf16.mxu0 0
      %2289 = vmatmul.mubr.bf16.gmra.mrb[0].mxu0 %v1688
      %v2290 = vpop.f32.mrb[0].mxu0
      %v2291 = vadd.f32 0.0, %v2290
      %v2292 = vpop.f32.mrb[0].mxu0
      %v2293 = vpop.f32.mrb[0].mxu0
      %v2294 = vadd.f32 0.0, %v2293
      %v2295 = vpop.f32.mrb[0].mxu0
      %2296 = vdwg.mxu0
      %v2297 = vadd.f32 %v1523, %v2219
      %v2298 = vadd.f32 %v1526, %v2222
      %v2299 = vadd.f32 %v1531, %v2227
      %v2300 = vadd.f32 %v1534, %v2230
      %v2301 = vadd.f32 %v1539, %v2235
      %v2302 = vadd.f32 %v1542, %v2238
      %v2303 = vadd.f32 %v1547, %v2243
      %v2304 = vadd.f32 %v1550, %v2246
      %v2305 = vadd.f32 %v1555, %v2251
      %v2306 = vadd.f32 %v1558, %v2254
      %v2307 = vadd.f32 %v1563, %v2259
      %v2308 = vadd.f32 %v1566, %v2262
      %v2309 = vadd.f32 %v1571, %v2267
      %v2310 = vadd.f32 %v1574, %v2270
      %v2311 = vadd.f32 %v1579, %v2275
      %v2312 = vadd.f32 %v1582, %v2278
      %v2313 = vadd.f32 %v1587, %v2283
      %v2314 = vadd.f32 %v1590, %v2286
      %v2315 = vadd.f32 %v1595, %v2291
      %v2316 = vadd.f32 %v1598, %v2294
      %vm2337 = vcmask 1046528
      %v2338 = vrot.slane %v2297, 1
      %v2339 = vrot.slane %v2298, 1
      %v2340 = vsel %vm2337, %v2338, %v2339
      %v2341 = vrot.slane %v2299, 1
      %v2342 = vrot.slane %v2300, 1
      %v2343 = vsel %vm2337, %v2341, %v2342
      %v2344 = vrot.slane %v2301, 1
      %v2345 = vrot.slane %v2302, 1
      %v2346 = vsel %vm2337, %v2344, %v2345
      %v2347 = vrot.slane %v2303, 1
      %v2348 = vrot.slane %v2304, 1
      %v2349 = vsel %vm2337, %v2347, %v2348
      %v2350 = vrot.slane %v2305, 1
      %v2351 = vrot.slane %v2306, 1
      %v2352 = vsel %vm2337, %v2350, %v2351
      %v2353 = vrot.slane %v2307, 1
      %v2354 = vrot.slane %v2308, 1
      %v2355 = vsel %vm2337, %v2353, %v2354
      %v2356 = vrot.slane %v2309, 1
      %v2357 = vrot.slane %v2310, 1
      %v2358 = vsel %vm2337, %v2356, %v2357
      %v2359 = vrot.slane %v2311, 1
      %v2360 = vrot.slane %v2312, 1
      %v2361 = vsel %vm2337, %v2359, %v2360
      %v2362 = vrot.slane %v2313, 1
      %v2363 = vrot.slane %v2314, 1
      %v2364 = vsel %vm2337, %v2362, %v2363
      %v2365 = vrot.slane %v2315, 1
      %v2366 = vrot.slane %v2316, 1
      %v2367 = vsel %vm2337, %v2365, %v2366
      %v2378 = vadd.f32 %v2109, %v2340
      %v2379 = vadd.f32 %v2110, %v2343
      %v2380 = vadd.f32 %v2111, %v2346
      %v2381 = vadd.f32 %v2112, %v2349
      %v2382 = vadd.f32 %v2113, %v2352
      %v2383 = vadd.f32 %v2114, %v2355
      %v2384 = vadd.f32 %v2115, %v2358
      %v2385 = vadd.f32 %v2116, %v2361
      %v2386 = vadd.f32 %v2117, %v2364
      %v2387 = vadd.f32 %v2118, %v2367
      %v2388 = vld [vmem:[%s3] sm:$0x1]
      %v2389 = vld [vmem:[%s3 + $0x1] sm:$0x1]
      %v2390 = vld [vmem:[%s3 + $0x2] sm:$0x1]
      %v2391 = vld [vmem:[%s3 + $0x3] sm:$0x1]
      %v2392 = vld [vmem:[%s3 + $0x4] sm:$0x1]
      %v2393 = vld [vmem:[%s3 + $0x5] sm:$0x1]
      %v2394 = vld [vmem:[%s3 + $0x6] sm:$0x1]
      %v2395 = vld [vmem:[%s3 + $0x7] sm:$0x1]
      %v2396 = vlaneseq
      %v2397 = vshrl.u32 %v2396, 7
      %v2398 = vsub.s32 0, %v2397
      %v2399 = vrot.slane %v2388, %v2398
      %v2400 = vmul.f32 %v2378, %v2399
      %v2401 = vmul.f32 %v2379, %v2399
      %v2402 = vmul.f32 %v2380, %v2399
      %v2403 = vmul.f32 %v2381, %v2399
      %v2404 = vmul.f32 %v2382, %v2399
      %v2405 = vmul.f32 %v2383, %v2399
      %v2406 = vmul.f32 %v2384, %v2399
      %v2407 = vmul.f32 %v2385, %v2399
      %v2408 = vmul.f32 %v2386, %v2399
      %v2409 = vmul.f32 %v2387, %v2399
      %v2410 = vlaneseq
      %v2411 = vshrl.u32 %v2410, 7
      %v2412 = vsub.s32 0, %v2411
      %v2413 = vrot.slane %v2389, %v2412
      %v2414 = vadd.f32 %v2400, %v2413
      %v2415 = vadd.f32 %v2401, %v2413
      %v2416 = vadd.f32 %v2402, %v2413
      %v2417 = vadd.f32 %v2403, %v2413
      %v2418 = vadd.f32 %v2404, %v2413
      %v2419 = vadd.f32 %v2405, %v2413
      %v2420 = vadd.f32 %v2406, %v2413
      %v2421 = vadd.f32 %v2407, %v2413
      %v2422 = vadd.f32 %v2408, %v2413
      %v2423 = vadd.f32 %v2409, %v2413
      %v2424 = vxor.u32 %v2414, 2147483648
      %v2425 = vxor.u32 %v2415, 2147483648
      %v2426 = vxor.u32 %v2416, 2147483648
      %v2427 = vxor.u32 %v2417, 2147483648
      %v2428 = vxor.u32 %v2418, 2147483648
      %v2429 = vxor.u32 %v2419, 2147483648
      %v2430 = vxor.u32 %v2420, 2147483648
      %v2431 = vxor.u32 %v2421, 2147483648
      %v2432 = vxor.u32 %v2422, 2147483648
      %v2433 = vxor.u32 %v2423, 2147483648
      %v2434 = vmul.f32 %v2424, 1.442695
      %v2435 = vpow.pop %v2434
      %v2436 = vmul.f32 %v2425, 1.442695
      %v2437 = vpow.pop %v2436
      %v2438 = vmul.f32 %v2426, 1.442695
      %v2439 = vpow.pop %v2438
      %v2440 = vmul.f32 %v2427, 1.442695
      %v2441 = vpow.pop %v2440
      %v2442 = vmul.f32 %v2428, 1.442695
      %v2443 = vpow.pop %v2442
      %v2444 = vmul.f32 %v2429, 1.442695
      %v2445 = vpow.pop %v2444
      %v2446 = vmul.f32 %v2430, 1.442695
      %v2447 = vpow.pop %v2446
      %v2448 = vmul.f32 %v2431, 1.442695
      %v2449 = vpow.pop %v2448
      %v2450 = vmul.f32 %v2432, 1.442695
      %v2451 = vpow.pop %v2450
      %v2452 = vmul.f32 %v2433, 1.442695
      %v2453 = vpow.pop %v2452
      %v2454 = vadd.f32 %v2435, 1.0
      %v2455 = vadd.f32 %v2437, 1.0
      %v2456 = vadd.f32 %v2439, 1.0
      %v2457 = vadd.f32 %v2441, 1.0
      %v2458 = vadd.f32 %v2443, 1.0
      %v2459 = vadd.f32 %v2445, 1.0
      %v2460 = vadd.f32 %v2447, 1.0
      %v2461 = vadd.f32 %v2449, 1.0
      %v2462 = vadd.f32 %v2451, 1.0
      %v2463 = vadd.f32 %v2453, 1.0
      %v2464 = vrcp.pop %v2454
      %v2465 = vmul.f32 1.0, %v2464
      %v2466 = vrcp.pop %v2455
      %v2467 = vmul.f32 1.0, %v2466
      %v2468 = vrcp.pop %v2456
      %v2469 = vmul.f32 1.0, %v2468
      %v2470 = vrcp.pop %v2457
      %v2471 = vmul.f32 1.0, %v2470
      %v2472 = vrcp.pop %v2458
      %v2473 = vmul.f32 1.0, %v2472
      %v2474 = vrcp.pop %v2459
      %v2475 = vmul.f32 1.0, %v2474
      %v2476 = vrcp.pop %v2460
      %v2477 = vmul.f32 1.0, %v2476
      %v2478 = vrcp.pop %v2461
      %v2479 = vmul.f32 1.0, %v2478
      %v2480 = vrcp.pop %v2462
      %v2481 = vmul.f32 1.0, %v2480
      %v2482 = vrcp.pop %v2463
      %v2483 = vmul.f32 1.0, %v2482
      %v2484 = vmul.f32 %v2414, %v2465
      %v2485 = vmul.f32 %v2415, %v2467
      %v2486 = vmul.f32 %v2416, %v2469
      %v2487 = vmul.f32 %v2417, %v2471
      %v2488 = vmul.f32 %v2418, %v2473
      %v2489 = vmul.f32 %v2419, %v2475
      %v2490 = vmul.f32 %v2420, %v2477
      %v2491 = vmul.f32 %v2421, %v2479
      %v2492 = vmul.f32 %v2422, %v2481
      %v2493 = vmul.f32 %v2423, %v2483
      %v2494 = vpack.c.bf16 %v2484, %v2484
      %v2495 = vpack.c.bf16 %v2485, %v2485
      %v2496 = vpack.c.bf16 %v2486, %v2486
      %v2497 = vpack.c.bf16 %v2487, %v2487
      %v2498 = vpack.c.bf16 %v2488, %v2488
      %v2499 = vpack.c.bf16 %v2489, %v2489
      %v2500 = vpack.c.bf16 %v2490, %v2490
      %v2501 = vpack.c.bf16 %v2491, %v2491
      %v2502 = vpack.c.bf16 %v2492, %v2492
      %v2503 = vpack.c.bf16 %v2493, %v2493
      %v2514 = vunpack.c.l.b16 %v2494
      %v2515 = vunpack.c.l.b16 %v2495
      %v2516 = vunpack.c.l.b16 %v2496
      %v2517 = vunpack.c.l.b16 %v2497
      %v2518 = vunpack.c.l.b16 %v2498
      %v2519 = vunpack.c.l.b16 %v2499
      %v2520 = vunpack.c.l.b16 %v2500
      %v2521 = vunpack.c.l.b16 %v2501
      %v2522 = vunpack.c.l.b16 %v2502
      %v2523 = vunpack.c.l.b16 %v2503
      %v2524 = vpack.c.b16 %v2514, %v2514
      %v2525 = vpack.c.b16 %v2515, %v2515
      %v2526 = vpack.c.b16 %v2516, %v2516
      %v2527 = vpack.c.b16 %v2517, %v2517
      %v2528 = vpack.c.b16 %v2518, %v2518
      %v2529 = vpack.c.b16 %v2519, %v2519
      %v2530 = vpack.c.b16 %v2520, %v2520
      %v2531 = vpack.c.b16 %v2521, %v2521
      %v2532 = vpack.c.b16 %v2522, %v2522
      %v2533 = vpack.c.b16 %v2523, %v2523
      %v2535 = vshrl.u32 %v2524, 16
      %v2537 = vrot.slane %v2535, 7
      %v2538 = vshll.u32 %v2524, 16
      %v2540 = vor.u32 %v2537, %v2538
      %v2541 = vrot.slane %v2537, 4
      %v2543 = vshrl.u32 %v2525, 16
      %v2545 = vrot.slane %v2543, 7
      %v2546 = vshll.u32 %v2525, 16
      %v2548 = vor.u32 %v2545, %v2546
      %v2549 = vrot.slane %v2545, 4
      %v2551 = vshrl.u32 %v2526, 16
      %v2553 = vrot.slane %v2551, 7
      %v2554 = vshll.u32 %v2526, 16
      %v2556 = vor.u32 %v2553, %v2554
      %v2557 = vrot.slane %v2553, 4
      %v2559 = vshrl.u32 %v2527, 16
      %v2561 = vrot.slane %v2559, 7
      %v2562 = vshll.u32 %v2527, 16
      %v2564 = vor.u32 %v2561, %v2562
      %v2565 = vrot.slane %v2561, 4
      %v2567 = vshrl.u32 %v2528, 16
      %v2569 = vrot.slane %v2567, 7
      %v2570 = vshll.u32 %v2528, 16
      %v2572 = vor.u32 %v2569, %v2570
      %v2573 = vrot.slane %v2569, 4
      %v2575 = vshrl.u32 %v2529, 16
      %v2577 = vrot.slane %v2575, 7
      %v2578 = vshll.u32 %v2529, 16
      %v2580 = vor.u32 %v2577, %v2578
      %v2581 = vrot.slane %v2577, 4
      %v2583 = vshrl.u32 %v2530, 16
      %v2585 = vrot.slane %v2583, 7
      %v2586 = vshll.u32 %v2530, 16
      %v2588 = vor.u32 %v2585, %v2586
      %v2589 = vrot.slane %v2585, 4
      %v2591 = vshrl.u32 %v2531, 16
      %v2593 = vrot.slane %v2591, 7
      %v2594 = vshll.u32 %v2531, 16
      %v2596 = vor.u32 %v2593, %v2594
      %v2597 = vrot.slane %v2593, 4
      %v2599 = vshrl.u32 %v2532, 16
      %v2601 = vrot.slane %v2599, 7
      %v2602 = vshll.u32 %v2532, 16
      %v2604 = vor.u32 %v2601, %v2602
      %v2605 = vrot.slane %v2601, 4
      %v2607 = vshrl.u32 %v2533, 16
      %v2609 = vrot.slane %v2607, 7
      %v2610 = vshll.u32 %v2533, 16
      %v2612 = vor.u32 %v2609, %v2610
      %v2613 = vrot.slane %v2609, 4
      %vm2634 = vcmask 1043456
      %vm2635 = vsmask.f32 7938
      %vm2636 = vmand %vm2634, %vm2635
      %v2637 = vld [vmem:[#allocation2] sm:$0xf]
      %v2638 = vsel %vm2636, %v2540, %v2637
      %2639 = vst [vmem:[#allocation2] sm:$0xf] %v2638
      %vm2640 = vcmask 1040384
      %vm2641 = vsmask.f32 256
      %vm2642 = vmand %vm2640, %vm2641
      %v2643 = vld [vmem:[#allocation2 + $0x4] sm:$0x1]
      %v2644 = vsel %vm2642, %v2541, %v2643
      %2645 = vst [vmem:[#allocation2 + $0x4] sm:$0x1] %v2644
      %v2646 = vld [vmem:[#allocation2 + $0x8] sm:$0xf]
      %v2647 = vsel %vm2636, %v2548, %v2646
      %2648 = vst [vmem:[#allocation2 + $0x8] sm:$0xf] %v2647
      %v2649 = vld [vmem:[#allocation2 + $0xc] sm:$0x1]
      %v2650 = vsel %vm2642, %v2549, %v2649
      %2651 = vst [vmem:[#allocation2 + $0xc] sm:$0x1] %v2650
      %v2652 = vld [vmem:[#allocation2 + $0x10] sm:$0xf]
      %v2653 = vsel %vm2636, %v2556, %v2652
      %2654 = vst [vmem:[#allocation2 + $0x10] sm:$0xf] %v2653
      %v2655 = vld [vmem:[#allocation2 + $0x14] sm:$0x1]
      %v2656 = vsel %vm2642, %v2557, %v2655
      %2657 = vst [vmem:[#allocation2 + $0x14] sm:$0x1] %v2656
      %v2658 = vld [vmem:[#allocation2 + $0x18] sm:$0xf]
      %v2659 = vsel %vm2636, %v2564, %v2658
      %2660 = vst [vmem:[#allocation2 + $0x18] sm:$0xf] %v2659
      %v2661 = vld [vmem:[#allocation2 + $0x1c] sm:$0x1]
      %v2662 = vsel %vm2642, %v2565, %v2661
      %2663 = vst [vmem:[#allocation2 + $0x1c] sm:$0x1] %v2662
      %v2664 = vld [vmem:[#allocation2 + $0x20] sm:$0xf]
      %v2665 = vsel %vm2636, %v2572, %v2664
      %2666 = vst [vmem:[#allocation2 + $0x20] sm:$0xf] %v2665
      %v2667 = vld [vmem:[#allocation2 + $0x24] sm:$0x1]
      %v2668 = vsel %vm2642, %v2573, %v2667
      %2669 = vst [vmem:[#allocation2 + $0x24] sm:$0x1] %v2668
      %v2670 = vld [vmem:[#allocation2 + $0x28] sm:$0xf]
      %v2671 = vsel %vm2636, %v2580, %v2670
      %2672 = vst [vmem:[#allocation2 + $0x28] sm:$0xf] %v2671
      %v2673 = vld [vmem:[#allocation2 + $0x2c] sm:$0x1]
      %v2674 = vsel %vm2642, %v2581, %v2673
      %2675 = vst [vmem:[#allocation2 + $0x2c] sm:$0x1] %v2674
      %v2676 = vld [vmem:[#allocation2 + $0x30] sm:$0xf]
      %v2677 = vsel %vm2636, %v2588, %v2676
      %2678 = vst [vmem:[#allocation2 + $0x30] sm:$0xf] %v2677
      %v2679 = vld [vmem:[#allocation2 + $0x34] sm:$0x1]
      %v2680 = vsel %vm2642, %v2589, %v2679
      %2681 = vst [vmem:[#allocation2 + $0x34] sm:$0x1] %v2680
      %v2682 = vld [vmem:[#allocation2 + $0x38] sm:$0xf]
      %v2683 = vsel %vm2636, %v2596, %v2682
      %2684 = vst [vmem:[#allocation2 + $0x38] sm:$0xf] %v2683
      %v2685 = vld [vmem:[#allocation2 + $0x3c] sm:$0x1]
      %v2686 = vsel %vm2642, %v2597, %v2685
      %2687 = vst [vmem:[#allocation2 + $0x3c] sm:$0x1] %v2686
      %v2688 = vld [vmem:[#allocation2 + $0x40] sm:$0xf]
      %v2689 = vsel %vm2636, %v2604, %v2688
      %2690 = vst [vmem:[#allocation2 + $0x40] sm:$0xf] %v2689
      %v2691 = vld [vmem:[#allocation2 + $0x44] sm:$0x1]
      %v2692 = vsel %vm2642, %v2605, %v2691
      %2693 = vst [vmem:[#allocation2 + $0x44] sm:$0x1] %v2692
      %v2694 = vld [vmem:[#allocation2 + $0x48] sm:$0xf]
      %v2695 = vsel %vm2636, %v2612, %v2694
      %2696 = vst [vmem:[#allocation2 + $0x48] sm:$0xf] %v2695
      %v2697 = vld [vmem:[#allocation2 + $0x4c] sm:$0x1]
      %v2698 = vsel %vm2642, %v2613, %v2697
      %2699 = vst [vmem:[#allocation2 + $0x4c] sm:$0x1] %v2698
      %v2700 = vld [vmem:[#allocation2] sm:$0x1]
      %v2701 = vsel %vm2642, 0, %v2700
      %2702 = vst [vmem:[#allocation2] sm:$0x1] %v2701
      %v2703 = vld [vmem:[#allocation2 + $0x8] sm:$0x1]
      %v2704 = vsel %vm2642, 0, %v2703
      %2705 = vst [vmem:[#allocation2 + $0x8] sm:$0x1] %v2704
      %v2706 = vld [vmem:[#allocation2 + $0x10] sm:$0x1]
      %v2707 = vsel %vm2642, 0, %v2706
      %2708 = vst [vmem:[#allocation2 + $0x10] sm:$0x1] %v2707
      %v2709 = vld [vmem:[#allocation2 + $0x18] sm:$0x1]
      %v2710 = vsel %vm2642, 0, %v2709
      %2711 = vst [vmem:[#allocation2 + $0x18] sm:$0x1] %v2710
      %v2712 = vld [vmem:[#allocation2 + $0x20] sm:$0x1]
      %v2713 = vsel %vm2642, 0, %v2712
      %2714 = vst [vmem:[#allocation2 + $0x20] sm:$0x1] %v2713
      %v2715 = vld [vmem:[#allocation2 + $0x28] sm:$0x1]
      %v2716 = vsel %vm2642, 0, %v2715
      %2717 = vst [vmem:[#allocation2 + $0x28] sm:$0x1] %v2716
      %v2718 = vld [vmem:[#allocation2 + $0x30] sm:$0x1]
      %v2719 = vsel %vm2642, 0, %v2718
      %2720 = vst [vmem:[#allocation2 + $0x30] sm:$0x1] %v2719
      %v2721 = vld [vmem:[#allocation2 + $0x38] sm:$0x1]
      %v2722 = vsel %vm2642, 0, %v2721
      %2723 = vst [vmem:[#allocation2 + $0x38] sm:$0x1] %v2722
      %v2724 = vld [vmem:[#allocation2 + $0x40] sm:$0x1]
      %v2725 = vsel %vm2642, 0, %v2724
      %2726 = vst [vmem:[#allocation2 + $0x40] sm:$0x1] %v2725
      %v2727 = vld [vmem:[#allocation2 + $0x48] sm:$0x1]
      %v2728 = vsel %vm2642, 0, %v2727
      %2729 = vst [vmem:[#allocation2 + $0x48] sm:$0x1] %v2728
      %vm2730 = vmand %vm2640, %vm2635
      %v2731 = vld [vmem:[#allocation2 + $0x4] sm:$0x1]
      %v2732 = vsel %vm2730, 0, %v2731
      %2733 = vst [vmem:[#allocation2 + $0x4] sm:$0x1] %v2732
      %v2734 = vld [vmem:[#allocation2 + $0xc] sm:$0x1]
      %v2735 = vsel %vm2730, 0, %v2734
      %2736 = vst [vmem:[#allocation2 + $0xc] sm:$0x1] %v2735
      %v2737 = vld [vmem:[#allocation2 + $0x14] sm:$0x1]
      %v2738 = vsel %vm2730, 0, %v2737
      %2739 = vst [vmem:[#allocation2 + $0x14] sm:$0x1] %v2738
      %v2740 = vld [vmem:[#allocation2 + $0x1c] sm:$0x1]
      %v2741 = vsel %vm2730, 0, %v2740
      %2742 = vst [vmem:[#allocation2 + $0x1c] sm:$0x1] %v2741
      %v2743 = vld [vmem:[#allocation2 + $0x24] sm:$0x1]
      %v2744 = vsel %vm2730, 0, %v2743
      %2745 = vst [vmem:[#allocation2 + $0x24] sm:$0x1] %v2744
      %v2746 = vld [vmem:[#allocation2 + $0x2c] sm:$0x1]
      %v2747 = vsel %vm2730, 0, %v2746
      %2748 = vst [vmem:[#allocation2 + $0x2c] sm:$0x1] %v2747
      %v2749 = vld [vmem:[#allocation2 + $0x34] sm:$0x1]
      %v2750 = vsel %vm2730, 0, %v2749
      %2751 = vst [vmem:[#allocation2 + $0x34] sm:$0x1] %v2750
      %v2752 = vld [vmem:[#allocation2 + $0x3c] sm:$0x1]
      %v2753 = vsel %vm2730, 0, %v2752
      %2754 = vst [vmem:[#allocation2 + $0x3c] sm:$0x1] %v2753
      %v2755 = vld [vmem:[#allocation2 + $0x44] sm:$0x1]
      %v2756 = vsel %vm2730, 0, %v2755
      %2757 = vst [vmem:[#allocation2 + $0x44] sm:$0x1] %v2756
      %v2758 = vld [vmem:[#allocation2 + $0x4c] sm:$0x1]
      %v2759 = vsel %vm2730, 0, %v2758
      %2760 = vst [vmem:[#allocation2 + $0x4c] sm:$0x1] %v2759
      %p2761 = scmp.eq.s32.totalorder %s20, 0
      // Predicated region
      $region37: #{pgconv_forward.2} parent=35 // pred_check
        %p2762 = pneg %p2761
      $region38: #{pgconv_forward.2} parent=35 // pred_check_branch
        %2764 = sbr.rel (%p2762) target = $region40
      $region39: #{pgconv_forward.2} parent=35 // pred_region
        %2765 = vst [vmem:[#allocation2] sm:$0xf] 0
        %2766 = vst [vmem:[#allocation2 + $0x4] sm:$0x1] 0
        %s2767 = scalar_lea.vmem [#allocation2], 72
        %2768 = vst [vmem:[%s2767] sm:$0xf] 0
        %2769 = vst [vmem:[%s2767 + $0x4] sm:$0x1] 0
      $region40: #{pgconv_forward.2} parent=35 // pred_fallthru
        _
      %v2770 = vld [vmem:[%s2] sm:$0xff]
      %v2771 = vld [vmem:[%s2 + $0x8] sm:$0x1]
      %v2772 = vld [vmem:[#allocation2] sm:$0xf]
      %v2773 = vld [vmem:[#allocation2 + $0x8] sm:$0xf]
      %v2774 = vld [vmem:[#allocation2 + $0x10] sm:$0xf]
      %v2775 = vld [vmem:[#allocation2 + $0x18] sm:$0xf]
      %v2776 = vld [vmem:[#allocation2 + $0x20] sm:$0xf]
      %v2777 = vld [vmem:[#allocation2 + $0x28] sm:$0xf]
      %v2778 = vld [vmem:[#allocation2 + $0x30] sm:$0xf]
      %v2779 = vld [vmem:[#allocation2 + $0x38] sm:$0xf]
      %v2780 = vunpack.c.l.bf16 %v2772
      %v2781 = vunpack.c.l.bf16 %v2773
      %v2782 = vunpack.c.l.bf16 %v2774
      %v2783 = vunpack.c.l.bf16 %v2775
      %v2784 = vunpack.c.l.bf16 %v2776
      %v2785 = vunpack.c.l.bf16 %v2777
      %v2786 = vunpack.c.l.bf16 %v2778
      %v2787 = vunpack.c.l.bf16 %v2779
      %v2788 = vlaneseq
      %v2789 = vshrl.u32 %v2788, 7
      %v2790 = vsub.s32 0, %v2789
      %v2791 = vrot.slane %v2770, %v2790
      %v2792 = vmul.f32 %v2780, %v2791
      %v2793 = vmul.f32 %v2781, %v2791
      %v2794 = vmul.f32 %v2782, %v2791
      %v2795 = vmul.f32 %v2783, %v2791
      %v2796 = vmul.f32 %v2784, %v2791
      %v2797 = vmul.f32 %v2785, %v2791
      %v2798 = vmul.f32 %v2786, %v2791
      %v2799 = vmul.f32 %v2787, %v2791
      %v2800 = vadd.f32 %v2792, 0.0
      %v2801 = vadd.f32 %v2793, 0.0
      %v2802 = vadd.f32 %v2794, 0.0
      %v2803 = vadd.f32 %v2795, 0.0
      %v2804 = vadd.f32 %v2796, 0.0
      %v2805 = vadd.f32 %v2797, 0.0
      %v2806 = vadd.f32 %v2798, 0.0
      %v2807 = vadd.f32 %v2799, 0.0
      %v2808 = vld [vmem:[#allocation2 + $0x4] sm:$0x1]
      %v2809 = vld [vmem:[#allocation2 + $0xc] sm:$0x1]
      %v2810 = vld [vmem:[#allocation2 + $0x14] sm:$0x1]
      %v2811 = vld [vmem:[#allocation2 + $0x1c] sm:$0x1]
      %v2812 = vld [vmem:[#allocation2 + $0x24] sm:$0x1]
      %v2813 = vld [vmem:[#allocation2 + $0x2c] sm:$0x1]
      %v2814 = vld [vmem:[#allocation2 + $0x34] sm:$0x1]
      %v2815 = vld [vmem:[#allocation2 + $0x3c] sm:$0x1]
      %v2816 = vunpack.c.l.bf16 %v2808
      %v2817 = vunpack.c.l.bf16 %v2809
      %v2818 = vunpack.c.l.bf16 %v2810
      %v2819 = vunpack.c.l.bf16 %v2811
      %v2820 = vunpack.c.l.bf16 %v2812
      %v2821 = vunpack.c.l.bf16 %v2813
      %v2822 = vunpack.c.l.bf16 %v2814
      %v2823 = vunpack.c.l.bf16 %v2815
      %v2824 = vlaneseq
      %v2825 = vshrl.u32 %v2824, 7
      %v2826 = vsub.s32 1, %v2825
      %v2827 = vrot.slane %v2770, %v2826
      %v2828 = vmul.f32 %v2780, %v2827
      %v2829 = vmul.f32 %v2816, %v2827
      %v2830 = vmul.f32 %v2781, %v2827
      %v2831 = vmul.f32 %v2817, %v2827
      %v2832 = vmul.f32 %v2782, %v2827
      %v2833 = vmul.f32 %v2818, %v2827
      %v2834 = vmul.f32 %v2783, %v2827
      %v2835 = vmul.f32 %v2819, %v2827
      %v2836 = vmul.f32 %v2784, %v2827
      %v2837 = vmul.f32 %v2820, %v2827
      %v2838 = vmul.f32 %v2785, %v2827
      %v2839 = vmul.f32 %v2821, %v2827
      %v2840 = vmul.f32 %v2786, %v2827
      %v2841 = vmul.f32 %v2822, %v2827
      %v2842 = vmul.f32 %v2787, %v2827
      %v2843 = vmul.f32 %v2823, %v2827
      %v2860 = vrot.slane %v2828, 1
      %v2861 = vrot.slane %v2829, 1
      %v2862 = vsel %vm2337, %v2860, %v2861
      %v2863 = vrot.slane %v2830, 1
      %v2864 = vrot.slane %v2831, 1
      %v2865 = vsel %vm2337, %v2863, %v2864
      %v2866 = vrot.slane %v2832, 1
      %v2867 = vrot.slane %v2833, 1
      %v2868 = vsel %vm2337, %v2866, %v2867
      %v2869 = vrot.slane %v2834, 1
      %v2870 = vrot.slane %v2835, 1
      %v2871 = vsel %vm2337, %v2869, %v2870
      %v2872 = vrot.slane %v2836, 1
      %v2873 = vrot.slane %v2837, 1
      %v2874 = vsel %vm2337, %v2872, %v2873
      %v2875 = vrot.slane %v2838, 1
      %v2876 = vrot.slane %v2839, 1
      %v2877 = vsel %vm2337, %v2875, %v2876
      %v2878 = vrot.slane %v2840, 1
      %v2879 = vrot.slane %v2841, 1
      %v2880 = vsel %vm2337, %v2878, %v2879
      %v2881 = vrot.slane %v2842, 1
      %v2882 = vrot.slane %v2843, 1
      %v2883 = vsel %vm2337, %v2881, %v2882
      %v2892 = vadd.f32 %v2800, %v2862
      %v2893 = vadd.f32 %v2801, %v2865
      %v2894 = vadd.f32 %v2802, %v2868
      %v2895 = vadd.f32 %v2803, %v2871
      %v2896 = vadd.f32 %v2804, %v2874
      %v2897 = vadd.f32 %v2805, %v2877
      %v2898 = vadd.f32 %v2806, %v2880
      %v2899 = vadd.f32 %v2807, %v2883
      %v2900 = vld [vmem:[#allocation2] sm:$0xe]
      %v2901 = vld [vmem:[#allocation2 + $0x8] sm:$0xe]
      %v2902 = vld [vmem:[#allocation2 + $0x10] sm:$0xe]
      %v2903 = vld [vmem:[#allocation2 + $0x18] sm:$0xe]
      %v2904 = vld [vmem:[#allocation2 + $0x20] sm:$0xe]
      %v2905 = vld [vmem:[#allocation2 + $0x28] sm:$0xe]
      %v2906 = vld [vmem:[#allocation2 + $0x30] sm:$0xe]
      %v2907 = vld [vmem:[#allocation2 + $0x38] sm:$0xe]
      %v2908 = vunpack.c.l.bf16 %v2900
      %v2909 = vunpack.c.l.bf16 %v2901
      %v2910 = vunpack.c.l.bf16 %v2902
      %v2911 = vunpack.c.l.bf16 %v2903
      %v2912 = vunpack.c.l.bf16 %v2904
      %v2913 = vunpack.c.l.bf16 %v2905
      %v2914 = vunpack.c.l.bf16 %v2906
      %v2915 = vunpack.c.l.bf16 %v2907
      %v2916 = vlaneseq
      %v2917 = vshrl.u32 %v2916, 7
      %v2918 = vsub.s32 2, %v2917
      %v2919 = vrot.slane %v2770, %v2918
      %v2920 = vmul.f32 %v2908, %v2919
      %v2921 = vmul.f32 %v2816, %v2919
      %v2922 = vmul.f32 %v2909, %v2919
      %v2923 = vmul.f32 %v2817, %v2919
      %v2924 = vmul.f32 %v2910, %v2919
      %v2925 = vmul.f32 %v2818, %v2919
      %v2926 = vmul.f32 %v2911, %v2919
      %v2927 = vmul.f32 %v2819, %v2919
      %v2928 = vmul.f32 %v2912, %v2919
      %v2929 = vmul.f32 %v2820, %v2919
      %v2930 = vmul.f32 %v2913, %v2919
      %v2931 = vmul.f32 %v2821, %v2919
      %v2932 = vmul.f32 %v2914, %v2919
      %v2933 = vmul.f32 %v2822, %v2919
      %v2934 = vmul.f32 %v2915, %v2919
      %v2935 = vmul.f32 %v2823, %v2919
      %vm2952 = vcmask 1045504
      %v2953 = vrot.slane %v2920, 2
      %v2954 = vrot.slane %v2921, 2
      %v2955 = vsel %vm2952, %v2953, %v2954
      %v2956 = vrot.slane %v2922, 2
      %v2957 = vrot.slane %v2923, 2
      %v2958 = vsel %vm2952, %v2956, %v2957
      %v2959 = vrot.slane %v2924, 2
      %v2960 = vrot.slane %v2925, 2
      %v2961 = vsel %vm2952, %v2959, %v2960
      %v2962 = vrot.slane %v2926, 2
      %v2963 = vrot.slane %v2927, 2
      %v2964 = vsel %vm2952, %v2962, %v2963
      %v2965 = vrot.slane %v2928, 2
      %v2966 = vrot.slane %v2929, 2
      %v2967 = vsel %vm2952, %v2965, %v2966
      %v2968 = vrot.slane %v2930, 2
      %v2969 = vrot.slane %v2931, 2
      %v2970 = vsel %vm2952, %v2968, %v2969
      %v2971 = vrot.slane %v2932, 2
      %v2972 = vrot.slane %v2933, 2
      %v2973 = vsel %vm2952, %v2971, %v2972
      %v2974 = vrot.slane %v2934, 2
      %v2975 = vrot.slane %v2935, 2
      %v2976 = vsel %vm2952, %v2974, %v2975
      %v2985 = vadd.f32 %v2892, %v2955
      %v2986 = vadd.f32 %v2893, %v2958
      %v2987 = vadd.f32 %v2894, %v2961
      %v2988 = vadd.f32 %v2895, %v2964
      %v2989 = vadd.f32 %v2896, %v2967
      %v2990 = vadd.f32 %v2897, %v2970
      %v2991 = vadd.f32 %v2898, %v2973
      %v2992 = vadd.f32 %v2899, %v2976
      %s2993 = scalar_lea.vmem [#allocation2], 8
      %v2994 = vld [vmem:[%s2993] sm:$0xf]
      %v2995 = vld [vmem:[%s2993 + $0x8] sm:$0xf]
      %v2996 = vld [vmem:[%s2993 + $0x10] sm:$0xf]
      %v2997 = vld [vmem:[%s2993 + $0x18] sm:$0xf]
      %v2998 = vld [vmem:[%s2993 + $0x20] sm:$0xf]
      %v2999 = vld [vmem:[%s2993 + $0x28] sm:$0xf]
      %v3000 = vld [vmem:[%s2993 + $0x30] sm:$0xf]
      %v3001 = vld [vmem:[%s2993 + $0x38] sm:$0xf]
      %v3002 = vunpack.c.l.bf16 %v2994
      %v3003 = vunpack.c.l.bf16 %v2995
      %v3004 = vunpack.c.l.bf16 %v2996
      %v3005 = vunpack.c.l.bf16 %v2997
      %v3006 = vunpack.c.l.bf16 %v2998
      %v3007 = vunpack.c.l.bf16 %v2999
      %v3008 = vunpack.c.l.bf16 %v3000
      %v3009 = vunpack.c.l.bf16 %v3001
      %v3010 = vlaneseq
      %v3011 = vshrl.u32 %v3010, 7
      %v3012 = vsub.s32 3, %v3011
      %v3013 = vrot.slane %v2770, %v3012
      %v3014 = vmul.f32 %v3002, %v3013
      %v3015 = vmul.f32 %v3003, %v3013
      %v3016 = vmul.f32 %v3004, %v3013
      %v3017 = vmul.f32 %v3005, %v3013
      %v3018 = vmul.f32 %v3006, %v3013
      %v3019 = vmul.f32 %v3007, %v3013
      %v3020 = vmul.f32 %v3008, %v3013
      %v3021 = vmul.f32 %v3009, %v3013
      %v3022 = vadd.f32 %v2985, %v3014
      %v3023 = vadd.f32 %v2986, %v3015
      %v3024 = vadd.f32 %v2987, %v3016
      %v3025 = vadd.f32 %v2988, %v3017
      %v3026 = vadd.f32 %v2989, %v3018
      %v3027 = vadd.f32 %v2990, %v3019
      %v3028 = vadd.f32 %v2991, %v3020
      %v3029 = vadd.f32 %v2992, %v3021
      %v3030 = vld [vmem:[%s2993 + $0x4] sm:$0x1]
      %v3031 = vld [vmem:[%s2993 + $0xc] sm:$0x1]
      %v3032 = vld [vmem:[%s2993 + $0x14] sm:$0x1]
      %v3033 = vld [vmem:[%s2993 + $0x1c] sm:$0x1]
      %v3034 = vld [vmem:[%s2993 + $0x24] sm:$0x1]
      %v3035 = vld [vmem:[%s2993 + $0x2c] sm:$0x1]
      %v3036 = vld [vmem:[%s2993 + $0x34] sm:$0x1]
      %v3037 = vld [vmem:[%s2993 + $0x3c] sm:$0x1]
      %v3038 = vunpack.c.l.bf16 %v3030
      %v3039 = vunpack.c.l.bf16 %v3031
      %v3040 = vunpack.c.l.bf16 %v3032
      %v3041 = vunpack.c.l.bf16 %v3033
      %v3042 = vunpack.c.l.bf16 %v3034
      %v3043 = vunpack.c.l.bf16 %v3035
      %v3044 = vunpack.c.l.bf16 %v3036
      %v3045 = vunpack.c.l.bf16 %v3037
      %v3046 = vlaneseq
      %v3047 = vshrl.u32 %v3046, 7
      %v3048 = vsub.s32 4, %v3047
      %v3049 = vrot.slane %v2770, %v3048
      %v3050 = vmul.f32 %v3002, %v3049
      %v3051 = vmul.f32 %v3038, %v3049
      %v3052 = vmul.f32 %v3003, %v3049
      %v3053 = vmul.f32 %v3039, %v3049
      %v3054 = vmul.f32 %v3004, %v3049
      %v3055 = vmul.f32 %v3040, %v3049
      %v3056 = vmul.f32 %v3005, %v3049
      %v3057 = vmul.f32 %v3041, %v3049
      %v3058 = vmul.f32 %v3006, %v3049
      %v3059 = vmul.f32 %v3042, %v3049
      %v3060 = vmul.f32 %v3007, %v3049
      %v3061 = vmul.f32 %v3043, %v3049
      %v3062 = vmul.f32 %v3008, %v3049
      %v3063 = vmul.f32 %v3044, %v3049
      %v3064 = vmul.f32 %v3009, %v3049
      %v3065 = vmul.f32 %v3045, %v3049
      %v3082 = vrot.slane %v3050, 1
      %v3083 = vrot.slane %v3051, 1
      %v3084 = vsel %vm2337, %v3082, %v3083
      %v3085 = vrot.slane %v3052, 1
      %v3086 = vrot.slane %v3053, 1
      %v3087 = vsel %vm2337, %v3085, %v3086
      %v3088 = vrot.slane %v3054, 1
      %v3089 = vrot.slane %v3055, 1
      %v3090 = vsel %vm2337, %v3088, %v3089
      %v3091 = vrot.slane %v3056, 1
      %v3092 = vrot.slane %v3057, 1
      %v3093 = vsel %vm2337, %v3091, %v3092
      %v3094 = vrot.slane %v3058, 1
      %v3095 = vrot.slane %v3059, 1
      %v3096 = vsel %vm2337, %v3094, %v3095
      %v3097 = vrot.slane %v3060, 1
      %v3098 = vrot.slane %v3061, 1
      %v3099 = vsel %vm2337, %v3097, %v3098
      %v3100 = vrot.slane %v3062, 1
      %v3101 = vrot.slane %v3063, 1
      %v3102 = vsel %vm2337, %v3100, %v3101
      %v3103 = vrot.slane %v3064, 1
      %v3104 = vrot.slane %v3065, 1
      %v3105 = vsel %vm2337, %v3103, %v3104
      %v3114 = vadd.f32 %v3022, %v3084
      %v3115 = vadd.f32 %v3023, %v3087
      %v3116 = vadd.f32 %v3024, %v3090
      %v3117 = vadd.f32 %v3025, %v3093
      %v3118 = vadd.f32 %v3026, %v3096
      %v3119 = vadd.f32 %v3027, %v3099
      %v3120 = vadd.f32 %v3028, %v3102
      %v3121 = vadd.f32 %v3029, %v3105
      %v3122 = vld [vmem:[%s2993] sm:$0xe]
      %v3123 = vld [vmem:[%s2993 + $0x8] sm:$0xe]
      %v3124 = vld [vmem:[%s2993 + $0x10] sm:$0xe]
      %v3125 = vld [vmem:[%s2993 + $0x18] sm:$0xe]
      %v3126 = vld [vmem:[%s2993 + $0x20] sm:$0xe]
      %v3127 = vld [vmem:[%s2993 + $0x28] sm:$0xe]
      %v3128 = vld [vmem:[%s2993 + $0x30] sm:$0xe]
      %v3129 = vld [vmem:[%s2993 + $0x38] sm:$0xe]
      %v3130 = vunpack.c.l.bf16 %v3122
      %v3131 = vunpack.c.l.bf16 %v3123
      %v3132 = vunpack.c.l.bf16 %v3124
      %v3133 = vunpack.c.l.bf16 %v3125
      %v3134 = vunpack.c.l.bf16 %v3126
      %v3135 = vunpack.c.l.bf16 %v3127
      %v3136 = vunpack.c.l.bf16 %v3128
      %v3137 = vunpack.c.l.bf16 %v3129
      %v3138 = vlaneseq
      %v3139 = vshrl.u32 %v3138, 7
      %v3140 = vsub.s32 5, %v3139
      %v3141 = vrot.slane %v2770, %v3140
      %v3142 = vmul.f32 %v3130, %v3141
      %v3143 = vmul.f32 %v3038, %v3141
      %v3144 = vmul.f32 %v3131, %v3141
      %v3145 = vmul.f32 %v3039, %v3141
      %v3146 = vmul.f32 %v3132, %v3141
      %v3147 = vmul.f32 %v3040, %v3141
      %v3148 = vmul.f32 %v3133, %v3141
      %v3149 = vmul.f32 %v3041, %v3141
      %v3150 = vmul.f32 %v3134, %v3141
      %v3151 = vmul.f32 %v3042, %v3141
      %v3152 = vmul.f32 %v3135, %v3141
      %v3153 = vmul.f32 %v3043, %v3141
      %v3154 = vmul.f32 %v3136, %v3141
      %v3155 = vmul.f32 %v3044, %v3141
      %v3156 = vmul.f32 %v3137, %v3141
      %v3157 = vmul.f32 %v3045, %v3141
      %v3174 = vrot.slane %v3142, 2
      %v3175 = vrot.slane %v3143, 2
      %v3176 = vsel %vm2952, %v3174, %v3175
      %v3177 = vrot.slane %v3144, 2
      %v3178 = vrot.slane %v3145, 2
      %v3179 = vsel %vm2952, %v3177, %v3178
      %v3180 = vrot.slane %v3146, 2
      %v3181 = vrot.slane %v3147, 2
      %v3182 = vsel %vm2952, %v3180, %v3181
      %v3183 = vrot.slane %v3148, 2
      %v3184 = vrot.slane %v3149, 2
      %v3185 = vsel %vm2952, %v3183, %v3184
      %v3186 = vrot.slane %v3150, 2
      %v3187 = vrot.slane %v3151, 2
      %v3188 = vsel %vm2952, %v3186, %v3187
      %v3189 = vrot.slane %v3152, 2
      %v3190 = vrot.slane %v3153, 2
      %v3191 = vsel %vm2952, %v3189, %v3190
      %v3192 = vrot.slane %v3154, 2
      %v3193 = vrot.slane %v3155, 2
      %v3194 = vsel %vm2952, %v3192, %v3193
      %v3195 = vrot.slane %v3156, 2
      %v3196 = vrot.slane %v3157, 2
      %v3197 = vsel %vm2952, %v3195, %v3196
      %v3206 = vadd.f32 %v3114, %v3176
      %v3207 = vadd.f32 %v3115, %v3179
      %v3208 = vadd.f32 %v3116, %v3182
      %v3209 = vadd.f32 %v3117, %v3185
      %v3210 = vadd.f32 %v3118, %v3188
      %v3211 = vadd.f32 %v3119, %v3191
      %v3212 = vadd.f32 %v3120, %v3194
      %v3213 = vadd.f32 %v3121, %v3197
      %s3214 = scalar_lea.vmem [#allocation2], 16
      %v3215 = vld [vmem:[%s3214] sm:$0xf]
      %v3216 = vld [vmem:[%s3214 + $0x8] sm:$0xf]
      %v3217 = vld [vmem:[%s3214 + $0x10] sm:$0xf]
      %v3218 = vld [vmem:[%s3214 + $0x18] sm:$0xf]
      %v3219 = vld [vmem:[%s3214 + $0x20] sm:$0xf]
      %v3220 = vld [vmem:[%s3214 + $0x28] sm:$0xf]
      %v3221 = vld [vmem:[%s3214 + $0x30] sm:$0xf]
      %v3222 = vld [vmem:[%s3214 + $0x38] sm:$0xf]
      %v3223 = vunpack.c.l.bf16 %v3215
      %v3224 = vunpack.c.l.bf16 %v3216
      %v3225 = vunpack.c.l.bf16 %v3217
      %v3226 = vunpack.c.l.bf16 %v3218
      %v3227 = vunpack.c.l.bf16 %v3219
      %v3228 = vunpack.c.l.bf16 %v3220
      %v3229 = vunpack.c.l.bf16 %v3221
      %v3230 = vunpack.c.l.bf16 %v3222
      %v3231 = vlaneseq
      %v3232 = vshrl.u32 %v3231, 7
      %v3233 = vsub.s32 6, %v3232
      %v3234 = vrot.slane %v2770, %v3233
      %v3235 = vmul.f32 %v3223, %v3234
      %v3236 = vmul.f32 %v3224, %v3234
      %v3237 = vmul.f32 %v3225, %v3234
      %v3238 = vmul.f32 %v3226, %v3234
      %v3239 = vmul.f32 %v3227, %v3234
      %v3240 = vmul.f32 %v3228, %v3234
      %v3241 = vmul.f32 %v3229, %v3234
      %v3242 = vmul.f32 %v3230, %v3234
      %v3243 = vadd.f32 %v3206, %v3235
      %v3244 = vadd.f32 %v3207, %v3236
      %v3245 = vadd.f32 %v3208, %v3237
      %v3246 = vadd.f32 %v3209, %v3238
      %v3247 = vadd.f32 %v3210, %v3239
      %v3248 = vadd.f32 %v3211, %v3240
      %v3249 = vadd.f32 %v3212, %v3241
      %v3250 = vadd.f32 %v3213, %v3242
      %v3251 = vld [vmem:[%s3214 + $0x4] sm:$0x1]
      %v3252 = vld [vmem:[%s3214 + $0xc] sm:$0x1]
      %v3253 = vld [vmem:[%s3214 + $0x14] sm:$0x1]
      %v3254 = vld [vmem:[%s3214 + $0x1c] sm:$0x1]
      %v3255 = vld [vmem:[%s3214 + $0x24] sm:$0x1]
      %v3256 = vld [vmem:[%s3214 + $0x2c] sm:$0x1]
      %v3257 = vld [vmem:[%s3214 + $0x34] sm:$0x1]
      %v3258 = vld [vmem:[%s3214 + $0x3c] sm:$0x1]
      %v3259 = vunpack.c.l.bf16 %v3251
      %v3260 = vunpack.c.l.bf16 %v3252
      %v3261 = vunpack.c.l.bf16 %v3253
      %v3262 = vunpack.c.l.bf16 %v3254
      %v3263 = vunpack.c.l.bf16 %v3255
      %v3264 = vunpack.c.l.bf16 %v3256
      %v3265 = vunpack.c.l.bf16 %v3257
      %v3266 = vunpack.c.l.bf16 %v3258
      %v3267 = vlaneseq
      %v3268 = vshrl.u32 %v3267, 7
      %v3269 = vsub.s32 7, %v3268
      %v3270 = vrot.slane %v2770, %v3269
      %v3271 = vmul.f32 %v3223, %v3270
      %v3272 = vmul.f32 %v3259, %v3270
      %v3273 = vmul.f32 %v3224, %v3270
      %v3274 = vmul.f32 %v3260, %v3270
      %v3275 = vmul.f32 %v3225, %v3270
      %v3276 = vmul.f32 %v3261, %v3270
      %v3277 = vmul.f32 %v3226, %v3270
      %v3278 = vmul.f32 %v3262, %v3270
      %v3279 = vmul.f32 %v3227, %v3270
      %v3280 = vmul.f32 %v3263, %v3270
      %v3281 = vmul.f32 %v3228, %v3270
      %v3282 = vmul.f32 %v3264, %v3270
      %v3283 = vmul.f32 %v3229, %v3270
      %v3284 = vmul.f32 %v3265, %v3270
      %v3285 = vmul.f32 %v3230, %v3270
      %v3286 = vmul.f32 %v3266, %v3270
      %v3303 = vrot.slane %v3271, 1
      %v3304 = vrot.slane %v3272, 1
      %v3305 = vsel %vm2337, %v3303, %v3304
      %v3306 = vrot.slane %v3273, 1
      %v3307 = vrot.slane %v3274, 1
      %v3308 = vsel %vm2337, %v3306, %v3307
      %v3309 = vrot.slane %v3275, 1
      %v3310 = vrot.slane %v3276, 1
      %v3311 = vsel %vm2337, %v3309, %v3310
      %v3312 = vrot.slane %v3277, 1
      %v3313 = vrot.slane %v3278, 1
      %v3314 = vsel %vm2337, %v3312, %v3313
      %v3315 = vrot.slane %v3279, 1
      %v3316 = vrot.slane %v3280, 1
      %v3317 = vsel %vm2337, %v3315, %v3316
      %v3318 = vrot.slane %v3281, 1
      %v3319 = vrot.slane %v3282, 1
      %v3320 = vsel %vm2337, %v3318, %v3319
      %v3321 = vrot.slane %v3283, 1
      %v3322 = vrot.slane %v3284, 1
      %v3323 = vsel %vm2337, %v3321, %v3322
      %v3324 = vrot.slane %v3285, 1
      %v3325 = vrot.slane %v3286, 1
      %v3326 = vsel %vm2337, %v3324, %v3325
      %v3335 = vadd.f32 %v3243, %v3305
      %v3336 = vadd.f32 %v3244, %v3308
      %v3337 = vadd.f32 %v3245, %v3311
      %v3338 = vadd.f32 %v3246, %v3314
      %v3339 = vadd.f32 %v3247, %v3317
      %v3340 = vadd.f32 %v3248, %v3320
      %v3341 = vadd.f32 %v3249, %v3323
      %v3342 = vadd.f32 %v3250, %v3326
      %v3343 = vld [vmem:[%s3214] sm:$0xe]
      %v3344 = vld [vmem:[%s3214 + $0x8] sm:$0xe]
      %v3345 = vld [vmem:[%s3214 + $0x10] sm:$0xe]
      %v3346 = vld [vmem:[%s3214 + $0x18] sm:$0xe]
      %v3347 = vld [vmem:[%s3214 + $0x20] sm:$0xe]
      %v3348 = vld [vmem:[%s3214 + $0x28] sm:$0xe]
      %v3349 = vld [vmem:[%s3214 + $0x30] sm:$0xe]
      %v3350 = vld [vmem:[%s3214 + $0x38] sm:$0xe]
      %v3351 = vunpack.c.l.bf16 %v3343
      %v3352 = vunpack.c.l.bf16 %v3344
      %v3353 = vunpack.c.l.bf16 %v3345
      %v3354 = vunpack.c.l.bf16 %v3346
      %v3355 = vunpack.c.l.bf16 %v3347
      %v3356 = vunpack.c.l.bf16 %v3348
      %v3357 = vunpack.c.l.bf16 %v3349
      %v3358 = vunpack.c.l.bf16 %v3350
      %v3359 = vlaneseq
      %v3360 = vshrl.u32 %v3359, 7
      %v3361 = vsub.s32 0, %v3360
      %v3362 = vrot.slane %v2771, %v3361
      %v3363 = vmul.f32 %v3351, %v3362
      %v3364 = vmul.f32 %v3259, %v3362
      %v3365 = vmul.f32 %v3352, %v3362
      %v3366 = vmul.f32 %v3260, %v3362
      %v3367 = vmul.f32 %v3353, %v3362
      %v3368 = vmul.f32 %v3261, %v3362
      %v3369 = vmul.f32 %v3354, %v3362
      %v3370 = vmul.f32 %v3262, %v3362
      %v3371 = vmul.f32 %v3355, %v3362
      %v3372 = vmul.f32 %v3263, %v3362
      %v3373 = vmul.f32 %v3356, %v3362
      %v3374 = vmul.f32 %v3264, %v3362
      %v3375 = vmul.f32 %v3357, %v3362
      %v3376 = vmul.f32 %v3265, %v3362
      %v3377 = vmul.f32 %v3358, %v3362
      %v3378 = vmul.f32 %v3266, %v3362
      %v3395 = vrot.slane %v3363, 2
      %v3396 = vrot.slane %v3364, 2
      %v3397 = vsel %vm2952, %v3395, %v3396
      %v3398 = vrot.slane %v3365, 2
      %v3399 = vrot.slane %v3366, 2
      %v3400 = vsel %vm2952, %v3398, %v3399
      %v3401 = vrot.slane %v3367, 2
      %v3402 = vrot.slane %v3368, 2
      %v3403 = vsel %vm2952, %v3401, %v3402
      %v3404 = vrot.slane %v3369, 2
      %v3405 = vrot.slane %v3370, 2
      %v3406 = vsel %vm2952, %v3404, %v3405
      %v3407 = vrot.slane %v3371, 2
      %v3408 = vrot.slane %v3372, 2
      %v3409 = vsel %vm2952, %v3407, %v3408
      %v3410 = vrot.slane %v3373, 2
      %v3411 = vrot.slane %v3374, 2
      %v3412 = vsel %vm2952, %v3410, %v3411
      %v3413 = vrot.slane %v3375, 2
      %v3414 = vrot.slane %v3376, 2
      %v3415 = vsel %vm2952, %v3413, %v3414
      %v3416 = vrot.slane %v3377, 2
      %v3417 = vrot.slane %v3378, 2
      %v3418 = vsel %vm2952, %v3416, %v3417
      %v3427 = vadd.f32 %v3335, %v3397
      %v3428 = vadd.f32 %v3336, %v3400
      %v3429 = vadd.f32 %v3337, %v3403
      %v3430 = vadd.f32 %v3338, %v3406
      %v3431 = vadd.f32 %v3339, %v3409
      %v3432 = vadd.f32 %v3340, %v3412
      %v3433 = vadd.f32 %v3341, %v3415
      %v3434 = vadd.f32 %v3342, %v3418
      %v3435 = vlaneseq
      %v3436 = vshrl.u32 %v3435, 7
      %v3437 = vsub.s32 0, %v3436
      %v3438 = vrot.slane %v2390, %v3437
      %v3439 = vmul.f32 %v3427, %v3438
      %v3440 = vmul.f32 %v3428, %v3438
      %v3441 = vmul.f32 %v3429, %v3438
      %v3442 = vmul.f32 %v3430, %v3438
      %v3443 = vmul.f32 %v3431, %v3438
      %v3444 = vmul.f32 %v3432, %v3438
      %v3445 = vmul.f32 %v3433, %v3438
      %v3446 = vmul.f32 %v3434, %v3438
      %v3447 = vlaneseq
      %v3448 = vshrl.u32 %v3447, 7
      %v3449 = vsub.s32 0, %v3448
      %v3450 = vrot.slane %v2391, %v3449
      %v3451 = vadd.f32 %v3439, %v3450
      %v3452 = vadd.f32 %v3440, %v3450
      %v3453 = vadd.f32 %v3441, %v3450
      %v3454 = vadd.f32 %v3442, %v3450
      %v3455 = vadd.f32 %v3443, %v3450
      %v3456 = vadd.f32 %v3444, %v3450
      %v3457 = vadd.f32 %v3445, %v3450
      %v3458 = vadd.f32 %v3446, %v3450
      %v3459 = vxor.u32 %v3451, 2147483648
      %v3460 = vxor.u32 %v3452, 2147483648
      %v3461 = vxor.u32 %v3453, 2147483648
      %v3462 = vxor.u32 %v3454, 2147483648
      %v3463 = vxor.u32 %v3455, 2147483648
      %v3464 = vxor.u32 %v3456, 2147483648
      %v3465 = vxor.u32 %v3457, 2147483648
      %v3466 = vxor.u32 %v3458, 2147483648
      %v3467 = vmul.f32 %v3459, 1.442695
      %v3468 = vpow.pop %v3467
      %v3469 = vmul.f32 %v3460, 1.442695
      %v3470 = vpow.pop %v3469
      %v3471 = vmul.f32 %v3461, 1.442695
      %v3472 = vpow.pop %v3471
      %v3473 = vmul.f32 %v3462, 1.442695
      %v3474 = vpow.pop %v3473
      %v3475 = vmul.f32 %v3463, 1.442695
      %v3476 = vpow.pop %v3475
      %v3477 = vmul.f32 %v3464, 1.442695
      %v3478 = vpow.pop %v3477
      %v3479 = vmul.f32 %v3465, 1.442695
      %v3480 = vpow.pop %v3479
      %v3481 = vmul.f32 %v3466, 1.442695
      %v3482 = vpow.pop %v3481
      %v3483 = vadd.f32 %v3468, 1.0
      %v3484 = vadd.f32 %v3470, 1.0
      %v3485 = vadd.f32 %v3472, 1.0
      %v3486 = vadd.f32 %v3474, 1.0
      %v3487 = vadd.f32 %v3476, 1.0
      %v3488 = vadd.f32 %v3478, 1.0
      %v3489 = vadd.f32 %v3480, 1.0
      %v3490 = vadd.f32 %v3482, 1.0
      %v3491 = vrcp.pop %v3483
      %v3492 = vmul.f32 1.0, %v3491
      %v3493 = vrcp.pop %v3484
      %v3494 = vmul.f32 1.0, %v3493
      %v3495 = vrcp.pop %v3485
      %v3496 = vmul.f32 1.0, %v3495
      %v3497 = vrcp.pop %v3486
      %v3498 = vmul.f32 1.0, %v3497
      %v3499 = vrcp.pop %v3487
      %v3500 = vmul.f32 1.0, %v3499
      %v3501 = vrcp.pop %v3488
      %v3502 = vmul.f32 1.0, %v3501
      %v3503 = vrcp.pop %v3489
      %v3504 = vmul.f32 1.0, %v3503
      %v3505 = vrcp.pop %v3490
      %v3506 = vmul.f32 1.0, %v3505
      %v3507 = vmul.f32 %v3451, %v3492
      %v3508 = vmul.f32 %v3452, %v3494
      %v3509 = vmul.f32 %v3453, %v3496
      %v3510 = vmul.f32 %v3454, %v3498
      %v3511 = vmul.f32 %v3455, %v3500
      %v3512 = vmul.f32 %v3456, %v3502
      %v3513 = vmul.f32 %v3457, %v3504
      %v3514 = vmul.f32 %v3458, %v3506
      %v3515 = vlaneseq
      %v3516 = vshrl.u32 %v3515, 7
      %v3517 = vsub.s32 0, %v3516
      %v3518 = vrot.slane %v2394, %v3517
      %v3519 = vmul.f32 %v3507, %v3518
      %v3520 = vmul.f32 %v3508, %v3518
      %v3521 = vmul.f32 %v3509, %v3518
      %v3522 = vmul.f32 %v3510, %v3518
      %v3523 = vmul.f32 %v3511, %v3518
      %v3524 = vmul.f32 %v3512, %v3518
      %v3525 = vmul.f32 %v3513, %v3518
      %v3526 = vmul.f32 %v3514, %v3518
      %v3527 = vlaneseq
      %v3528 = vshrl.u32 %v3527, 7
      %v3529 = vsub.s32 0, %v3528
      %v3530 = vrot.slane %v2395, %v3529
      %v3531 = vadd.f32 %v3519, %v3530
      %v3532 = vadd.f32 %v3520, %v3530
      %v3533 = vadd.f32 %v3521, %v3530
      %v3534 = vadd.f32 %v3522, %v3530
      %v3535 = vadd.f32 %v3523, %v3530
      %v3536 = vadd.f32 %v3524, %v3530
      %v3537 = vadd.f32 %v3525, %v3530
      %v3538 = vadd.f32 %v3526, %v3530
      %v3539 = vxor.u32 %v3531, 2147483648
      %v3540 = vxor.u32 %v3532, 2147483648
      %v3541 = vxor.u32 %v3533, 2147483648
      %v3542 = vxor.u32 %v3534, 2147483648
      %v3543 = vxor.u32 %v3535, 2147483648
      %v3544 = vxor.u32 %v3536, 2147483648
      %v3545 = vxor.u32 %v3537, 2147483648
      %v3546 = vxor.u32 %v3538, 2147483648
      %v3547 = vmul.f32 %v3539, 1.442695
      %v3548 = vpow.pop %v3547
      %v3549 = vmul.f32 %v3540, 1.442695
      %v3550 = vpow.pop %v3549
      %v3551 = vmul.f32 %v3541, 1.442695
      %v3552 = vpow.pop %v3551
      %v3553 = vmul.f32 %v3542, 1.442695
      %v3554 = vpow.pop %v3553
      %v3555 = vmul.f32 %v3543, 1.442695
      %v3556 = vpow.pop %v3555
      %v3557 = vmul.f32 %v3544, 1.442695
      %v3558 = vpow.pop %v3557
      %v3559 = vmul.f32 %v3545, 1.442695
      %v3560 = vpow.pop %v3559
      %v3561 = vmul.f32 %v3546, 1.442695
      %v3562 = vpow.pop %v3561
      %v3563 = vadd.f32 %v3548, 1.0
      %v3564 = vadd.f32 %v3550, 1.0
      %v3565 = vadd.f32 %v3552, 1.0
      %v3566 = vadd.f32 %v3554, 1.0
      %v3567 = vadd.f32 %v3556, 1.0
      %v3568 = vadd.f32 %v3558, 1.0
      %v3569 = vadd.f32 %v3560, 1.0
      %v3570 = vadd.f32 %v3562, 1.0
      %v3571 = vrcp.pop %v3563
      %v3572 = vmul.f32 1.0, %v3571
      %v3573 = vrcp.pop %v3564
      %v3574 = vmul.f32 1.0, %v3573
      %v3575 = vrcp.pop %v3565
      %v3576 = vmul.f32 1.0, %v3575
      %v3577 = vrcp.pop %v3566
      %v3578 = vmul.f32 1.0, %v3577
      %v3579 = vrcp.pop %v3567
      %v3580 = vmul.f32 1.0, %v3579
      %v3581 = vrcp.pop %v3568
      %v3582 = vmul.f32 1.0, %v3581
      %v3583 = vrcp.pop %v3569
      %v3584 = vmul.f32 1.0, %v3583
      %v3585 = vrcp.pop %v3570
      %v3586 = vmul.f32 1.0, %v3585
      %v3587 = vmul.f32 %v3531, %v3572
      %v3588 = vmul.f32 %v3532, %v3574
      %v3589 = vmul.f32 %v3533, %v3576
      %v3590 = vmul.f32 %v3534, %v3578
      %v3591 = vmul.f32 %v3535, %v3580
      %v3592 = vmul.f32 %v3536, %v3582
      %v3593 = vmul.f32 %v3537, %v3584
      %v3594 = vmul.f32 %v3538, %v3586
      %v3595 = vlaneseq
      %v3596 = vshrl.u32 %v3595, 7
      %v3597 = vsub.s32 0, %v3596
      %v3598 = vrot.slane %v2392, %v3597
      %v3599 = vmul.f32 %v2485, %v3598
      %v3600 = vmul.f32 %v2486, %v3598
      %v3601 = vmul.f32 %v2487, %v3598
      %v3602 = vmul.f32 %v2488, %v3598
      %v3603 = vmul.f32 %v2489, %v3598
      %v3604 = vmul.f32 %v2490, %v3598
      %v3605 = vmul.f32 %v2491, %v3598
      %v3606 = vmul.f32 %v2492, %v3598
      %v3607 = vlaneseq
      %v3608 = vshrl.u32 %v3607, 7
      %v3609 = vsub.s32 0, %v3608
      %v3610 = vrot.slane %v2393, %v3609
      %v3611 = vadd.f32 %v3599, %v3610
      %v3612 = vadd.f32 %v3600, %v3610
      %v3613 = vadd.f32 %v3601, %v3610
      %v3614 = vadd.f32 %v3602, %v3610
      %v3615 = vadd.f32 %v3603, %v3610
      %v3616 = vadd.f32 %v3604, %v3610
      %v3617 = vadd.f32 %v3605, %v3610
      %v3618 = vadd.f32 %v3606, %v3610
      %v3619 = vxor.u32 %v3611, 2147483648
      %v3620 = vxor.u32 %v3612, 2147483648
      %v3621 = vxor.u32 %v3613, 2147483648
      %v3622 = vxor.u32 %v3614, 2147483648
      %v3623 = vxor.u32 %v3615, 2147483648
      %v3624 = vxor.u32 %v3616, 2147483648
      %v3625 = vxor.u32 %v3617, 2147483648
      %v3626 = vxor.u32 %v3618, 2147483648
      %v3627 = vmul.f32 %v3619, 1.442695
      %v3628 = vpow.pop %v3627
      %v3629 = vmul.f32 %v3620, 1.442695
      %v3630 = vpow.pop %v3629
      %v3631 = vmul.f32 %v3621, 1.442695
      %v3632 = vpow.pop %v3631
      %v3633 = vmul.f32 %v3622, 1.442695
      %v3634 = vpow.pop %v3633
      %v3635 = vmul.f32 %v3623, 1.442695
      %v3636 = vpow.pop %v3635
      %v3637 = vmul.f32 %v3624, 1.442695
      %v3638 = vpow.pop %v3637
      %v3639 = vmul.f32 %v3625, 1.442695
      %v3640 = vpow.pop %v3639
      %v3641 = vmul.f32 %v3626, 1.442695
      %v3642 = vpow.pop %v3641
      %v3643 = vadd.f32 %v3628, 1.0
      %v3644 = vadd.f32 %v3630, 1.0
      %v3645 = vadd.f32 %v3632, 1.0
      %v3646 = vadd.f32 %v3634, 1.0
      %v3647 = vadd.f32 %v3636, 1.0
      %v3648 = vadd.f32 %v3638, 1.0
      %v3649 = vadd.f32 %v3640, 1.0
      %v3650 = vadd.f32 %v3642, 1.0
      %v3651 = vrcp.pop %v3643
      %v3652 = vmul.f32 1.0, %v3651
      %v3653 = vrcp.pop %v3644
      %v3654 = vmul.f32 1.0, %v3653
      %v3655 = vrcp.pop %v3645
      %v3656 = vmul.f32 1.0, %v3655
      %v3657 = vrcp.pop %v3646
      %v3658 = vmul.f32 1.0, %v3657
      %v3659 = vrcp.pop %v3647
      %v3660 = vmul.f32 1.0, %v3659
      %v3661 = vrcp.pop %v3648
      %v3662 = vmul.f32 1.0, %v3661
      %v3663 = vrcp.pop %v3649
      %v3664 = vmul.f32 1.0, %v3663
      %v3665 = vrcp.pop %v3650
      %v3666 = vmul.f32 1.0, %v3665
      %v3667 = vmul.f32 %v3611, %v3652
      %v3668 = vmul.f32 %v3612, %v3654
      %v3669 = vmul.f32 %v3613, %v3656
      %v3670 = vmul.f32 %v3614, %v3658
      %v3671 = vmul.f32 %v3615, %v3660
      %v3672 = vmul.f32 %v3616, %v3662
      %v3673 = vmul.f32 %v3617, %v3664
      %v3674 = vmul.f32 %v3618, %v3666
      %v3675 = vpack.c.bf16 %v3667, %v3667
      %v3676 = vpack.c.bf16 %v3668, %v3668
      %v3677 = vpack.c.bf16 %v3669, %v3669
      %v3678 = vpack.c.bf16 %v3670, %v3670
      %v3679 = vpack.c.bf16 %v3671, %v3671
      %v3680 = vpack.c.bf16 %v3672, %v3672
      %v3681 = vpack.c.bf16 %v3673, %v3673
      %v3682 = vpack.c.bf16 %v3674, %v3674
      %3683 = vst [vmem:[%s228] sm:$0xf] %v3675
      %3684 = vst [vmem:[%s228 + $0x8] sm:$0xf] %v3676
      %3685 = vst [vmem:[%s228 + $0x10] sm:$0xf] %v3677
      %3686 = vst [vmem:[%s228 + $0x18] sm:$0xf] %v3678
      %3687 = vst [vmem:[%s228 + $0x20] sm:$0xf] %v3679
      %3688 = vst [vmem:[%s228 + $0x28] sm:$0xf] %v3680
      %3689 = vst [vmem:[%s228 + $0x30] sm:$0xf] %v3681
      %3690 = vst [vmem:[%s228 + $0x38] sm:$0xf] %v3682
      %v3691 = vpack.c.bf16 %v3587, %v3587
      %v3692 = vpack.c.bf16 %v3588, %v3588
      %v3693 = vpack.c.bf16 %v3589, %v3589
      %v3694 = vpack.c.bf16 %v3590, %v3590
      %v3695 = vpack.c.bf16 %v3591, %v3591
      %v3696 = vpack.c.bf16 %v3592, %v3592
      %v3697 = vpack.c.bf16 %v3593, %v3593
      %v3698 = vpack.c.bf16 %v3594, %v3594
      %3699 = vst [vmem:[%s228 + $0x4] sm:$0xf] %v3691
      %3700 = vst [vmem:[%s228 + $0xc] sm:$0xf] %v3692
      %3701 = vst [vmem:[%s228 + $0x14] sm:$0xf] %v3693
      %3702 = vst [vmem:[%s228 + $0x1c] sm:$0xf] %v3694
      %3703 = vst [vmem:[%s228 + $0x24] sm:$0xf] %v3695
      %3704 = vst [vmem:[%s228 + $0x2c] sm:$0xf] %v3696
      %3705 = vst [vmem:[%s228 + $0x34] sm:$0xf] %v3697
      %3706 = vst [vmem:[%s228 + $0x3c] sm:$0xf] %v3698
      %s3707 = smul.u32 8, %s20
      %p3708 = scmp.lt.s32.totalorder %s19, 1
      %s3709 = scalar_select %p3708, %s19, 1
      %p3710 = scmp.lt.s32.totalorder %s3707, 7
      %s3711 = scalar_select %p3710, %s3707, 7
      %s3712 = smul.addr %s3711, 2
      %s3713 = smul.addr %s3709, 16
      %s3714 = sadd.s32 %s3712, %s3713
      %s3715 = smul.addr %s3714, 4
      %s3716 = scalar_lea.vmem %s4, %s3715
      // Predicated region
      $region41: #{pgconv_forward.2} parent=35 // pred_check
        %p3717 = pneg %p138
      $region42: #{pgconv_forward.2} parent=35 // pred_check_branch
        %3719 = sbr.rel (%p3717) target = $region44
      $region43: #{pgconv_forward.2} parent=35 // pred_region
        %s3720 = smul.u32 8, %s20
      $region44: #{pgconv_forward.2} parent=35 // pred_fallthru
        _
    $region36: #{pgconv_forward.2} parent=5 // pred_fallthru
      _
    %p3721 = scmp.le.s32.totalorder 2, %s10
    // Predicated region
    $region45: #{pgconv_forward.2} parent=5 // pred_check
      %p3722 = pneg %p3721
    $region46: #{pgconv_forward.2} parent=5 // pred_check_branch
      %3724 = sbr.rel (%p3722) target = $region48
    $region47: #{pgconv_forward.2} parent=5 // pred_region
      %s3725 = ssub.s32 %s10, 2
      // Predicated region
      $region49: #{pgconv_forward.2} parent=47 // pred_check
        %p3726 = pneg %p144
      $region50: #{pgconv_forward.2} parent=47 // pred_check_branch
        %3728 = sbr.rel (%p3726) target = $region52
      $region51: #{pgconv_forward.2} parent=47 // pred_region
        %s3729 = smul.u32 8, %s22
        %p3730 = scmp.lt.s32.totalorder %s21, 1
        %s3731 = scalar_select %p3730, %s21, 1
        %p3732 = scmp.lt.s32.totalorder %s3729, 7
        %s3733 = scalar_select %p3732, %s3729, 7
        %s3734 = smul.addr %s3733, 2
        %s3735 = smul.addr %s3731, 16
        %s3736 = sadd.s32 %s3734, %s3735
        %s3737 = smul.addr %s3736, 4
        %s3738 = scalar_lea.vmem %s4, %s3737
      $region52: #{pgconv_forward.2} parent=47 // pred_fallthru
        _
    $region48: #{pgconv_forward.2} parent=5 // pred_fallthru
      _
  $region6: #{pgconv_forward.2} parent=0 // loop_footer
    %s14 = sadd.s32 1, %s10
  $region7: #{pgconv_forward.2} parent=0 // loop_footer_branch
    %9 = sbr.rel target = $region3
  $region8: #{pgconv_forward.2} parent=0 // loop_exit
    _

</llo_original>
